<compile_context>
chip_gen: v6e
topology: v6e:2x2x1
jax: 0.10.0
libtpu: 0.0.40
codegen_flags: <defaults>
</compile_context>

<pallas_src>
import jax
import jax.numpy as jnp
from jax.experimental import pallas as pl
from jax.experimental.pallas import tpu as pltpu

# --- hyperparameters (mirror VarianceARPredictor.__init__) ---
ENC_HIDDEN = 128         # encoder_hidden_dim
FILTER = 128             # variance_predictor_filter_size
KERNEL = 3               # variance_predictor_kernel_size (odd -> "same" padding)
LAYER_NUM = 2            # variance_predictor_layer_num
REDUCTION_FACTOR = 1
LSTM_LAYERS = 2
ZONEOUT = 0.1
LN_EPS = 1e-5

B, T = 2, 8              # batch, sequence length


# ---------------------------------------------------------------------------
# Fused kernel: conv stack + hoisted gate precompute + AR ZoneOut-LSTM + mask
# ---------------------------------------------------------------------------
def fused_variance_ar_kernel(x_ref, mask_ref,
                             cw_ref, cb_ref, cg_ref, cbe_ref,
                             wih0e_ref, wpref_ref, b0f_ref, whh0_ref,
                             w1cat_ref, b1_ref, wlinh_ref, wline_ref, blin_ref,
                             o_ref):
    # layouts:
    #   x (B, T, C) channels-last, mask (B, T) int32 (1 -> fill 0), o (B, T)
    #   cw (L*K, Cin, Cout) [PyTorch (Cout,Cin,K) pre-transposed], cb/cg/cbe (L, 1, Cout)
    #   all LSTM weights pre-transposed to (in, 4F) with gate columns repacked [i|f|o|g]
    Bq, Tq, _ = x_ref.shape
    F = whh0_ref.shape[0]
    L = cg_ref.shape[0]
    K = cw_ref.shape[0] // L
    PAD = (K - 1) // 2

    # -------------------- conv stack (conv = K shifted matmuls) --------------------
    cur_b = [x_ref[b] for b in range(Bq)]                       # per-batch (T, Cin)
    cur_flat = None                                             # (B*T, F) after each layer
    for l in range(L):
        cin = cur_b[0].shape[-1]
        z = jnp.zeros((PAD, cin), jnp.float32)
        xp_b = [jnp.concatenate([z, xb, z], axis=0) for xb in cur_b]      # "same" pad
        acc = jnp.zeros((Bq * Tq, F), jnp.float32)
        for j in range(K):                                      # static unroll over taps
            xs = jnp.concatenate([xp[j:j + Tq, :] for xp in xp_b], axis=0)  # (B*T, Cin)
            acc = acc + jnp.dot(xs, cw_ref[l * K + j],
                                preferred_element_type=jnp.float32)
        y = jnp.maximum(acc + cb_ref[l], 0.0)                   # conv bias + ReLU
        mean = jnp.mean(y, axis=-1, keepdims=True)              # LayerNorm(filter_size)
        var = jnp.mean((y - mean) ** 2, axis=-1, keepdims=True)
        cur_flat = (y - mean) * jax.lax.rsqrt(var + LN_EPS) * cg_ref[l] + cbe_ref[l]
        # Dropout: identity at inference.
        cur_b = [cur_flat[b * Tq:(b + 1) * Tq, :] for b in range(Bq)]

    # ---------- hoisted, time-invariant AR terms (outside the serial recurrence) ----
    g_enc = jnp.dot(cur_flat, wih0e_ref[...],
                    preferred_element_type=jnp.float32) + b0f_ref[...]     # (B*T, 4F)
    enc_lin = jnp.sum(cur_flat * wline_ref[...], axis=1, keepdims=True)    # (B*T, 1)

    wpref = wpref_ref[...]          # (1, 4F)  prenet weight folded through W_ih0[:, F:]
    whh0 = whh0_ref[...]            # (F, 4F)
    w1cat = w1cat_ref[...]          # (2F, 4F) = [W_ih1^T ; W_hh1^T]
    b1 = b1_ref[...]                # (1, 4F)
    wlinh = wlinh_ref[...]          # (1, F)
    blin = blin_ref[...]            # (1, 1)

    def lstm_zoneout(gates, h_prev, c_prev):
        # gate columns repacked at weight-prep time to [i | f | o | g]
        sfo = jax.nn.sigmoid(gates[:, :3 * F])                  # one EUP slab
        i_g, f_g, o_g = sfo[:, :F], sfo[:, F:2 * F], sfo[:, 2 * F:]
        g_g = jnp.tanh(gates[:, 3 * F:])
        c_new = f_g * c_prev + i_g * g_g
        h_new = o_g * jnp.tanh(c_new)
        # ZoneOutCell (eval mode): deterministic interpolation with previous state.
        h_z = ZONEOUT * h_prev + (1.0 - ZONEOUT) * h_new
        c_z = ZONEOUT * c_prev + (1.0 - ZONEOUT) * c_new
        return h_z, c_z

    h0 = jnp.zeros((Bq, F), jnp.float32)
    c0 = jnp.zeros((Bq, F), jnp.float32)
    h1 = jnp.zeros((Bq, F), jnp.float32)
    c1 = jnp.zeros((Bq, F), jnp.float32)
    prev = jnp.zeros((Bq, 1), jnp.float32)                      # go-frame
    col = jax.lax.broadcasted_iota(jnp.int32, (1, Tq), 1)       # lane-dense output assembly
    outs = jnp.zeros((Bq, Tq), jnp.float32)

    for t in range(Tq):                  # static unroll: T is small & compile-time static
        ge_t = jnp.concatenate(
            [g_enc[b * Tq + t:b * Tq + t + 1, :] for b in range(Bq)], axis=0)    # (B, 4F)
        el_t = jnp.concatenate(
            [enc_lin[b * Tq + t:b * Tq + t + 1, :] for b in range(Bq)], axis=0)  # (B, 1)
        # LSTM layer 0: hoisted enc term + folded-prenet term + recurrent term.
        g0 = ge_t + prev * wpref + jnp.dot(h0, whh0, preferred_element_type=jnp.float32)
        h0, c0 = lstm_zoneout(g0, h0, c0)
        # LSTM layer 1: single merged matmul over concat([h0_new, h1_prev]).
        g1 = jnp.dot(jnp.concatenate([h0, h1], axis=1), w1cat,
                     preferred_element_type=jnp.float32) + b1
        h1, c1 = lstm_zoneout(g1, h1, c1)
        # linear_layer(concat([h_last, enc_t])); enc part was hoisted into enc_lin.
        out_t = jnp.sum(h1 * wlinh, axis=1, keepdims=True) + el_t + blin         # (B, 1)
        prev = out_t                     # autoregressive feedback (target=None)
        outs = outs + out_t * (col == t).astype(jnp.float32)

    # masked_fill(mask, 0.0); one lane-dense (B, T) store.
    o_ref[...] = jnp.where(mask_ref[...] != 0, 0.0, outs)


# ---------------------------------------------------------------------------
# Wrapper
# ---------------------------------------------------------------------------
def variance_ar_predictor(encoder_output, mask, params):
    Bq, Tq, _ = encoder_output.shape
    args = (encoder_output.astype(jnp.float32), mask.astype(jnp.int32),
            params["conv_w"], params["conv_b"], params["conv_g"], params["conv_be"],
            params["wih0e"], params["wpre_fold"], params["b0_fold"], params["whh0"],
            params["w1cat"], params["b1"], params["wlinh"], params["wline"],
            params["blin"])
    return pl.pallas_call(
        fused_variance_ar_kernel,
        out_shape=jax.ShapeDtypeStruct((Bq, Tq), jnp.float32),
        in_specs=[pl.BlockSpec(memory_space=pltpu.MemorySpace.VMEM) for _ in args],
        out_specs=pl.BlockSpec(memory_space=pltpu.MemorySpace.VMEM),
    )(*args)


# ---------------------------------------------------------------------------
# Parameter construction (PyTorch-shaped params -> kernel-friendly layouts)
# ---------------------------------------------------------------------------
def make_params(key):
    s = 0.05
    F = FILTER
    keys = jax.random.split(key, 2 * LAYER_NUM + 12)
    ki = 0

    def nrm(shape):
        nonlocal ki
        k = keys[ki]
        ki += 1
        return jax.random.normal(k, shape, jnp.float32) * s

    assert REDUCTION_FACTOR == 1
    assert ENC_HIDDEN == FILTER, "stacked conv-weight layout assumes equal channel dims"
    # TODO(synk): support encoder_hidden_dim != filter_size (per-layer Cin) if needed.

    conv_w, conv_b = [], []
    cin = ENC_HIDDEN
    for _ in range(LAYER_NUM):
        w = nrm((FILTER, cin, KERNEL))                 # PyTorch Conv1d weight (Cout, Cin, K)
        b = nrm((FILTER,))
        conv_w.append(jnp.transpose(w, (2, 1, 0)))     # -> (K, Cin, Cout)
        conv_b.append(b[None, :])
        cin = FILTER
    conv_w = jnp.stack(conv_w).reshape(LAYER_NUM * KERNEL, ENC_HIDDEN, FILTER)
    conv_b = jnp.stack(conv_b)                                    # (L, 1, F)
    conv_g = jnp.ones((LAYER_NUM, 1, FILTER), jnp.float32)        # LayerNorm weight
    conv_be = jnp.zeros((LAYER_NUM, 1, FILTER), jnp.float32)      # LayerNorm bias

    # raw PyTorch-shaped AR parameters (gate row order i, f, g, o)
    w_ih0 = nrm((4 * F, 2 * F)); w_hh0 = nrm((4 * F, F))
    b_ih0 = nrm((4 * F,));       b_hh0 = nrm((4 * F,))
    w_ih1 = nrm((4 * F, F));     w_hh1 = nrm((4 * F, F))
    b_ih1 = nrm((4 * F,));       b_hh1 = nrm((4 * F,))
    w_pre = nrm((F, 1));         b_pre = nrm((F,))                # prenet Linear(1, F)
    w_lin = nrm((REDUCTION_FACTOR, 2 * F))
    b_lin = nrm((REDUCTION_FACTOR,))

    def repack(w):
        # reorder gate blocks along the last axis: [i|f|g|o] -> [i|f|o|g]
        return jnp.concatenate(
            [w[..., :2 * F], w[..., 3 * F:], w[..., 2 * F:3 * F]], axis=-1)

    wih0e = repack(jnp.transpose(w_ih0[:, :F]))          # (F, 4F)   xs = [enc_t, prenet]
    wih0p = repack(jnp.transpose(w_ih0[:, F:]))          # (F, 4F)
    wpre_fold = jnp.transpose(w_pre) @ wih0p             # (1, 4F)   prenet weight fold
    b0_fold = (repack((b_ih0 + b_hh0)[None, :])
               + b_pre[None, :] @ wih0p)                 # (1, 4F)   biases + prenet-bias fold
    whh0 = repack(jnp.transpose(w_hh0))                  # (F, 4F)
    w1cat = jnp.concatenate([repack(jnp.transpose(w_ih1)),
                             repack(jnp.transpose(w_hh1))], axis=0)   # (2F, 4F)
    b1 = repack((b_ih1 + b_hh1)[None, :])                # (1, 4F)

    return {
        "conv_w": conv_w, "conv_b": conv_b, "conv_g": conv_g, "conv_be": conv_be,
        "wih0e": wih0e, "wpre_fold": wpre_fold, "b0_fold": b0_fold, "whh0": whh0,
        "w1cat": w1cat, "b1": b1,
        "wlinh": w_lin[:, :F],                           # (1, F)   hcs = [h_last, enc_t]
        "wline": w_lin[:, F:],                           # (1, F)
        "blin": b_lin.reshape(1, 1),                     # (1, 1)
    }


if __name__ == "__main__":
    key = jax.random.PRNGKey(0)
    pkey, xkey = jax.random.split(key)
    params = make_params(pkey)

    encoder_output = jax.random.normal(xkey, (B, T, ENC_HIDDEN), jnp.float32)
    lengths = jnp.array([T, T - 3], jnp.int32)
    mask = jnp.arange(T)[None, :] >= lengths[:, None]     # (B, T) bool, True = padded

    out = variance_ar_predictor(encoder_output, mask, params)
    out = jax.block_until_ready(out)
    assert out.shape == (B, T)
    assert bool(jnp.all(jnp.isfinite(out)))
    assert bool(jnp.all(out[1, T - 3:] == 0.0))           # padded positions masked to 0
    print("KERNEL_OK")
</pallas_src>

<mosaic_0001>
module attributes {stable_mosaic.version = 11 : i64} {
  func.func @fused_variance_ar_kernel(%arg0: memref<2x8x128xf32, #tpu.memory_space<vmem>>, %arg1: memref<2x8xi32, #tpu.memory_space<vmem>>, %arg2: memref<6x128x128xf32, #tpu.memory_space<vmem>>, %arg3: memref<2x1x128xf32, #tpu.memory_space<vmem>>, %arg4: memref<2x1x128xf32, #tpu.memory_space<vmem>>, %arg5: memref<2x1x128xf32, #tpu.memory_space<vmem>>, %arg6: memref<128x512xf32, #tpu.memory_space<vmem>>, %arg7: memref<1x512xf32, #tpu.memory_space<vmem>>, %arg8: memref<1x512xf32, #tpu.memory_space<vmem>>, %arg9: memref<128x512xf32, #tpu.memory_space<vmem>>, %arg10: memref<256x512xf32, #tpu.memory_space<vmem>>, %arg11: memref<1x512xf32, #tpu.memory_space<vmem>>, %arg12: memref<1x128xf32, #tpu.memory_space<vmem>>, %arg13: memref<1x128xf32, #tpu.memory_space<vmem>>, %arg14: memref<1x1xf32, #tpu.memory_space<vmem>>, %arg15: memref<2x8xf32, #tpu.memory_space<vmem>>) attributes {dimension_semantics = [], scalar_prefetch = 0 : i64, scratch_operands = 0 : i64, tpu.core_type = #tpu.core_type<tc>} {
    %c0 = arith.constant 0 : index
    %c0_0 = arith.constant 0 : index
    %c0_1 = arith.constant 0 : index
    %0 = vector.load %arg0[%c0, %c0_0, %c0_1] : memref<2x8x128xf32, #tpu.memory_space<vmem>>, vector<1x8x128xf32>
    %1 = vector.shape_cast %0 : vector<1x8x128xf32> to vector<8x128xf32>
    %c1 = arith.constant 1 : index
    %c0_2 = arith.constant 0 : index
    %c0_3 = arith.constant 0 : index
    %2 = vector.load %arg0[%c1, %c0_2, %c0_3] : memref<2x8x128xf32, #tpu.memory_space<vmem>>, vector<1x8x128xf32>
    %3 = vector.shape_cast %2 : vector<1x8x128xf32> to vector<8x128xf32>
    %cst = arith.constant 0.000000e+00 : f32
    %4 = vector.broadcast %cst : f32 to vector<1x128xf32>
    %5 = tpu.concatenate %4, %1, %4 in 0 : vector<1x128xf32>, vector<8x128xf32>, vector<1x128xf32> -> vector<10x128xf32>
    %6 = tpu.concatenate %4, %3, %4 in 0 : vector<1x128xf32>, vector<8x128xf32>, vector<1x128xf32> -> vector<10x128xf32>
    %cst_4 = arith.constant 0.000000e+00 : f32
    %7 = vector.broadcast %cst_4 : f32 to vector<16x128xf32>
    %8 = vector.extract_strided_slice %5 {offsets = [0, 0], sizes = [8, 128], strides = [1, 1]} : vector<10x128xf32> to vector<8x128xf32>
    %9 = vector.extract_strided_slice %6 {offsets = [0, 0], sizes = [8, 128], strides = [1, 1]} : vector<10x128xf32> to vector<8x128xf32>
    %10 = tpu.concatenate %8, %9 in 0 : vector<8x128xf32>, vector<8x128xf32> -> vector<16x128xf32>
    %c0_5 = arith.constant 0 : index
    %c0_6 = arith.constant 0 : index
    %c0_7 = arith.constant 0 : index
    %11 = vector.load %arg2[%c0_5, %c0_6, %c0_7] : memref<6x128x128xf32, #tpu.memory_space<vmem>>, vector<1x128x128xf32>
    %12 = vector.shape_cast %11 : vector<1x128x128xf32> to vector<128x128xf32>
    %cst_8 = arith.constant dense<0.000000e+00> : vector<16x128xf32>
    %13 = tpu.matmul %10, %12, %cst_8 {dimension_numbers = #tpu.dot_dimension_numbers<[1], [0], [0], [1], [0, 0, 1, 1], [], []>} : vector<16x128xf32>, vector<128x128xf32>, vector<16x128xf32> -> vector<16x128xf32>
    %14 = arith.addf %7, %13 : vector<16x128xf32>
    %15 = vector.extract_strided_slice %5 {offsets = [1, 0], sizes = [8, 128], strides = [1, 1]} : vector<10x128xf32> to vector<8x128xf32>
    %16 = vector.extract_strided_slice %6 {offsets = [1, 0], sizes = [8, 128], strides = [1, 1]} : vector<10x128xf32> to vector<8x128xf32>
    %17 = tpu.concatenate %15, %16 in 0 : vector<8x128xf32>, vector<8x128xf32> -> vector<16x128xf32>
    %c1_9 = arith.constant 1 : index
    %c0_10 = arith.constant 0 : index
    %c0_11 = arith.constant 0 : index
    %18 = vector.load %arg2[%c1_9, %c0_10, %c0_11] : memref<6x128x128xf32, #tpu.memory_space<vmem>>, vector<1x128x128xf32>
    %19 = vector.shape_cast %18 : vector<1x128x128xf32> to vector<128x128xf32>
    %cst_12 = arith.constant dense<0.000000e+00> : vector<16x128xf32>
    %20 = tpu.matmul %17, %19, %cst_12 {dimension_numbers = #tpu.dot_dimension_numbers<[1], [0], [0], [1], [0, 0, 1, 1], [], []>} : vector<16x128xf32>, vector<128x128xf32>, vector<16x128xf32> -> vector<16x128xf32>
    %21 = arith.addf %14, %20 : vector<16x128xf32>
    %22 = vector.extract_strided_slice %5 {offsets = [2, 0], sizes = [8, 128], strides = [1, 1]} : vector<10x128xf32> to vector<8x128xf32>
    %23 = vector.extract_strided_slice %6 {offsets = [2, 0], sizes = [8, 128], strides = [1, 1]} : vector<10x128xf32> to vector<8x128xf32>
    %24 = tpu.concatenate %22, %23 in 0 : vector<8x128xf32>, vector<8x128xf32> -> vector<16x128xf32>
    %c2 = arith.constant 2 : index
    %c0_13 = arith.constant 0 : index
    %c0_14 = arith.constant 0 : index
    %25 = vector.load %arg2[%c2, %c0_13, %c0_14] : memref<6x128x128xf32, #tpu.memory_space<vmem>>, vector<1x128x128xf32>
    %26 = vector.shape_cast %25 : vector<1x128x128xf32> to vector<128x128xf32>
    %cst_15 = arith.constant dense<0.000000e+00> : vector<16x128xf32>
    %27 = tpu.matmul %24, %26, %cst_15 {dimension_numbers = #tpu.dot_dimension_numbers<[1], [0], [0], [1], [0, 0, 1, 1], [], []>} : vector<16x128xf32>, vector<128x128xf32>, vector<16x128xf32> -> vector<16x128xf32>
    %28 = arith.addf %21, %27 : vector<16x128xf32>
    %c0_16 = arith.constant 0 : index
    %c0_17 = arith.constant 0 : index
    %c0_18 = arith.constant 0 : index
    %29 = vector.load %arg3[%c0_16, %c0_17, %c0_18] : memref<2x1x128xf32, #tpu.memory_space<vmem>>, vector<1x1x128xf32>
    %30 = vector.shape_cast %29 : vector<1x1x128xf32> to vector<1x128xf32>
    %31 = vector.broadcast %30 : vector<1x128xf32> to vector<16x128xf32>
    %32 = arith.addf %28, %31 : vector<16x128xf32>
    %cst_19 = arith.constant 0.000000e+00 : f32
    %33 = vector.broadcast %cst_19 : f32 to vector<16x128xf32>
    %34 = arith.maximumf %32, %33 : vector<16x128xf32>
    %cst_20 = arith.constant dense<0.000000e+00> : vector<16xf32>
    %35 = vector.multi_reduction <add>, %34, %cst_20 [1] : vector<16x128xf32> to vector<16xf32>
    %36 = vector.shape_cast %35 : vector<16xf32> to vector<16x1xf32>
    %cst_21 = arith.constant 1.280000e+02 : f32
    %37 = vector.broadcast %cst_21 : f32 to vector<16x1xf32>
    %38 = arith.divf %36, %37 : vector<16x1xf32>
    %39 = vector.broadcast %38 : vector<16x1xf32> to vector<16x128xf32>
    %40 = arith.subf %34, %39 : vector<16x128xf32>
    %41 = arith.mulf %40, %40 : vector<16x128xf32>
    %cst_22 = arith.constant dense<0.000000e+00> : vector<16xf32>
    %42 = vector.multi_reduction <add>, %41, %cst_22 [1] : vector<16x128xf32> to vector<16xf32>
    %43 = vector.shape_cast %42 : vector<16xf32> to vector<16x1xf32>
    %cst_23 = arith.constant 1.280000e+02 : f32
    %44 = vector.broadcast %cst_23 : f32 to vector<16x1xf32>
    %45 = arith.divf %43, %44 : vector<16x1xf32>
    %46 = vector.broadcast %38 : vector<16x1xf32> to vector<16x128xf32>
    %47 = arith.subf %34, %46 : vector<16x128xf32>
    %cst_24 = arith.constant 9.99999974E-6 : f32
    %48 = vector.broadcast %cst_24 : f32 to vector<16x1xf32>
    %49 = arith.addf %45, %48 : vector<16x1xf32>
    %50 = math.rsqrt %49 : vector<16x1xf32>
    %51 = vector.broadcast %50 : vector<16x1xf32> to vector<16x128xf32>
    %52 = arith.mulf %47, %51 : vector<16x128xf32>
    %c0_25 = arith.constant 0 : index
    %c0_26 = arith.constant 0 : index
    %c0_27 = arith.constant 0 : index
    %53 = vector.load %arg4[%c0_25, %c0_26, %c0_27] : memref<2x1x128xf32, #tpu.memory_space<vmem>>, vector<1x1x128xf32>
    %54 = vector.shape_cast %53 : vector<1x1x128xf32> to vector<1x128xf32>
    %55 = vector.broadcast %54 : vector<1x128xf32> to vector<16x128xf32>
    %56 = arith.mulf %52, %55 : vector<16x128xf32>
    %c0_28 = arith.constant 0 : index
    %c0_29 = arith.constant 0 : index
    %c0_30 = arith.constant 0 : index
    %57 = vector.load %arg5[%c0_28, %c0_29, %c0_30] : memref<2x1x128xf32, #tpu.memory_space<vmem>>, vector<1x1x128xf32>
    %58 = vector.shape_cast %57 : vector<1x1x128xf32> to vector<1x128xf32>
    %59 = vector.broadcast %58 : vector<1x128xf32> to vector<16x128xf32>
    %60 = arith.addf %56, %59 : vector<16x128xf32>
    %61 = vector.extract_strided_slice %60 {offsets = [0, 0], sizes = [8, 128], strides = [1, 1]} : vector<16x128xf32> to vector<8x128xf32>
    %62 = vector.extract_strided_slice %60 {offsets = [8, 0], sizes = [8, 128], strides = [1, 1]} : vector<16x128xf32> to vector<8x128xf32>
    %cst_31 = arith.constant 0.000000e+00 : f32
    %63 = vector.broadcast %cst_31 : f32 to vector<1x128xf32>
    %64 = tpu.concatenate %63, %61, %63 in 0 : vector<1x128xf32>, vector<8x128xf32>, vector<1x128xf32> -> vector<10x128xf32>
    %65 = tpu.concatenate %63, %62, %63 in 0 : vector<1x128xf32>, vector<8x128xf32>, vector<1x128xf32> -> vector<10x128xf32>
    %cst_32 = arith.constant 0.000000e+00 : f32
    %66 = vector.broadcast %cst_32 : f32 to vector<16x128xf32>
    %67 = vector.extract_strided_slice %64 {offsets = [0, 0], sizes = [8, 128], strides = [1, 1]} : vector<10x128xf32> to vector<8x128xf32>
    %68 = vector.extract_strided_slice %65 {offsets = [0, 0], sizes = [8, 128], strides = [1, 1]} : vector<10x128xf32> to vector<8x128xf32>
    %69 = tpu.concatenate %67, %68 in 0 : vector<8x128xf32>, vector<8x128xf32> -> vector<16x128xf32>
    %c3 = arith.constant 3 : index
    %c0_33 = arith.constant 0 : index
    %c0_34 = arith.constant 0 : index
    %70 = vector.load %arg2[%c3, %c0_33, %c0_34] : memref<6x128x128xf32, #tpu.memory_space<vmem>>, vector<1x128x128xf32>
    %71 = vector.shape_cast %70 : vector<1x128x128xf32> to vector<128x128xf32>
    %cst_35 = arith.constant dense<0.000000e+00> : vector<16x128xf32>
    %72 = tpu.matmul %69, %71, %cst_35 {dimension_numbers = #tpu.dot_dimension_numbers<[1], [0], [0], [1], [0, 0, 1, 1], [], []>} : vector<16x128xf32>, vector<128x128xf32>, vector<16x128xf32> -> vector<16x128xf32>
    %73 = arith.addf %66, %72 : vector<16x128xf32>
    %74 = vector.extract_strided_slice %64 {offsets = [1, 0], sizes = [8, 128], strides = [1, 1]} : vector<10x128xf32> to vector<8x128xf32>
    %75 = vector.extract_strided_slice %65 {offsets = [1, 0], sizes = [8, 128], strides = [1, 1]} : vector<10x128xf32> to vector<8x128xf32>
    %76 = tpu.concatenate %74, %75 in 0 : vector<8x128xf32>, vector<8x128xf32> -> vector<16x128xf32>
    %c4 = arith.constant 4 : index
    %c0_36 = arith.constant 0 : index
    %c0_37 = arith.constant 0 : index
    %77 = vector.load %arg2[%c4, %c0_36, %c0_37] : memref<6x128x128xf32, #tpu.memory_space<vmem>>, vector<1x128x128xf32>
    %78 = vector.shape_cast %77 : vector<1x128x128xf32> to vector<128x128xf32>
    %cst_38 = arith.constant dense<0.000000e+00> : vector<16x128xf32>
    %79 = tpu.matmul %76, %78, %cst_38 {dimension_numbers = #tpu.dot_dimension_numbers<[1], [0], [0], [1], [0, 0, 1, 1], [], []>} : vector<16x128xf32>, vector<128x128xf32>, vector<16x128xf32> -> vector<16x128xf32>
    %80 = arith.addf %73, %79 : vector<16x128xf32>
    %81 = vector.extract_strided_slice %64 {offsets = [2, 0], sizes = [8, 128], strides = [1, 1]} : vector<10x128xf32> to vector<8x128xf32>
    %82 = vector.extract_strided_slice %65 {offsets = [2, 0], sizes = [8, 128], strides = [1, 1]} : vector<10x128xf32> to vector<8x128xf32>
    %83 = tpu.concatenate %81, %82 in 0 : vector<8x128xf32>, vector<8x128xf32> -> vector<16x128xf32>
    %c5 = arith.constant 5 : index
    %c0_39 = arith.constant 0 : index
    %c0_40 = arith.constant 0 : index
    %84 = vector.load %arg2[%c5, %c0_39, %c0_40] : memref<6x128x128xf32, #tpu.memory_space<vmem>>, vector<1x128x128xf32>
    %85 = vector.shape_cast %84 : vector<1x128x128xf32> to vector<128x128xf32>
    %cst_41 = arith.constant dense<0.000000e+00> : vector<16x128xf32>
    %86 = tpu.matmul %83, %85, %cst_41 {dimension_numbers = #tpu.dot_dimension_numbers<[1], [0], [0], [1], [0, 0, 1, 1], [], []>} : vector<16x128xf32>, vector<128x128xf32>, vector<16x128xf32> -> vector<16x128xf32>
    %87 = arith.addf %80, %86 : vector<16x128xf32>
    %c1_42 = arith.constant 1 : index
    %c0_43 = arith.constant 0 : index
    %c0_44 = arith.constant 0 : index
    %88 = vector.load %arg3[%c1_42, %c0_43, %c0_44] : memref<2x1x128xf32, #tpu.memory_space<vmem>>, vector<1x1x128xf32>
    %89 = vector.shape_cast %88 : vector<1x1x128xf32> to vector<1x128xf32>
    %90 = vector.broadcast %89 : vector<1x128xf32> to vector<16x128xf32>
    %91 = arith.addf %87, %90 : vector<16x128xf32>
    %cst_45 = arith.constant 0.000000e+00 : f32
    %92 = vector.broadcast %cst_45 : f32 to vector<16x128xf32>
    %93 = arith.maximumf %91, %92 : vector<16x128xf32>
    %cst_46 = arith.constant dense<0.000000e+00> : vector<16xf32>
    %94 = vector.multi_reduction <add>, %93, %cst_46 [1] : vector<16x128xf32> to vector<16xf32>
    %95 = vector.shape_cast %94 : vector<16xf32> to vector<16x1xf32>
    %cst_47 = arith.constant 1.280000e+02 : f32
    %96 = vector.broadcast %cst_47 : f32 to vector<16x1xf32>
    %97 = arith.divf %95, %96 : vector<16x1xf32>
    %98 = vector.broadcast %97 : vector<16x1xf32> to vector<16x128xf32>
    %99 = arith.subf %93, %98 : vector<16x128xf32>
    %100 = arith.mulf %99, %99 : vector<16x128xf32>
    %cst_48 = arith.constant dense<0.000000e+00> : vector<16xf32>
    %101 = vector.multi_reduction <add>, %100, %cst_48 [1] : vector<16x128xf32> to vector<16xf32>
    %102 = vector.shape_cast %101 : vector<16xf32> to vector<16x1xf32>
    %cst_49 = arith.constant 1.280000e+02 : f32
    %103 = vector.broadcast %cst_49 : f32 to vector<16x1xf32>
    %104 = arith.divf %102, %103 : vector<16x1xf32>
    %105 = vector.broadcast %97 : vector<16x1xf32> to vector<16x128xf32>
    %106 = arith.subf %93, %105 : vector<16x128xf32>
    %cst_50 = arith.constant 9.99999974E-6 : f32
    %107 = vector.broadcast %cst_50 : f32 to vector<16x1xf32>
    %108 = arith.addf %104, %107 : vector<16x1xf32>
    %109 = math.rsqrt %108 : vector<16x1xf32>
    %110 = vector.broadcast %109 : vector<16x1xf32> to vector<16x128xf32>
    %111 = arith.mulf %106, %110 : vector<16x128xf32>
    %c1_51 = arith.constant 1 : index
    %c0_52 = arith.constant 0 : index
    %c0_53 = arith.constant 0 : index
    %112 = vector.load %arg4[%c1_51, %c0_52, %c0_53] : memref<2x1x128xf32, #tpu.memory_space<vmem>>, vector<1x1x128xf32>
    %113 = vector.shape_cast %112 : vector<1x1x128xf32> to vector<1x128xf32>
    %114 = vector.broadcast %113 : vector<1x128xf32> to vector<16x128xf32>
    %115 = arith.mulf %111, %114 : vector<16x128xf32>
    %c1_54 = arith.constant 1 : index
    %c0_55 = arith.constant 0 : index
    %c0_56 = arith.constant 0 : index
    %116 = vector.load %arg5[%c1_54, %c0_55, %c0_56] : memref<2x1x128xf32, #tpu.memory_space<vmem>>, vector<1x1x128xf32>
    %117 = vector.shape_cast %116 : vector<1x1x128xf32> to vector<1x128xf32>
    %118 = vector.broadcast %117 : vector<1x128xf32> to vector<16x128xf32>
    %119 = arith.addf %115, %118 : vector<16x128xf32>
    %c0_57 = arith.constant 0 : index
    %c0_58 = arith.constant 0 : index
    %120 = vector.load %arg6[%c0_57, %c0_58] : memref<128x512xf32, #tpu.memory_space<vmem>>, vector<128x512xf32>
    %cst_59 = arith.constant dense<0.000000e+00> : vector<16x512xf32>
    %121 = tpu.matmul %119, %120, %cst_59 {dimension_numbers = #tpu.dot_dimension_numbers<[1], [0], [0], [1], [0, 0, 1, 1], [], []>} : vector<16x128xf32>, vector<128x512xf32>, vector<16x512xf32> -> vector<16x512xf32>
    %c0_60 = arith.constant 0 : index
    %c0_61 = arith.constant 0 : index
    %122 = vector.load %arg8[%c0_60, %c0_61] : memref<1x512xf32, #tpu.memory_space<vmem>>, vector<1x512xf32>
    %123 = vector.broadcast %122 : vector<1x512xf32> to vector<16x512xf32>
    %124 = arith.addf %121, %123 : vector<16x512xf32>
    %c0_62 = arith.constant 0 : index
    %c0_63 = arith.constant 0 : index
    %125 = vector.load %arg13[%c0_62, %c0_63] : memref<1x128xf32, #tpu.memory_space<vmem>>, vector<1x128xf32>
    %126 = vector.broadcast %125 : vector<1x128xf32> to vector<16x128xf32>
    %127 = arith.mulf %119, %126 : vector<16x128xf32>
    %cst_64 = arith.constant dense<0.000000e+00> : vector<16xf32>
    %128 = vector.multi_reduction <add>, %127, %cst_64 [1] : vector<16x128xf32> to vector<16xf32>
    %129 = vector.shape_cast %128 : vector<16xf32> to vector<16x1xf32>
    %c0_65 = arith.constant 0 : index
    %c0_66 = arith.constant 0 : index
    %130 = vector.load %arg7[%c0_65, %c0_66] : memref<1x512xf32, #tpu.memory_space<vmem>>, vector<1x512xf32>
    %c0_67 = arith.constant 0 : index
    %c0_68 = arith.constant 0 : index
    %131 = vector.load %arg9[%c0_67, %c0_68] : memref<128x512xf32, #tpu.memory_space<vmem>>, vector<128x512xf32>
    %c0_69 = arith.constant 0 : index
    %c0_70 = arith.constant 0 : index
    %132 = vector.load %arg10[%c0_69, %c0_70] : memref<256x512xf32, #tpu.memory_space<vmem>>, vector<256x512xf32>
    %c0_71 = arith.constant 0 : index
    %c0_72 = arith.constant 0 : index
    %133 = vector.load %arg11[%c0_71, %c0_72] : memref<1x512xf32, #tpu.memory_space<vmem>>, vector<1x512xf32>
    %c0_73 = arith.constant 0 : index
    %c0_74 = arith.constant 0 : index
    %134 = vector.load %arg12[%c0_73, %c0_74] : memref<1x128xf32, #tpu.memory_space<vmem>>, vector<1x128xf32>
    %c0_75 = arith.constant 0 : index
    %c0_76 = arith.constant 0 : index
    %135 = vector.load %arg14[%c0_75, %c0_76] : memref<1x1xf32, #tpu.memory_space<vmem>>, vector<1x1xf32>
    %cst_77 = arith.constant 0.000000e+00 : f32
    %136 = vector.broadcast %cst_77 : f32 to vector<2x128xf32>
    %cst_78 = arith.constant 0.000000e+00 : f32
    %137 = vector.broadcast %cst_78 : f32 to vector<2x128xf32>
    %cst_79 = arith.constant 0.000000e+00 : f32
    %138 = vector.broadcast %cst_79 : f32 to vector<2x128xf32>
    %cst_80 = arith.constant 0.000000e+00 : f32
    %139 = vector.broadcast %cst_80 : f32 to vector<2x128xf32>
    %cst_81 = arith.constant 0.000000e+00 : f32
    %140 = vector.broadcast %cst_81 : f32 to vector<2x1xf32>
    %141 = tpu.iota {dimensions = array<i32: 1>} : vector<1x8xi32>
    %cst_82 = arith.constant 0.000000e+00 : f32
    %142 = vector.broadcast %cst_82 : f32 to vector<2x8xf32>
    %143 = vector.extract_strided_slice %124 {offsets = [0, 0], sizes = [1, 512], strides = [1, 1]} : vector<16x512xf32> to vector<1x512xf32>
    %144 = vector.extract_strided_slice %124 {offsets = [8, 0], sizes = [1, 512], strides = [1, 1]} : vector<16x512xf32> to vector<1x512xf32>
    %145 = tpu.concatenate %143, %144 in 0 : vector<1x512xf32>, vector<1x512xf32> -> vector<2x512xf32>
    %146 = vector.extract_strided_slice %129 {offsets = [0, 0], sizes = [1, 1], strides = [1, 1]} : vector<16x1xf32> to vector<1x1xf32>
    %147 = vector.extract_strided_slice %129 {offsets = [8, 0], sizes = [1, 1], strides = [1, 1]} : vector<16x1xf32> to vector<1x1xf32>
    %148 = tpu.concatenate %146, %147 in 0 : vector<1x1xf32>, vector<1x1xf32> -> vector<2x1xf32>
    %149 = vector.broadcast %140 : vector<2x1xf32> to vector<2x512xf32>
    %150 = vector.broadcast %130 : vector<1x512xf32> to vector<2x512xf32>
    %151 = arith.mulf %149, %150 : vector<2x512xf32>
    %152 = arith.addf %145, %151 : vector<2x512xf32>
    %cst_83 = arith.constant dense<0.000000e+00> : vector<2x512xf32>
    %153 = tpu.matmul %136, %131, %cst_83 {dimension_numbers = #tpu.dot_dimension_numbers<[1], [0], [0], [1], [0, 0, 1, 1], [], []>} : vector<2x128xf32>, vector<128x512xf32>, vector<2x512xf32> -> vector<2x512xf32>
    %154 = arith.addf %152, %153 : vector<2x512xf32>
    %155 = vector.extract_strided_slice %154 {offsets = [0, 0], sizes = [2, 384], strides = [1, 1]} : vector<2x512xf32> to vector<2x384xf32>
    %156 = arith.negf %155 : vector<2x384xf32>
    %157 = math.exp %156 : vector<2x384xf32>
    %cst_84 = arith.constant 1.000000e+00 : f32
    %158 = vector.broadcast %cst_84 : f32 to vector<2x384xf32>
    %159 = arith.addf %158, %157 : vector<2x384xf32>
    %160 = arith.divf %158, %159 : vector<2x384xf32>
    %161 = vector.extract_strided_slice %160 {offsets = [0, 0], sizes = [2, 128], strides = [1, 1]} : vector<2x384xf32> to vector<2x128xf32>
    %162 = vector.extract_strided_slice %160 {offsets = [0, 128], sizes = [2, 128], strides = [1, 1]} : vector<2x384xf32> to vector<2x128xf32>
    %163 = vector.extract_strided_slice %160 {offsets = [0, 256], sizes = [2, 128], strides = [1, 1]} : vector<2x384xf32> to vector<2x128xf32>
    %164 = vector.extract_strided_slice %154 {offsets = [0, 384], sizes = [2, 128], strides = [1, 1]} : vector<2x512xf32> to vector<2x128xf32>
    %165 = math.tanh %164 : vector<2x128xf32>
    %166 = arith.mulf %162, %137 : vector<2x128xf32>
    %167 = arith.mulf %161, %165 : vector<2x128xf32>
    %168 = arith.addf %166, %167 : vector<2x128xf32>
    %169 = math.tanh %168 : vector<2x128xf32>
    %170 = arith.mulf %163, %169 : vector<2x128xf32>
    %cst_85 = arith.constant 1.000000e-01 : f32
    %171 = vector.broadcast %cst_85 : f32 to vector<2x128xf32>
    %172 = arith.mulf %171, %136 : vector<2x128xf32>
    %cst_86 = arith.constant 0.899999976 : f32
    %173 = vector.broadcast %cst_86 : f32 to vector<2x128xf32>
    %174 = arith.mulf %173, %170 : vector<2x128xf32>
    %175 = arith.addf %172, %174 : vector<2x128xf32>
    %cst_87 = arith.constant 1.000000e-01 : f32
    %176 = vector.broadcast %cst_87 : f32 to vector<2x128xf32>
    %177 = arith.mulf %176, %137 : vector<2x128xf32>
    %cst_88 = arith.constant 0.899999976 : f32
    %178 = vector.broadcast %cst_88 : f32 to vector<2x128xf32>
    %179 = arith.mulf %178, %168 : vector<2x128xf32>
    %180 = arith.addf %177, %179 : vector<2x128xf32>
    %181 = tpu.concatenate %175, %138 in 1 : vector<2x128xf32>, vector<2x128xf32> -> vector<2x256xf32>
    %cst_89 = arith.constant dense<0.000000e+00> : vector<2x512xf32>
    %182 = tpu.matmul %181, %132, %cst_89 {dimension_numbers = #tpu.dot_dimension_numbers<[1], [0], [0], [1], [0, 0, 1, 1], [], []>} : vector<2x256xf32>, vector<256x512xf32>, vector<2x512xf32> -> vector<2x512xf32>
    %183 = vector.broadcast %133 : vector<1x512xf32> to vector<2x512xf32>
    %184 = arith.addf %182, %183 : vector<2x512xf32>
    %185 = vector.extract_strided_slice %184 {offsets = [0, 0], sizes = [2, 384], strides = [1, 1]} : vector<2x512xf32> to vector<2x384xf32>
    %186 = arith.negf %185 : vector<2x384xf32>
    %187 = math.exp %186 : vector<2x384xf32>
    %cst_90 = arith.constant 1.000000e+00 : f32
    %188 = vector.broadcast %cst_90 : f32 to vector<2x384xf32>
    %189 = arith.addf %188, %187 : vector<2x384xf32>
    %190 = arith.divf %188, %189 : vector<2x384xf32>
    %191 = vector.extract_strided_slice %190 {offsets = [0, 0], sizes = [2, 128], strides = [1, 1]} : vector<2x384xf32> to vector<2x128xf32>
    %192 = vector.extract_strided_slice %190 {offsets = [0, 128], sizes = [2, 128], strides = [1, 1]} : vector<2x384xf32> to vector<2x128xf32>
    %193 = vector.extract_strided_slice %190 {offsets = [0, 256], sizes = [2, 128], strides = [1, 1]} : vector<2x384xf32> to vector<2x128xf32>
    %194 = vector.extract_strided_slice %184 {offsets = [0, 384], sizes = [2, 128], strides = [1, 1]} : vector<2x512xf32> to vector<2x128xf32>
    %195 = math.tanh %194 : vector<2x128xf32>
    %196 = arith.mulf %192, %139 : vector<2x128xf32>
    %197 = arith.mulf %191, %195 : vector<2x128xf32>
    %198 = arith.addf %196, %197 : vector<2x128xf32>
    %199 = math.tanh %198 : vector<2x128xf32>
    %200 = arith.mulf %193, %199 : vector<2x128xf32>
    %cst_91 = arith.constant 1.000000e-01 : f32
    %201 = vector.broadcast %cst_91 : f32 to vector<2x128xf32>
    %202 = arith.mulf %201, %138 : vector<2x128xf32>
    %cst_92 = arith.constant 0.899999976 : f32
    %203 = vector.broadcast %cst_92 : f32 to vector<2x128xf32>
    %204 = arith.mulf %203, %200 : vector<2x128xf32>
    %205 = arith.addf %202, %204 : vector<2x128xf32>
    %cst_93 = arith.constant 1.000000e-01 : f32
    %206 = vector.broadcast %cst_93 : f32 to vector<2x128xf32>
    %207 = arith.mulf %206, %139 : vector<2x128xf32>
    %cst_94 = arith.constant 0.899999976 : f32
    %208 = vector.broadcast %cst_94 : f32 to vector<2x128xf32>
    %209 = arith.mulf %208, %198 : vector<2x128xf32>
    %210 = arith.addf %207, %209 : vector<2x128xf32>
    %211 = vector.broadcast %134 : vector<1x128xf32> to vector<2x128xf32>
    %212 = arith.mulf %205, %211 : vector<2x128xf32>
    %cst_95 = arith.constant dense<0.000000e+00> : vector<2xf32>
    %213 = vector.multi_reduction <add>, %212, %cst_95 [1] : vector<2x128xf32> to vector<2xf32>
    %214 = vector.shape_cast %213 : vector<2xf32> to vector<2x1xf32>
    %215 = arith.addf %214, %148 : vector<2x1xf32>
    %216 = vector.broadcast %135 : vector<1x1xf32> to vector<2x1xf32>
    %217 = arith.addf %215, %216 : vector<2x1xf32>
    %c0_i32 = arith.constant 0 : i32
    %218 = vector.broadcast %c0_i32 : i32 to vector<1x8xi32>
    %219 = arith.cmpi eq, %141, %218 : vector<1x8xi32>
    %220 = arith.extui %219 : vector<1x8xi1> to vector<1x8xi32>
    %221 = arith.sitofp %220 : vector<1x8xi32> to vector<1x8xf32>
    %222 = vector.broadcast %217 : vector<2x1xf32> to vector<2x8xf32>
    %223 = vector.broadcast %221 : vector<1x8xf32> to vector<2x8xf32>
    %224 = arith.mulf %222, %223 : vector<2x8xf32>
    %225 = arith.addf %142, %224 : vector<2x8xf32>
    %226 = vector.extract_strided_slice %124 {offsets = [1, 0], sizes = [1, 512], strides = [1, 1]} : vector<16x512xf32> to vector<1x512xf32>
    %227 = vector.extract_strided_slice %124 {offsets = [9, 0], sizes = [1, 512], strides = [1, 1]} : vector<16x512xf32> to vector<1x512xf32>
    %228 = tpu.concatenate %226, %227 in 0 : vector<1x512xf32>, vector<1x512xf32> -> vector<2x512xf32>
    %229 = vector.extract_strided_slice %129 {offsets = [1, 0], sizes = [1, 1], strides = [1, 1]} : vector<16x1xf32> to vector<1x1xf32>
    %230 = vector.extract_strided_slice %129 {offsets = [9, 0], sizes = [1, 1], strides = [1, 1]} : vector<16x1xf32> to vector<1x1xf32>
    %231 = tpu.concatenate %229, %230 in 0 : vector<1x1xf32>, vector<1x1xf32> -> vector<2x1xf32>
    %232 = vector.broadcast %217 : vector<2x1xf32> to vector<2x512xf32>
    %233 = vector.broadcast %130 : vector<1x512xf32> to vector<2x512xf32>
    %234 = arith.mulf %232, %233 : vector<2x512xf32>
    %235 = arith.addf %228, %234 : vector<2x512xf32>
    %cst_96 = arith.constant dense<0.000000e+00> : vector<2x512xf32>
    %236 = tpu.matmul %175, %131, %cst_96 {dimension_numbers = #tpu.dot_dimension_numbers<[1], [0], [0], [1], [0, 0, 1, 1], [], []>} : vector<2x128xf32>, vector<128x512xf32>, vector<2x512xf32> -> vector<2x512xf32>
    %237 = arith.addf %235, %236 : vector<2x512xf32>
    %238 = vector.extract_strided_slice %237 {offsets = [0, 0], sizes = [2, 384], strides = [1, 1]} : vector<2x512xf32> to vector<2x384xf32>
    %239 = arith.negf %238 : vector<2x384xf32>
    %240 = math.exp %239 : vector<2x384xf32>
    %cst_97 = arith.constant 1.000000e+00 : f32
    %241 = vector.broadcast %cst_97 : f32 to vector<2x384xf32>
    %242 = arith.addf %241, %240 : vector<2x384xf32>
    %243 = arith.divf %241, %242 : vector<2x384xf32>
    %244 = vector.extract_strided_slice %243 {offsets = [0, 0], sizes = [2, 128], strides = [1, 1]} : vector<2x384xf32> to vector<2x128xf32>
    %245 = vector.extract_strided_slice %243 {offsets = [0, 128], sizes = [2, 128], strides = [1, 1]} : vector<2x384xf32> to vector<2x128xf32>
    %246 = vector.extract_strided_slice %243 {offsets = [0, 256], sizes = [2, 128], strides = [1, 1]} : vector<2x384xf32> to vector<2x128xf32>
    %247 = vector.extract_strided_slice %237 {offsets = [0, 384], sizes = [2, 128], strides = [1, 1]} : vector<2x512xf32> to vector<2x128xf32>
    %248 = math.tanh %247 : vector<2x128xf32>
    %249 = arith.mulf %245, %180 : vector<2x128xf32>
    %250 = arith.mulf %244, %248 : vector<2x128xf32>
    %251 = arith.addf %249, %250 : vector<2x128xf32>
    %252 = math.tanh %251 : vector<2x128xf32>
    %253 = arith.mulf %246, %252 : vector<2x128xf32>
    %cst_98 = arith.constant 1.000000e-01 : f32
    %254 = vector.broadcast %cst_98 : f32 to vector<2x128xf32>
    %255 = arith.mulf %254, %175 : vector<2x128xf32>
    %cst_99 = arith.constant 0.899999976 : f32
    %256 = vector.broadcast %cst_99 : f32 to vector<2x128xf32>
    %257 = arith.mulf %256, %253 : vector<2x128xf32>
    %258 = arith.addf %255, %257 : vector<2x128xf32>
    %cst_100 = arith.constant 1.000000e-01 : f32
    %259 = vector.broadcast %cst_100 : f32 to vector<2x128xf32>
    %260 = arith.mulf %259, %180 : vector<2x128xf32>
    %cst_101 = arith.constant 0.899999976 : f32
    %261 = vector.broadcast %cst_101 : f32 to vector<2x128xf32>
    %262 = arith.mulf %261, %251 : vector<2x128xf32>
    %263 = arith.addf %260, %262 : vector<2x128xf32>
    %264 = tpu.concatenate %258, %205 in 1 : vector<2x128xf32>, vector<2x128xf32> -> vector<2x256xf32>
    %cst_102 = arith.constant dense<0.000000e+00> : vector<2x512xf32>
    %265 = tpu.matmul %264, %132, %cst_102 {dimension_numbers = #tpu.dot_dimension_numbers<[1], [0], [0], [1], [0, 0, 1, 1], [], []>} : vector<2x256xf32>, vector<256x512xf32>, vector<2x512xf32> -> vector<2x512xf32>
    %266 = vector.broadcast %133 : vector<1x512xf32> to vector<2x512xf32>
    %267 = arith.addf %265, %266 : vector<2x512xf32>
    %268 = vector.extract_strided_slice %267 {offsets = [0, 0], sizes = [2, 384], strides = [1, 1]} : vector<2x512xf32> to vector<2x384xf32>
    %269 = arith.negf %268 : vector<2x384xf32>
    %270 = math.exp %269 : vector<2x384xf32>
    %cst_103 = arith.constant 1.000000e+00 : f32
    %271 = vector.broadcast %cst_103 : f32 to vector<2x384xf32>
    %272 = arith.addf %271, %270 : vector<2x384xf32>
    %273 = arith.divf %271, %272 : vector<2x384xf32>
    %274 = vector.extract_strided_slice %273 {offsets = [0, 0], sizes = [2, 128], strides = [1, 1]} : vector<2x384xf32> to vector<2x128xf32>
    %275 = vector.extract_strided_slice %273 {offsets = [0, 128], sizes = [2, 128], strides = [1, 1]} : vector<2x384xf32> to vector<2x128xf32>
    %276 = vector.extract_strided_slice %273 {offsets = [0, 256], sizes = [2, 128], strides = [1, 1]} : vector<2x384xf32> to vector<2x128xf32>
    %277 = vector.extract_strided_slice %267 {offsets = [0, 384], sizes = [2, 128], strides = [1, 1]} : vector<2x512xf32> to vector<2x128xf32>
    %278 = math.tanh %277 : vector<2x128xf32>
    %279 = arith.mulf %275, %210 : vector<2x128xf32>
    %280 = arith.mulf %274, %278 : vector<2x128xf32>
    %281 = arith.addf %279, %280 : vector<2x128xf32>
    %282 = math.tanh %281 : vector<2x128xf32>
    %283 = arith.mulf %276, %282 : vector<2x128xf32>
    %cst_104 = arith.constant 1.000000e-01 : f32
    %284 = vector.broadcast %cst_104 : f32 to vector<2x128xf32>
    %285 = arith.mulf %284, %205 : vector<2x128xf32>
    %cst_105 = arith.constant 0.899999976 : f32
    %286 = vector.broadcast %cst_105 : f32 to vector<2x128xf32>
    %287 = arith.mulf %286, %283 : vector<2x128xf32>
    %288 = arith.addf %285, %287 : vector<2x128xf32>
    %cst_106 = arith.constant 1.000000e-01 : f32
    %289 = vector.broadcast %cst_106 : f32 to vector<2x128xf32>
    %290 = arith.mulf %289, %210 : vector<2x128xf32>
    %cst_107 = arith.constant 0.899999976 : f32
    %291 = vector.broadcast %cst_107 : f32 to vector<2x128xf32>
    %292 = arith.mulf %291, %281 : vector<2x128xf32>
    %293 = arith.addf %290, %292 : vector<2x128xf32>
    %294 = vector.broadcast %134 : vector<1x128xf32> to vector<2x128xf32>
    %295 = arith.mulf %288, %294 : vector<2x128xf32>
    %cst_108 = arith.constant dense<0.000000e+00> : vector<2xf32>
    %296 = vector.multi_reduction <add>, %295, %cst_108 [1] : vector<2x128xf32> to vector<2xf32>
    %297 = vector.shape_cast %296 : vector<2xf32> to vector<2x1xf32>
    %298 = arith.addf %297, %231 : vector<2x1xf32>
    %299 = vector.broadcast %135 : vector<1x1xf32> to vector<2x1xf32>
    %300 = arith.addf %298, %299 : vector<2x1xf32>
    %c1_i32 = arith.constant 1 : i32
    %301 = vector.broadcast %c1_i32 : i32 to vector<1x8xi32>
    %302 = arith.cmpi eq, %141, %301 : vector<1x8xi32>
    %303 = arith.extui %302 : vector<1x8xi1> to vector<1x8xi32>
    %304 = arith.sitofp %303 : vector<1x8xi32> to vector<1x8xf32>
    %305 = vector.broadcast %300 : vector<2x1xf32> to vector<2x8xf32>
    %306 = vector.broadcast %304 : vector<1x8xf32> to vector<2x8xf32>
    %307 = arith.mulf %305, %306 : vector<2x8xf32>
    %308 = arith.addf %225, %307 : vector<2x8xf32>
    %309 = vector.extract_strided_slice %124 {offsets = [2, 0], sizes = [1, 512], strides = [1, 1]} : vector<16x512xf32> to vector<1x512xf32>
    %310 = vector.extract_strided_slice %124 {offsets = [10, 0], sizes = [1, 512], strides = [1, 1]} : vector<16x512xf32> to vector<1x512xf32>
    %311 = tpu.concatenate %309, %310 in 0 : vector<1x512xf32>, vector<1x512xf32> -> vector<2x512xf32>
    %312 = vector.extract_strided_slice %129 {offsets = [2, 0], sizes = [1, 1], strides = [1, 1]} : vector<16x1xf32> to vector<1x1xf32>
    %313 = vector.extract_strided_slice %129 {offsets = [10, 0], sizes = [1, 1], strides = [1, 1]} : vector<16x1xf32> to vector<1x1xf32>
    %314 = tpu.concatenate %312, %313 in 0 : vector<1x1xf32>, vector<1x1xf32> -> vector<2x1xf32>
    %315 = vector.broadcast %300 : vector<2x1xf32> to vector<2x512xf32>
    %316 = vector.broadcast %130 : vector<1x512xf32> to vector<2x512xf32>
    %317 = arith.mulf %315, %316 : vector<2x512xf32>
    %318 = arith.addf %311, %317 : vector<2x512xf32>
    %cst_109 = arith.constant dense<0.000000e+00> : vector<2x512xf32>
    %319 = tpu.matmul %258, %131, %cst_109 {dimension_numbers = #tpu.dot_dimension_numbers<[1], [0], [0], [1], [0, 0, 1, 1], [], []>} : vector<2x128xf32>, vector<128x512xf32>, vector<2x512xf32> -> vector<2x512xf32>
    %320 = arith.addf %318, %319 : vector<2x512xf32>
    %321 = vector.extract_strided_slice %320 {offsets = [0, 0], sizes = [2, 384], strides = [1, 1]} : vector<2x512xf32> to vector<2x384xf32>
    %322 = arith.negf %321 : vector<2x384xf32>
    %323 = math.exp %322 : vector<2x384xf32>
    %cst_110 = arith.constant 1.000000e+00 : f32
    %324 = vector.broadcast %cst_110 : f32 to vector<2x384xf32>
    %325 = arith.addf %324, %323 : vector<2x384xf32>
    %326 = arith.divf %324, %325 : vector<2x384xf32>
    %327 = vector.extract_strided_slice %326 {offsets = [0, 0], sizes = [2, 128], strides = [1, 1]} : vector<2x384xf32> to vector<2x128xf32>
    %328 = vector.extract_strided_slice %326 {offsets = [0, 128], sizes = [2, 128], strides = [1, 1]} : vector<2x384xf32> to vector<2x128xf32>
    %329 = vector.extract_strided_slice %326 {offsets = [0, 256], sizes = [2, 128], strides = [1, 1]} : vector<2x384xf32> to vector<2x128xf32>
    %330 = vector.extract_strided_slice %320 {offsets = [0, 384], sizes = [2, 128], strides = [1, 1]} : vector<2x512xf32> to vector<2x128xf32>
    %331 = math.tanh %330 : vector<2x128xf32>
    %332 = arith.mulf %328, %263 : vector<2x128xf32>
    %333 = arith.mulf %327, %331 : vector<2x128xf32>
    %334 = arith.addf %332, %333 : vector<2x128xf32>
    %335 = math.tanh %334 : vector<2x128xf32>
    %336 = arith.mulf %329, %335 : vector<2x128xf32>
    %cst_111 = arith.constant 1.000000e-01 : f32
    %337 = vector.broadcast %cst_111 : f32 to vector<2x128xf32>
    %338 = arith.mulf %337, %258 : vector<2x128xf32>
    %cst_112 = arith.constant 0.899999976 : f32
    %339 = vector.broadcast %cst_112 : f32 to vector<2x128xf32>
    %340 = arith.mulf %339, %336 : vector<2x128xf32>
    %341 = arith.addf %338, %340 : vector<2x128xf32>
    %cst_113 = arith.constant 1.000000e-01 : f32
    %342 = vector.broadcast %cst_113 : f32 to vector<2x128xf32>
    %343 = arith.mulf %342, %263 : vector<2x128xf32>
    %cst_114 = arith.constant 0.899999976 : f32
    %344 = vector.broadcast %cst_114 : f32 to vector<2x128xf32>
    %345 = arith.mulf %344, %334 : vector<2x128xf32>
    %346 = arith.addf %343, %345 : vector<2x128xf32>
    %347 = tpu.concatenate %341, %288 in 1 : vector<2x128xf32>, vector<2x128xf32> -> vector<2x256xf32>
    %cst_115 = arith.constant dense<0.000000e+00> : vector<2x512xf32>
    %348 = tpu.matmul %347, %132, %cst_115 {dimension_numbers = #tpu.dot_dimension_numbers<[1], [0], [0], [1], [0, 0, 1, 1], [], []>} : vector<2x256xf32>, vector<256x512xf32>, vector<2x512xf32> -> vector<2x512xf32>
    %349 = vector.broadcast %133 : vector<1x512xf32> to vector<2x512xf32>
    %350 = arith.addf %348, %349 : vector<2x512xf32>
    %351 = vector.extract_strided_slice %350 {offsets = [0, 0], sizes = [2, 384], strides = [1, 1]} : vector<2x512xf32> to vector<2x384xf32>
    %352 = arith.negf %351 : vector<2x384xf32>
    %353 = math.exp %352 : vector<2x384xf32>
    %cst_116 = arith.constant 1.000000e+00 : f32
    %354 = vector.broadcast %cst_116 : f32 to vector<2x384xf32>
    %355 = arith.addf %354, %353 : vector<2x384xf32>
    %356 = arith.divf %354, %355 : vector<2x384xf32>
    %357 = vector.extract_strided_slice %356 {offsets = [0, 0], sizes = [2, 128], strides = [1, 1]} : vector<2x384xf32> to vector<2x128xf32>
    %358 = vector.extract_strided_slice %356 {offsets = [0, 128], sizes = [2, 128], strides = [1, 1]} : vector<2x384xf32> to vector<2x128xf32>
    %359 = vector.extract_strided_slice %356 {offsets = [0, 256], sizes = [2, 128], strides = [1, 1]} : vector<2x384xf32> to vector<2x128xf32>
    %360 = vector.extract_strided_slice %350 {offsets = [0, 384], sizes = [2, 128], strides = [1, 1]} : vector<2x512xf32> to vector<2x128xf32>
    %361 = math.tanh %360 : vector<2x128xf32>
    %362 = arith.mulf %358, %293 : vector<2x128xf32>
    %363 = arith.mulf %357, %361 : vector<2x128xf32>
    %364 = arith.addf %362, %363 : vector<2x128xf32>
    %365 = math.tanh %364 : vector<2x128xf32>
    %366 = arith.mulf %359, %365 : vector<2x128xf32>
    %cst_117 = arith.constant 1.000000e-01 : f32
    %367 = vector.broadcast %cst_117 : f32 to vector<2x128xf32>
    %368 = arith.mulf %367, %288 : vector<2x128xf32>
    %cst_118 = arith.constant 0.899999976 : f32
    %369 = vector.broadcast %cst_118 : f32 to vector<2x128xf32>
    %370 = arith.mulf %369, %366 : vector<2x128xf32>
    %371 = arith.addf %368, %370 : vector<2x128xf32>
    %cst_119 = arith.constant 1.000000e-01 : f32
    %372 = vector.broadcast %cst_119 : f32 to vector<2x128xf32>
    %373 = arith.mulf %372, %293 : vector<2x128xf32>
    %cst_120 = arith.constant 0.899999976 : f32
    %374 = vector.broadcast %cst_120 : f32 to vector<2x128xf32>
    %375 = arith.mulf %374, %364 : vector<2x128xf32>
    %376 = arith.addf %373, %375 : vector<2x128xf32>
    %377 = vector.broadcast %134 : vector<1x128xf32> to vector<2x128xf32>
    %378 = arith.mulf %371, %377 : vector<2x128xf32>
    %cst_121 = arith.constant dense<0.000000e+00> : vector<2xf32>
    %379 = vector.multi_reduction <add>, %378, %cst_121 [1] : vector<2x128xf32> to vector<2xf32>
    %380 = vector.shape_cast %379 : vector<2xf32> to vector<2x1xf32>
    %381 = arith.addf %380, %314 : vector<2x1xf32>
    %382 = vector.broadcast %135 : vector<1x1xf32> to vector<2x1xf32>
    %383 = arith.addf %381, %382 : vector<2x1xf32>
    %c2_i32 = arith.constant 2 : i32
    %384 = vector.broadcast %c2_i32 : i32 to vector<1x8xi32>
    %385 = arith.cmpi eq, %141, %384 : vector<1x8xi32>
    %386 = arith.extui %385 : vector<1x8xi1> to vector<1x8xi32>
    %387 = arith.sitofp %386 : vector<1x8xi32> to vector<1x8xf32>
    %388 = vector.broadcast %383 : vector<2x1xf32> to vector<2x8xf32>
    %389 = vector.broadcast %387 : vector<1x8xf32> to vector<2x8xf32>
    %390 = arith.mulf %388, %389 : vector<2x8xf32>
    %391 = arith.addf %308, %390 : vector<2x8xf32>
    %392 = vector.extract_strided_slice %124 {offsets = [3, 0], sizes = [1, 512], strides = [1, 1]} : vector<16x512xf32> to vector<1x512xf32>
    %393 = vector.extract_strided_slice %124 {offsets = [11, 0], sizes = [1, 512], strides = [1, 1]} : vector<16x512xf32> to vector<1x512xf32>
    %394 = tpu.concatenate %392, %393 in 0 : vector<1x512xf32>, vector<1x512xf32> -> vector<2x512xf32>
    %395 = vector.extract_strided_slice %129 {offsets = [3, 0], sizes = [1, 1], strides = [1, 1]} : vector<16x1xf32> to vector<1x1xf32>
    %396 = vector.extract_strided_slice %129 {offsets = [11, 0], sizes = [1, 1], strides = [1, 1]} : vector<16x1xf32> to vector<1x1xf32>
    %397 = tpu.concatenate %395, %396 in 0 : vector<1x1xf32>, vector<1x1xf32> -> vector<2x1xf32>
    %398 = vector.broadcast %383 : vector<2x1xf32> to vector<2x512xf32>
    %399 = vector.broadcast %130 : vector<1x512xf32> to vector<2x512xf32>
    %400 = arith.mulf %398, %399 : vector<2x512xf32>
    %401 = arith.addf %394, %400 : vector<2x512xf32>
    %cst_122 = arith.constant dense<0.000000e+00> : vector<2x512xf32>
    %402 = tpu.matmul %341, %131, %cst_122 {dimension_numbers = #tpu.dot_dimension_numbers<[1], [0], [0], [1], [0, 0, 1, 1], [], []>} : vector<2x128xf32>, vector<128x512xf32>, vector<2x512xf32> -> vector<2x512xf32>
    %403 = arith.addf %401, %402 : vector<2x512xf32>
    %404 = vector.extract_strided_slice %403 {offsets = [0, 0], sizes = [2, 384], strides = [1, 1]} : vector<2x512xf32> to vector<2x384xf32>
    %405 = arith.negf %404 : vector<2x384xf32>
    %406 = math.exp %405 : vector<2x384xf32>
    %cst_123 = arith.constant 1.000000e+00 : f32
    %407 = vector.broadcast %cst_123 : f32 to vector<2x384xf32>
    %408 = arith.addf %407, %406 : vector<2x384xf32>
    %409 = arith.divf %407, %408 : vector<2x384xf32>
    %410 = vector.extract_strided_slice %409 {offsets = [0, 0], sizes = [2, 128], strides = [1, 1]} : vector<2x384xf32> to vector<2x128xf32>
    %411 = vector.extract_strided_slice %409 {offsets = [0, 128], sizes = [2, 128], strides = [1, 1]} : vector<2x384xf32> to vector<2x128xf32>
    %412 = vector.extract_strided_slice %409 {offsets = [0, 256], sizes = [2, 128], strides = [1, 1]} : vector<2x384xf32> to vector<2x128xf32>
    %413 = vector.extract_strided_slice %403 {offsets = [0, 384], sizes = [2, 128], strides = [1, 1]} : vector<2x512xf32> to vector<2x128xf32>
    %414 = math.tanh %413 : vector<2x128xf32>
    %415 = arith.mulf %411, %346 : vector<2x128xf32>
    %416 = arith.mulf %410, %414 : vector<2x128xf32>
    %417 = arith.addf %415, %416 : vector<2x128xf32>
    %418 = math.tanh %417 : vector<2x128xf32>
    %419 = arith.mulf %412, %418 : vector<2x128xf32>
    %cst_124 = arith.constant 1.000000e-01 : f32
    %420 = vector.broadcast %cst_124 : f32 to vector<2x128xf32>
    %421 = arith.mulf %420, %341 : vector<2x128xf32>
    %cst_125 = arith.constant 0.899999976 : f32
    %422 = vector.broadcast %cst_125 : f32 to vector<2x128xf32>
    %423 = arith.mulf %422, %419 : vector<2x128xf32>
    %424 = arith.addf %421, %423 : vector<2x128xf32>
    %cst_126 = arith.constant 1.000000e-01 : f32
    %425 = vector.broadcast %cst_126 : f32 to vector<2x128xf32>
    %426 = arith.mulf %425, %346 : vector<2x128xf32>
    %cst_127 = arith.constant 0.899999976 : f32
    %427 = vector.broadcast %cst_127 : f32 to vector<2x128xf32>
    %428 = arith.mulf %427, %417 : vector<2x128xf32>
    %429 = arith.addf %426, %428 : vector<2x128xf32>
    %430 = tpu.concatenate %424, %371 in 1 : vector<2x128xf32>, vector<2x128xf32> -> vector<2x256xf32>
    %cst_128 = arith.constant dense<0.000000e+00> : vector<2x512xf32>
    %431 = tpu.matmul %430, %132, %cst_128 {dimension_numbers = #tpu.dot_dimension_numbers<[1], [0], [0], [1], [0, 0, 1, 1], [], []>} : vector<2x256xf32>, vector<256x512xf32>, vector<2x512xf32> -> vector<2x512xf32>
    %432 = vector.broadcast %133 : vector<1x512xf32> to vector<2x512xf32>
    %433 = arith.addf %431, %432 : vector<2x512xf32>
    %434 = vector.extract_strided_slice %433 {offsets = [0, 0], sizes = [2, 384], strides = [1, 1]} : vector<2x512xf32> to vector<2x384xf32>
    %435 = arith.negf %434 : vector<2x384xf32>
    %436 = math.exp %435 : vector<2x384xf32>
    %cst_129 = arith.constant 1.000000e+00 : f32
    %437 = vector.broadcast %cst_129 : f32 to vector<2x384xf32>
    %438 = arith.addf %437, %436 : vector<2x384xf32>
    %439 = arith.divf %437, %438 : vector<2x384xf32>
    %440 = vector.extract_strided_slice %439 {offsets = [0, 0], sizes = [2, 128], strides = [1, 1]} : vector<2x384xf32> to vector<2x128xf32>
    %441 = vector.extract_strided_slice %439 {offsets = [0, 128], sizes = [2, 128], strides = [1, 1]} : vector<2x384xf32> to vector<2x128xf32>
    %442 = vector.extract_strided_slice %439 {offsets = [0, 256], sizes = [2, 128], strides = [1, 1]} : vector<2x384xf32> to vector<2x128xf32>
    %443 = vector.extract_strided_slice %433 {offsets = [0, 384], sizes = [2, 128], strides = [1, 1]} : vector<2x512xf32> to vector<2x128xf32>
    %444 = math.tanh %443 : vector<2x128xf32>
    %445 = arith.mulf %441, %376 : vector<2x128xf32>
    %446 = arith.mulf %440, %444 : vector<2x128xf32>
    %447 = arith.addf %445, %446 : vector<2x128xf32>
    %448 = math.tanh %447 : vector<2x128xf32>
    %449 = arith.mulf %442, %448 : vector<2x128xf32>
    %cst_130 = arith.constant 1.000000e-01 : f32
    %450 = vector.broadcast %cst_130 : f32 to vector<2x128xf32>
    %451 = arith.mulf %450, %371 : vector<2x128xf32>
    %cst_131 = arith.constant 0.899999976 : f32
    %452 = vector.broadcast %cst_131 : f32 to vector<2x128xf32>
    %453 = arith.mulf %452, %449 : vector<2x128xf32>
    %454 = arith.addf %451, %453 : vector<2x128xf32>
    %cst_132 = arith.constant 1.000000e-01 : f32
    %455 = vector.broadcast %cst_132 : f32 to vector<2x128xf32>
    %456 = arith.mulf %455, %376 : vector<2x128xf32>
    %cst_133 = arith.constant 0.899999976 : f32
    %457 = vector.broadcast %cst_133 : f32 to vector<2x128xf32>
    %458 = arith.mulf %457, %447 : vector<2x128xf32>
    %459 = arith.addf %456, %458 : vector<2x128xf32>
    %460 = vector.broadcast %134 : vector<1x128xf32> to vector<2x128xf32>
    %461 = arith.mulf %454, %460 : vector<2x128xf32>
    %cst_134 = arith.constant dense<0.000000e+00> : vector<2xf32>
    %462 = vector.multi_reduction <add>, %461, %cst_134 [1] : vector<2x128xf32> to vector<2xf32>
    %463 = vector.shape_cast %462 : vector<2xf32> to vector<2x1xf32>
    %464 = arith.addf %463, %397 : vector<2x1xf32>
    %465 = vector.broadcast %135 : vector<1x1xf32> to vector<2x1xf32>
    %466 = arith.addf %464, %465 : vector<2x1xf32>
    %c3_i32 = arith.constant 3 : i32
    %467 = vector.broadcast %c3_i32 : i32 to vector<1x8xi32>
    %468 = arith.cmpi eq, %141, %467 : vector<1x8xi32>
    %469 = arith.extui %468 : vector<1x8xi1> to vector<1x8xi32>
    %470 = arith.sitofp %469 : vector<1x8xi32> to vector<1x8xf32>
    %471 = vector.broadcast %466 : vector<2x1xf32> to vector<2x8xf32>
    %472 = vector.broadcast %470 : vector<1x8xf32> to vector<2x8xf32>
    %473 = arith.mulf %471, %472 : vector<2x8xf32>
    %474 = arith.addf %391, %473 : vector<2x8xf32>
    %475 = vector.extract_strided_slice %124 {offsets = [4, 0], sizes = [1, 512], strides = [1, 1]} : vector<16x512xf32> to vector<1x512xf32>
    %476 = vector.extract_strided_slice %124 {offsets = [12, 0], sizes = [1, 512], strides = [1, 1]} : vector<16x512xf32> to vector<1x512xf32>
    %477 = tpu.concatenate %475, %476 in 0 : vector<1x512xf32>, vector<1x512xf32> -> vector<2x512xf32>
    %478 = vector.extract_strided_slice %129 {offsets = [4, 0], sizes = [1, 1], strides = [1, 1]} : vector<16x1xf32> to vector<1x1xf32>
    %479 = vector.extract_strided_slice %129 {offsets = [12, 0], sizes = [1, 1], strides = [1, 1]} : vector<16x1xf32> to vector<1x1xf32>
    %480 = tpu.concatenate %478, %479 in 0 : vector<1x1xf32>, vector<1x1xf32> -> vector<2x1xf32>
    %481 = vector.broadcast %466 : vector<2x1xf32> to vector<2x512xf32>
    %482 = vector.broadcast %130 : vector<1x512xf32> to vector<2x512xf32>
    %483 = arith.mulf %481, %482 : vector<2x512xf32>
    %484 = arith.addf %477, %483 : vector<2x512xf32>
    %cst_135 = arith.constant dense<0.000000e+00> : vector<2x512xf32>
    %485 = tpu.matmul %424, %131, %cst_135 {dimension_numbers = #tpu.dot_dimension_numbers<[1], [0], [0], [1], [0, 0, 1, 1], [], []>} : vector<2x128xf32>, vector<128x512xf32>, vector<2x512xf32> -> vector<2x512xf32>
    %486 = arith.addf %484, %485 : vector<2x512xf32>
    %487 = vector.extract_strided_slice %486 {offsets = [0, 0], sizes = [2, 384], strides = [1, 1]} : vector<2x512xf32> to vector<2x384xf32>
    %488 = arith.negf %487 : vector<2x384xf32>
    %489 = math.exp %488 : vector<2x384xf32>
    %cst_136 = arith.constant 1.000000e+00 : f32
    %490 = vector.broadcast %cst_136 : f32 to vector<2x384xf32>
    %491 = arith.addf %490, %489 : vector<2x384xf32>
    %492 = arith.divf %490, %491 : vector<2x384xf32>
    %493 = vector.extract_strided_slice %492 {offsets = [0, 0], sizes = [2, 128], strides = [1, 1]} : vector<2x384xf32> to vector<2x128xf32>
    %494 = vector.extract_strided_slice %492 {offsets = [0, 128], sizes = [2, 128], strides = [1, 1]} : vector<2x384xf32> to vector<2x128xf32>
    %495 = vector.extract_strided_slice %492 {offsets = [0, 256], sizes = [2, 128], strides = [1, 1]} : vector<2x384xf32> to vector<2x128xf32>
    %496 = vector.extract_strided_slice %486 {offsets = [0, 384], sizes = [2, 128], strides = [1, 1]} : vector<2x512xf32> to vector<2x128xf32>
    %497 = math.tanh %496 : vector<2x128xf32>
    %498 = arith.mulf %494, %429 : vector<2x128xf32>
    %499 = arith.mulf %493, %497 : vector<2x128xf32>
    %500 = arith.addf %498, %499 : vector<2x128xf32>
    %501 = math.tanh %500 : vector<2x128xf32>
    %502 = arith.mulf %495, %501 : vector<2x128xf32>
    %cst_137 = arith.constant 1.000000e-01 : f32
    %503 = vector.broadcast %cst_137 : f32 to vector<2x128xf32>
    %504 = arith.mulf %503, %424 : vector<2x128xf32>
    %cst_138 = arith.constant 0.899999976 : f32
    %505 = vector.broadcast %cst_138 : f32 to vector<2x128xf32>
    %506 = arith.mulf %505, %502 : vector<2x128xf32>
    %507 = arith.addf %504, %506 : vector<2x128xf32>
    %cst_139 = arith.constant 1.000000e-01 : f32
    %508 = vector.broadcast %cst_139 : f32 to vector<2x128xf32>
    %509 = arith.mulf %508, %429 : vector<2x128xf32>
    %cst_140 = arith.constant 0.899999976 : f32
    %510 = vector.broadcast %cst_140 : f32 to vector<2x128xf32>
    %511 = arith.mulf %510, %500 : vector<2x128xf32>
    %512 = arith.addf %509, %511 : vector<2x128xf32>
    %513 = tpu.concatenate %507, %454 in 1 : vector<2x128xf32>, vector<2x128xf32> -> vector<2x256xf32>
    %cst_141 = arith.constant dense<0.000000e+00> : vector<2x512xf32>
    %514 = tpu.matmul %513, %132, %cst_141 {dimension_numbers = #tpu.dot_dimension_numbers<[1], [0], [0], [1], [0, 0, 1, 1], [], []>} : vector<2x256xf32>, vector<256x512xf32>, vector<2x512xf32> -> vector<2x512xf32>
    %515 = vector.broadcast %133 : vector<1x512xf32> to vector<2x512xf32>
    %516 = arith.addf %514, %515 : vector<2x512xf32>
    %517 = vector.extract_strided_slice %516 {offsets = [0, 0], sizes = [2, 384], strides = [1, 1]} : vector<2x512xf32> to vector<2x384xf32>
    %518 = arith.negf %517 : vector<2x384xf32>
    %519 = math.exp %518 : vector<2x384xf32>
    %cst_142 = arith.constant 1.000000e+00 : f32
    %520 = vector.broadcast %cst_142 : f32 to vector<2x384xf32>
    %521 = arith.addf %520, %519 : vector<2x384xf32>
    %522 = arith.divf %520, %521 : vector<2x384xf32>
    %523 = vector.extract_strided_slice %522 {offsets = [0, 0], sizes = [2, 128], strides = [1, 1]} : vector<2x384xf32> to vector<2x128xf32>
    %524 = vector.extract_strided_slice %522 {offsets = [0, 128], sizes = [2, 128], strides = [1, 1]} : vector<2x384xf32> to vector<2x128xf32>
    %525 = vector.extract_strided_slice %522 {offsets = [0, 256], sizes = [2, 128], strides = [1, 1]} : vector<2x384xf32> to vector<2x128xf32>
    %526 = vector.extract_strided_slice %516 {offsets = [0, 384], sizes = [2, 128], strides = [1, 1]} : vector<2x512xf32> to vector<2x128xf32>
    %527 = math.tanh %526 : vector<2x128xf32>
    %528 = arith.mulf %524, %459 : vector<2x128xf32>
    %529 = arith.mulf %523, %527 : vector<2x128xf32>
    %530 = arith.addf %528, %529 : vector<2x128xf32>
    %531 = math.tanh %530 : vector<2x128xf32>
    %532 = arith.mulf %525, %531 : vector<2x128xf32>
    %cst_143 = arith.constant 1.000000e-01 : f32
    %533 = vector.broadcast %cst_143 : f32 to vector<2x128xf32>
    %534 = arith.mulf %533, %454 : vector<2x128xf32>
    %cst_144 = arith.constant 0.899999976 : f32
    %535 = vector.broadcast %cst_144 : f32 to vector<2x128xf32>
    %536 = arith.mulf %535, %532 : vector<2x128xf32>
    %537 = arith.addf %534, %536 : vector<2x128xf32>
    %cst_145 = arith.constant 1.000000e-01 : f32
    %538 = vector.broadcast %cst_145 : f32 to vector<2x128xf32>
    %539 = arith.mulf %538, %459 : vector<2x128xf32>
    %cst_146 = arith.constant 0.899999976 : f32
    %540 = vector.broadcast %cst_146 : f32 to vector<2x128xf32>
    %541 = arith.mulf %540, %530 : vector<2x128xf32>
    %542 = arith.addf %539, %541 : vector<2x128xf32>
    %543 = vector.broadcast %134 : vector<1x128xf32> to vector<2x128xf32>
    %544 = arith.mulf %537, %543 : vector<2x128xf32>
    %cst_147 = arith.constant dense<0.000000e+00> : vector<2xf32>
    %545 = vector.multi_reduction <add>, %544, %cst_147 [1] : vector<2x128xf32> to vector<2xf32>
    %546 = vector.shape_cast %545 : vector<2xf32> to vector<2x1xf32>
    %547 = arith.addf %546, %480 : vector<2x1xf32>
    %548 = vector.broadcast %135 : vector<1x1xf32> to vector<2x1xf32>
    %549 = arith.addf %547, %548 : vector<2x1xf32>
    %c4_i32 = arith.constant 4 : i32
    %550 = vector.broadcast %c4_i32 : i32 to vector<1x8xi32>
    %551 = arith.cmpi eq, %141, %550 : vector<1x8xi32>
    %552 = arith.extui %551 : vector<1x8xi1> to vector<1x8xi32>
    %553 = arith.sitofp %552 : vector<1x8xi32> to vector<1x8xf32>
    %554 = vector.broadcast %549 : vector<2x1xf32> to vector<2x8xf32>
    %555 = vector.broadcast %553 : vector<1x8xf32> to vector<2x8xf32>
    %556 = arith.mulf %554, %555 : vector<2x8xf32>
    %557 = arith.addf %474, %556 : vector<2x8xf32>
    %558 = vector.extract_strided_slice %124 {offsets = [5, 0], sizes = [1, 512], strides = [1, 1]} : vector<16x512xf32> to vector<1x512xf32>
    %559 = vector.extract_strided_slice %124 {offsets = [13, 0], sizes = [1, 512], strides = [1, 1]} : vector<16x512xf32> to vector<1x512xf32>
    %560 = tpu.concatenate %558, %559 in 0 : vector<1x512xf32>, vector<1x512xf32> -> vector<2x512xf32>
    %561 = vector.extract_strided_slice %129 {offsets = [5, 0], sizes = [1, 1], strides = [1, 1]} : vector<16x1xf32> to vector<1x1xf32>
    %562 = vector.extract_strided_slice %129 {offsets = [13, 0], sizes = [1, 1], strides = [1, 1]} : vector<16x1xf32> to vector<1x1xf32>
    %563 = tpu.concatenate %561, %562 in 0 : vector<1x1xf32>, vector<1x1xf32> -> vector<2x1xf32>
    %564 = vector.broadcast %549 : vector<2x1xf32> to vector<2x512xf32>
    %565 = vector.broadcast %130 : vector<1x512xf32> to vector<2x512xf32>
    %566 = arith.mulf %564, %565 : vector<2x512xf32>
    %567 = arith.addf %560, %566 : vector<2x512xf32>
    %cst_148 = arith.constant dense<0.000000e+00> : vector<2x512xf32>
    %568 = tpu.matmul %507, %131, %cst_148 {dimension_numbers = #tpu.dot_dimension_numbers<[1], [0], [0], [1], [0, 0, 1, 1], [], []>} : vector<2x128xf32>, vector<128x512xf32>, vector<2x512xf32> -> vector<2x512xf32>
    %569 = arith.addf %567, %568 : vector<2x512xf32>
    %570 = vector.extract_strided_slice %569 {offsets = [0, 0], sizes = [2, 384], strides = [1, 1]} : vector<2x512xf32> to vector<2x384xf32>
    %571 = arith.negf %570 : vector<2x384xf32>
    %572 = math.exp %571 : vector<2x384xf32>
    %cst_149 = arith.constant 1.000000e+00 : f32
    %573 = vector.broadcast %cst_149 : f32 to vector<2x384xf32>
    %574 = arith.addf %573, %572 : vector<2x384xf32>
    %575 = arith.divf %573, %574 : vector<2x384xf32>
    %576 = vector.extract_strided_slice %575 {offsets = [0, 0], sizes = [2, 128], strides = [1, 1]} : vector<2x384xf32> to vector<2x128xf32>
    %577 = vector.extract_strided_slice %575 {offsets = [0, 128], sizes = [2, 128], strides = [1, 1]} : vector<2x384xf32> to vector<2x128xf32>
    %578 = vector.extract_strided_slice %575 {offsets = [0, 256], sizes = [2, 128], strides = [1, 1]} : vector<2x384xf32> to vector<2x128xf32>
    %579 = vector.extract_strided_slice %569 {offsets = [0, 384], sizes = [2, 128], strides = [1, 1]} : vector<2x512xf32> to vector<2x128xf32>
    %580 = math.tanh %579 : vector<2x128xf32>
    %581 = arith.mulf %577, %512 : vector<2x128xf32>
    %582 = arith.mulf %576, %580 : vector<2x128xf32>
    %583 = arith.addf %581, %582 : vector<2x128xf32>
    %584 = math.tanh %583 : vector<2x128xf32>
    %585 = arith.mulf %578, %584 : vector<2x128xf32>
    %cst_150 = arith.constant 1.000000e-01 : f32
    %586 = vector.broadcast %cst_150 : f32 to vector<2x128xf32>
    %587 = arith.mulf %586, %507 : vector<2x128xf32>
    %cst_151 = arith.constant 0.899999976 : f32
    %588 = vector.broadcast %cst_151 : f32 to vector<2x128xf32>
    %589 = arith.mulf %588, %585 : vector<2x128xf32>
    %590 = arith.addf %587, %589 : vector<2x128xf32>
    %cst_152 = arith.constant 1.000000e-01 : f32
    %591 = vector.broadcast %cst_152 : f32 to vector<2x128xf32>
    %592 = arith.mulf %591, %512 : vector<2x128xf32>
    %cst_153 = arith.constant 0.899999976 : f32
    %593 = vector.broadcast %cst_153 : f32 to vector<2x128xf32>
    %594 = arith.mulf %593, %583 : vector<2x128xf32>
    %595 = arith.addf %592, %594 : vector<2x128xf32>
    %596 = tpu.concatenate %590, %537 in 1 : vector<2x128xf32>, vector<2x128xf32> -> vector<2x256xf32>
    %cst_154 = arith.constant dense<0.000000e+00> : vector<2x512xf32>
    %597 = tpu.matmul %596, %132, %cst_154 {dimension_numbers = #tpu.dot_dimension_numbers<[1], [0], [0], [1], [0, 0, 1, 1], [], []>} : vector<2x256xf32>, vector<256x512xf32>, vector<2x512xf32> -> vector<2x512xf32>
    %598 = vector.broadcast %133 : vector<1x512xf32> to vector<2x512xf32>
    %599 = arith.addf %597, %598 : vector<2x512xf32>
    %600 = vector.extract_strided_slice %599 {offsets = [0, 0], sizes = [2, 384], strides = [1, 1]} : vector<2x512xf32> to vector<2x384xf32>
    %601 = arith.negf %600 : vector<2x384xf32>
    %602 = math.exp %601 : vector<2x384xf32>
    %cst_155 = arith.constant 1.000000e+00 : f32
    %603 = vector.broadcast %cst_155 : f32 to vector<2x384xf32>
    %604 = arith.addf %603, %602 : vector<2x384xf32>
    %605 = arith.divf %603, %604 : vector<2x384xf32>
    %606 = vector.extract_strided_slice %605 {offsets = [0, 0], sizes = [2, 128], strides = [1, 1]} : vector<2x384xf32> to vector<2x128xf32>
    %607 = vector.extract_strided_slice %605 {offsets = [0, 128], sizes = [2, 128], strides = [1, 1]} : vector<2x384xf32> to vector<2x128xf32>
    %608 = vector.extract_strided_slice %605 {offsets = [0, 256], sizes = [2, 128], strides = [1, 1]} : vector<2x384xf32> to vector<2x128xf32>
    %609 = vector.extract_strided_slice %599 {offsets = [0, 384], sizes = [2, 128], strides = [1, 1]} : vector<2x512xf32> to vector<2x128xf32>
    %610 = math.tanh %609 : vector<2x128xf32>
    %611 = arith.mulf %607, %542 : vector<2x128xf32>
    %612 = arith.mulf %606, %610 : vector<2x128xf32>
    %613 = arith.addf %611, %612 : vector<2x128xf32>
    %614 = math.tanh %613 : vector<2x128xf32>
    %615 = arith.mulf %608, %614 : vector<2x128xf32>
    %cst_156 = arith.constant 1.000000e-01 : f32
    %616 = vector.broadcast %cst_156 : f32 to vector<2x128xf32>
    %617 = arith.mulf %616, %537 : vector<2x128xf32>
    %cst_157 = arith.constant 0.899999976 : f32
    %618 = vector.broadcast %cst_157 : f32 to vector<2x128xf32>
    %619 = arith.mulf %618, %615 : vector<2x128xf32>
    %620 = arith.addf %617, %619 : vector<2x128xf32>
    %cst_158 = arith.constant 1.000000e-01 : f32
    %621 = vector.broadcast %cst_158 : f32 to vector<2x128xf32>
    %622 = arith.mulf %621, %542 : vector<2x128xf32>
    %cst_159 = arith.constant 0.899999976 : f32
    %623 = vector.broadcast %cst_159 : f32 to vector<2x128xf32>
    %624 = arith.mulf %623, %613 : vector<2x128xf32>
    %625 = arith.addf %622, %624 : vector<2x128xf32>
    %626 = vector.broadcast %134 : vector<1x128xf32> to vector<2x128xf32>
    %627 = arith.mulf %620, %626 : vector<2x128xf32>
    %cst_160 = arith.constant dense<0.000000e+00> : vector<2xf32>
    %628 = vector.multi_reduction <add>, %627, %cst_160 [1] : vector<2x128xf32> to vector<2xf32>
    %629 = vector.shape_cast %628 : vector<2xf32> to vector<2x1xf32>
    %630 = arith.addf %629, %563 : vector<2x1xf32>
    %631 = vector.broadcast %135 : vector<1x1xf32> to vector<2x1xf32>
    %632 = arith.addf %630, %631 : vector<2x1xf32>
    %c5_i32 = arith.constant 5 : i32
    %633 = vector.broadcast %c5_i32 : i32 to vector<1x8xi32>
    %634 = arith.cmpi eq, %141, %633 : vector<1x8xi32>
    %635 = arith.extui %634 : vector<1x8xi1> to vector<1x8xi32>
    %636 = arith.sitofp %635 : vector<1x8xi32> to vector<1x8xf32>
    %637 = vector.broadcast %632 : vector<2x1xf32> to vector<2x8xf32>
    %638 = vector.broadcast %636 : vector<1x8xf32> to vector<2x8xf32>
    %639 = arith.mulf %637, %638 : vector<2x8xf32>
    %640 = arith.addf %557, %639 : vector<2x8xf32>
    %641 = vector.extract_strided_slice %124 {offsets = [6, 0], sizes = [1, 512], strides = [1, 1]} : vector<16x512xf32> to vector<1x512xf32>
    %642 = vector.extract_strided_slice %124 {offsets = [14, 0], sizes = [1, 512], strides = [1, 1]} : vector<16x512xf32> to vector<1x512xf32>
    %643 = tpu.concatenate %641, %642 in 0 : vector<1x512xf32>, vector<1x512xf32> -> vector<2x512xf32>
    %644 = vector.extract_strided_slice %129 {offsets = [6, 0], sizes = [1, 1], strides = [1, 1]} : vector<16x1xf32> to vector<1x1xf32>
    %645 = vector.extract_strided_slice %129 {offsets = [14, 0], sizes = [1, 1], strides = [1, 1]} : vector<16x1xf32> to vector<1x1xf32>
    %646 = tpu.concatenate %644, %645 in 0 : vector<1x1xf32>, vector<1x1xf32> -> vector<2x1xf32>
    %647 = vector.broadcast %632 : vector<2x1xf32> to vector<2x512xf32>
    %648 = vector.broadcast %130 : vector<1x512xf32> to vector<2x512xf32>
    %649 = arith.mulf %647, %648 : vector<2x512xf32>
    %650 = arith.addf %643, %649 : vector<2x512xf32>
    %cst_161 = arith.constant dense<0.000000e+00> : vector<2x512xf32>
    %651 = tpu.matmul %590, %131, %cst_161 {dimension_numbers = #tpu.dot_dimension_numbers<[1], [0], [0], [1], [0, 0, 1, 1], [], []>} : vector<2x128xf32>, vector<128x512xf32>, vector<2x512xf32> -> vector<2x512xf32>
    %652 = arith.addf %650, %651 : vector<2x512xf32>
    %653 = vector.extract_strided_slice %652 {offsets = [0, 0], sizes = [2, 384], strides = [1, 1]} : vector<2x512xf32> to vector<2x384xf32>
    %654 = arith.negf %653 : vector<2x384xf32>
    %655 = math.exp %654 : vector<2x384xf32>
    %cst_162 = arith.constant 1.000000e+00 : f32
    %656 = vector.broadcast %cst_162 : f32 to vector<2x384xf32>
    %657 = arith.addf %656, %655 : vector<2x384xf32>
    %658 = arith.divf %656, %657 : vector<2x384xf32>
    %659 = vector.extract_strided_slice %658 {offsets = [0, 0], sizes = [2, 128], strides = [1, 1]} : vector<2x384xf32> to vector<2x128xf32>
    %660 = vector.extract_strided_slice %658 {offsets = [0, 128], sizes = [2, 128], strides = [1, 1]} : vector<2x384xf32> to vector<2x128xf32>
    %661 = vector.extract_strided_slice %658 {offsets = [0, 256], sizes = [2, 128], strides = [1, 1]} : vector<2x384xf32> to vector<2x128xf32>
    %662 = vector.extract_strided_slice %652 {offsets = [0, 384], sizes = [2, 128], strides = [1, 1]} : vector<2x512xf32> to vector<2x128xf32>
    %663 = math.tanh %662 : vector<2x128xf32>
    %664 = arith.mulf %660, %595 : vector<2x128xf32>
    %665 = arith.mulf %659, %663 : vector<2x128xf32>
    %666 = arith.addf %664, %665 : vector<2x128xf32>
    %667 = math.tanh %666 : vector<2x128xf32>
    %668 = arith.mulf %661, %667 : vector<2x128xf32>
    %cst_163 = arith.constant 1.000000e-01 : f32
    %669 = vector.broadcast %cst_163 : f32 to vector<2x128xf32>
    %670 = arith.mulf %669, %590 : vector<2x128xf32>
    %cst_164 = arith.constant 0.899999976 : f32
    %671 = vector.broadcast %cst_164 : f32 to vector<2x128xf32>
    %672 = arith.mulf %671, %668 : vector<2x128xf32>
    %673 = arith.addf %670, %672 : vector<2x128xf32>
    %cst_165 = arith.constant 1.000000e-01 : f32
    %674 = vector.broadcast %cst_165 : f32 to vector<2x128xf32>
    %675 = arith.mulf %674, %595 : vector<2x128xf32>
    %cst_166 = arith.constant 0.899999976 : f32
    %676 = vector.broadcast %cst_166 : f32 to vector<2x128xf32>
    %677 = arith.mulf %676, %666 : vector<2x128xf32>
    %678 = arith.addf %675, %677 : vector<2x128xf32>
    %679 = tpu.concatenate %673, %620 in 1 : vector<2x128xf32>, vector<2x128xf32> -> vector<2x256xf32>
    %cst_167 = arith.constant dense<0.000000e+00> : vector<2x512xf32>
    %680 = tpu.matmul %679, %132, %cst_167 {dimension_numbers = #tpu.dot_dimension_numbers<[1], [0], [0], [1], [0, 0, 1, 1], [], []>} : vector<2x256xf32>, vector<256x512xf32>, vector<2x512xf32> -> vector<2x512xf32>
    %681 = vector.broadcast %133 : vector<1x512xf32> to vector<2x512xf32>
    %682 = arith.addf %680, %681 : vector<2x512xf32>
    %683 = vector.extract_strided_slice %682 {offsets = [0, 0], sizes = [2, 384], strides = [1, 1]} : vector<2x512xf32> to vector<2x384xf32>
    %684 = arith.negf %683 : vector<2x384xf32>
    %685 = math.exp %684 : vector<2x384xf32>
    %cst_168 = arith.constant 1.000000e+00 : f32
    %686 = vector.broadcast %cst_168 : f32 to vector<2x384xf32>
    %687 = arith.addf %686, %685 : vector<2x384xf32>
    %688 = arith.divf %686, %687 : vector<2x384xf32>
    %689 = vector.extract_strided_slice %688 {offsets = [0, 0], sizes = [2, 128], strides = [1, 1]} : vector<2x384xf32> to vector<2x128xf32>
    %690 = vector.extract_strided_slice %688 {offsets = [0, 128], sizes = [2, 128], strides = [1, 1]} : vector<2x384xf32> to vector<2x128xf32>
    %691 = vector.extract_strided_slice %688 {offsets = [0, 256], sizes = [2, 128], strides = [1, 1]} : vector<2x384xf32> to vector<2x128xf32>
    %692 = vector.extract_strided_slice %682 {offsets = [0, 384], sizes = [2, 128], strides = [1, 1]} : vector<2x512xf32> to vector<2x128xf32>
    %693 = math.tanh %692 : vector<2x128xf32>
    %694 = arith.mulf %690, %625 : vector<2x128xf32>
    %695 = arith.mulf %689, %693 : vector<2x128xf32>
    %696 = arith.addf %694, %695 : vector<2x128xf32>
    %697 = math.tanh %696 : vector<2x128xf32>
    %698 = arith.mulf %691, %697 : vector<2x128xf32>
    %cst_169 = arith.constant 1.000000e-01 : f32
    %699 = vector.broadcast %cst_169 : f32 to vector<2x128xf32>
    %700 = arith.mulf %699, %620 : vector<2x128xf32>
    %cst_170 = arith.constant 0.899999976 : f32
    %701 = vector.broadcast %cst_170 : f32 to vector<2x128xf32>
    %702 = arith.mulf %701, %698 : vector<2x128xf32>
    %703 = arith.addf %700, %702 : vector<2x128xf32>
    %cst_171 = arith.constant 1.000000e-01 : f32
    %704 = vector.broadcast %cst_171 : f32 to vector<2x128xf32>
    %705 = arith.mulf %704, %625 : vector<2x128xf32>
    %cst_172 = arith.constant 0.899999976 : f32
    %706 = vector.broadcast %cst_172 : f32 to vector<2x128xf32>
    %707 = arith.mulf %706, %696 : vector<2x128xf32>
    %708 = arith.addf %705, %707 : vector<2x128xf32>
    %709 = vector.broadcast %134 : vector<1x128xf32> to vector<2x128xf32>
    %710 = arith.mulf %703, %709 : vector<2x128xf32>
    %cst_173 = arith.constant dense<0.000000e+00> : vector<2xf32>
    %711 = vector.multi_reduction <add>, %710, %cst_173 [1] : vector<2x128xf32> to vector<2xf32>
    %712 = vector.shape_cast %711 : vector<2xf32> to vector<2x1xf32>
    %713 = arith.addf %712, %646 : vector<2x1xf32>
    %714 = vector.broadcast %135 : vector<1x1xf32> to vector<2x1xf32>
    %715 = arith.addf %713, %714 : vector<2x1xf32>
    %c6_i32 = arith.constant 6 : i32
    %716 = vector.broadcast %c6_i32 : i32 to vector<1x8xi32>
    %717 = arith.cmpi eq, %141, %716 : vector<1x8xi32>
    %718 = arith.extui %717 : vector<1x8xi1> to vector<1x8xi32>
    %719 = arith.sitofp %718 : vector<1x8xi32> to vector<1x8xf32>
    %720 = vector.broadcast %715 : vector<2x1xf32> to vector<2x8xf32>
    %721 = vector.broadcast %719 : vector<1x8xf32> to vector<2x8xf32>
    %722 = arith.mulf %720, %721 : vector<2x8xf32>
    %723 = arith.addf %640, %722 : vector<2x8xf32>
    %724 = vector.extract_strided_slice %124 {offsets = [7, 0], sizes = [1, 512], strides = [1, 1]} : vector<16x512xf32> to vector<1x512xf32>
    %725 = vector.extract_strided_slice %124 {offsets = [15, 0], sizes = [1, 512], strides = [1, 1]} : vector<16x512xf32> to vector<1x512xf32>
    %726 = tpu.concatenate %724, %725 in 0 : vector<1x512xf32>, vector<1x512xf32> -> vector<2x512xf32>
    %727 = vector.extract_strided_slice %129 {offsets = [7, 0], sizes = [1, 1], strides = [1, 1]} : vector<16x1xf32> to vector<1x1xf32>
    %728 = vector.extract_strided_slice %129 {offsets = [15, 0], sizes = [1, 1], strides = [1, 1]} : vector<16x1xf32> to vector<1x1xf32>
    %729 = tpu.concatenate %727, %728 in 0 : vector<1x1xf32>, vector<1x1xf32> -> vector<2x1xf32>
    %730 = vector.broadcast %715 : vector<2x1xf32> to vector<2x512xf32>
    %731 = vector.broadcast %130 : vector<1x512xf32> to vector<2x512xf32>
    %732 = arith.mulf %730, %731 : vector<2x512xf32>
    %733 = arith.addf %726, %732 : vector<2x512xf32>
    %cst_174 = arith.constant dense<0.000000e+00> : vector<2x512xf32>
    %734 = tpu.matmul %673, %131, %cst_174 {dimension_numbers = #tpu.dot_dimension_numbers<[1], [0], [0], [1], [0, 0, 1, 1], [], []>} : vector<2x128xf32>, vector<128x512xf32>, vector<2x512xf32> -> vector<2x512xf32>
    %735 = arith.addf %733, %734 : vector<2x512xf32>
    %736 = vector.extract_strided_slice %735 {offsets = [0, 0], sizes = [2, 384], strides = [1, 1]} : vector<2x512xf32> to vector<2x384xf32>
    %737 = arith.negf %736 : vector<2x384xf32>
    %738 = math.exp %737 : vector<2x384xf32>
    %cst_175 = arith.constant 1.000000e+00 : f32
    %739 = vector.broadcast %cst_175 : f32 to vector<2x384xf32>
    %740 = arith.addf %739, %738 : vector<2x384xf32>
    %741 = arith.divf %739, %740 : vector<2x384xf32>
    %742 = vector.extract_strided_slice %741 {offsets = [0, 0], sizes = [2, 128], strides = [1, 1]} : vector<2x384xf32> to vector<2x128xf32>
    %743 = vector.extract_strided_slice %741 {offsets = [0, 128], sizes = [2, 128], strides = [1, 1]} : vector<2x384xf32> to vector<2x128xf32>
    %744 = vector.extract_strided_slice %741 {offsets = [0, 256], sizes = [2, 128], strides = [1, 1]} : vector<2x384xf32> to vector<2x128xf32>
    %745 = vector.extract_strided_slice %735 {offsets = [0, 384], sizes = [2, 128], strides = [1, 1]} : vector<2x512xf32> to vector<2x128xf32>
    %746 = math.tanh %745 : vector<2x128xf32>
    %747 = arith.mulf %743, %678 : vector<2x128xf32>
    %748 = arith.mulf %742, %746 : vector<2x128xf32>
    %749 = arith.addf %747, %748 : vector<2x128xf32>
    %750 = math.tanh %749 : vector<2x128xf32>
    %751 = arith.mulf %744, %750 : vector<2x128xf32>
    %cst_176 = arith.constant 1.000000e-01 : f32
    %752 = vector.broadcast %cst_176 : f32 to vector<2x128xf32>
    %753 = arith.mulf %752, %673 : vector<2x128xf32>
    %cst_177 = arith.constant 0.899999976 : f32
    %754 = vector.broadcast %cst_177 : f32 to vector<2x128xf32>
    %755 = arith.mulf %754, %751 : vector<2x128xf32>
    %756 = arith.addf %753, %755 : vector<2x128xf32>
    %757 = tpu.concatenate %756, %703 in 1 : vector<2x128xf32>, vector<2x128xf32> -> vector<2x256xf32>
    %cst_178 = arith.constant dense<0.000000e+00> : vector<2x512xf32>
    %758 = tpu.matmul %757, %132, %cst_178 {dimension_numbers = #tpu.dot_dimension_numbers<[1], [0], [0], [1], [0, 0, 1, 1], [], []>} : vector<2x256xf32>, vector<256x512xf32>, vector<2x512xf32> -> vector<2x512xf32>
    %759 = vector.broadcast %133 : vector<1x512xf32> to vector<2x512xf32>
    %760 = arith.addf %758, %759 : vector<2x512xf32>
    %761 = vector.extract_strided_slice %760 {offsets = [0, 0], sizes = [2, 384], strides = [1, 1]} : vector<2x512xf32> to vector<2x384xf32>
    %762 = arith.negf %761 : vector<2x384xf32>
    %763 = math.exp %762 : vector<2x384xf32>
    %cst_179 = arith.constant 1.000000e+00 : f32
    %764 = vector.broadcast %cst_179 : f32 to vector<2x384xf32>
    %765 = arith.addf %764, %763 : vector<2x384xf32>
    %766 = arith.divf %764, %765 : vector<2x384xf32>
    %767 = vector.extract_strided_slice %766 {offsets = [0, 0], sizes = [2, 128], strides = [1, 1]} : vector<2x384xf32> to vector<2x128xf32>
    %768 = vector.extract_strided_slice %766 {offsets = [0, 128], sizes = [2, 128], strides = [1, 1]} : vector<2x384xf32> to vector<2x128xf32>
    %769 = vector.extract_strided_slice %766 {offsets = [0, 256], sizes = [2, 128], strides = [1, 1]} : vector<2x384xf32> to vector<2x128xf32>
    %770 = vector.extract_strided_slice %760 {offsets = [0, 384], sizes = [2, 128], strides = [1, 1]} : vector<2x512xf32> to vector<2x128xf32>
    %771 = math.tanh %770 : vector<2x128xf32>
    %772 = arith.mulf %768, %708 : vector<2x128xf32>
    %773 = arith.mulf %767, %771 : vector<2x128xf32>
    %774 = arith.addf %772, %773 : vector<2x128xf32>
    %775 = math.tanh %774 : vector<2x128xf32>
    %776 = arith.mulf %769, %775 : vector<2x128xf32>
    %cst_180 = arith.constant 1.000000e-01 : f32
    %777 = vector.broadcast %cst_180 : f32 to vector<2x128xf32>
    %778 = arith.mulf %777, %703 : vector<2x128xf32>
    %cst_181 = arith.constant 0.899999976 : f32
    %779 = vector.broadcast %cst_181 : f32 to vector<2x128xf32>
    %780 = arith.mulf %779, %776 : vector<2x128xf32>
    %781 = arith.addf %778, %780 : vector<2x128xf32>
    %782 = vector.broadcast %134 : vector<1x128xf32> to vector<2x128xf32>
    %783 = arith.mulf %781, %782 : vector<2x128xf32>
    %cst_182 = arith.constant dense<0.000000e+00> : vector<2xf32>
    %784 = vector.multi_reduction <add>, %783, %cst_182 [1] : vector<2x128xf32> to vector<2xf32>
    %785 = vector.shape_cast %784 : vector<2xf32> to vector<2x1xf32>
    %786 = arith.addf %785, %729 : vector<2x1xf32>
    %787 = vector.broadcast %135 : vector<1x1xf32> to vector<2x1xf32>
    %788 = arith.addf %786, %787 : vector<2x1xf32>
    %c7_i32 = arith.constant 7 : i32
    %789 = vector.broadcast %c7_i32 : i32 to vector<1x8xi32>
    %790 = arith.cmpi eq, %141, %789 : vector<1x8xi32>
    %791 = arith.extui %790 : vector<1x8xi1> to vector<1x8xi32>
    %792 = arith.sitofp %791 : vector<1x8xi32> to vector<1x8xf32>
    %793 = vector.broadcast %788 : vector<2x1xf32> to vector<2x8xf32>
    %794 = vector.broadcast %792 : vector<1x8xf32> to vector<2x8xf32>
    %795 = arith.mulf %793, %794 : vector<2x8xf32>
    %796 = arith.addf %723, %795 : vector<2x8xf32>
    %c0_183 = arith.constant 0 : index
    %c0_184 = arith.constant 0 : index
    %797 = vector.load %arg1[%c0_183, %c0_184] : memref<2x8xi32, #tpu.memory_space<vmem>>, vector<2x8xi32>
    %c0_i32_185 = arith.constant 0 : i32
    %798 = vector.broadcast %c0_i32_185 : i32 to vector<2x8xi32>
    %799 = arith.cmpi ne, %797, %798 : vector<2x8xi32>
    %cst_186 = arith.constant 0.000000e+00 : f32
    %800 = vector.broadcast %cst_186 : f32 to vector<2x8xf32>
    %801 = arith.select %799, %800, %796 : vector<2x8xi1>, vector<2x8xf32>
    %c0_187 = arith.constant 0 : index
    %c0_188 = arith.constant 0 : index
    %802 = vector.load %arg15[%c0_187, %c0_188] : memref<2x8xf32, #tpu.memory_space<vmem>>, vector<2x8xf32>
    tpu.vector_store %arg15[%c0_187, %c0_188], %801 {strides = array<i32>} : memref<2x8xf32, #tpu.memory_space<vmem>>, vector<2x8xf32>,
    return
  }
}

</mosaic_0001>

<llo_original>
// kernel: tpu_custom_call.1
$region0: #{tpu_custom_call.1}
  #allocation0 [shape = 'u32[]', space=smem, size = 0x4, offset = 0x4, fixed_abs, tag = 'smem constant byte address 0x4 - core index']
  #allocation1 [shape = 'u32[144,128]{1,0:T(1,128)}', space=vmem, size = 0x12000, scoped, tag = 'internal scratch']
  #allocation2 [shape = 'f32[1,1]{1,0:T(1,128)S(1)}', space=vmem, size = 0x200, scoped, tag = 'scoped memory for tpu_custom_call.1']
  %s0 = inlined_call_operand.hbm [shape: f32[2,8,128], index: 0, kind: input, shape index: {}]
  %s1 = inlined_call_operand.hbm [shape: s32[2,8], index: 1, kind: input, shape index: {}]
  %s2 = inlined_call_operand.hbm [shape: f32[6,128,128], index: 2, kind: input, shape index: {}]
  %s3 = inlined_call_operand.hbm [shape: f32[2,1,128], index: 3, kind: input, shape index: {}]
  %s4 = inlined_call_operand.hbm [shape: f32[2,1,128], index: 4, kind: input, shape index: {}]
  %s5 = inlined_call_operand.hbm [shape: f32[2,1,128], index: 5, kind: input, shape index: {}]
  %s6 = inlined_call_operand.hbm [shape: f32[128,512], index: 6, kind: input, shape index: {}]
  %s7 = inlined_call_operand.vmem [shape: f32[1,512], index: 7, kind: input, shape index: {}]
  %s8 = inlined_call_operand.vmem [shape: f32[1,512], index: 8, kind: input, shape index: {}]
  %s9 = inlined_call_operand.hbm [shape: f32[128,512], index: 9, kind: input, shape index: {}]
  %s10 = inlined_call_operand.hbm [shape: f32[256,512], index: 10, kind: input, shape index: {}]
  %s11 = inlined_call_operand.vmem [shape: f32[1,512], index: 11, kind: input, shape index: {}]
  %s12 = inlined_call_operand.vmem [shape: f32[1,128], index: 12, kind: input, shape index: {}]
  %s13 = inlined_call_operand.vmem [shape: f32[1,128], index: 13, kind: input, shape index: {}]
  %s14 = inlined_call_operand.<no memory space> [shape: f32[1,1], index: 14, kind: input, shape index: {}]
  %s15 = inlined_call_operand.hbm [shape: f32[2,8], index: 15, kind: output, shape index: {}]
  %s16 = sld [smem:[#allocation0]]
  $region106: #{tpu_custom_call.1} parent=0
    _
  %s18 = ssub.s32 1, %s16
  %s19 = scalar_select 0, %s18, %s16
  %v20 = vstv %s14
  %21 = vst [vmem:[#allocation2] sm:$0x1] %v20
  $region1: #{tpu_custom_call.1} parent=0
    #allocation3 [shape = 'u8[8192]{0}', space=vmem, size = 0x2000, scoped, tag = 'input window, operand 0, single buffered']
    #allocation4 [shape = 's32[1]{0}', space=sflag, size = 0x4, scoped, tag = 'scoped memory for tpu_custom_call.1']
    #allocation5 [shape = 's32[1]{0}', space=sflag, size = 0x4, scoped, tag = 'scoped memory for tpu_custom_call.1']
    #allocation6 [shape = 'u8[1024]{0}', space=vmem, size = 0x400, scoped, tag = 'input window, operand 1, single buffered']
    #allocation7 [shape = 's32[1]{0}', space=sflag, size = 0x4, scoped, tag = 'scoped memory for tpu_custom_call.1']
    #allocation8 [shape = 'u8[393216]{0}', space=vmem, size = 0x60000, scoped, tag = 'input window, operand 2, single buffered']
    #allocation9 [shape = 'u8[1024]{0}', space=vmem, size = 0x400, scoped, tag = 'input window, operand 3, single buffered']
    #allocation10 [shape = 's32[1]{0}', space=sflag, size = 0x4, scoped, tag = 'scoped memory for tpu_custom_call.1']
    #allocation11 [shape = 'u8[1024]{0}', space=vmem, size = 0x400, scoped, tag = 'input window, operand 4, single buffered']
    #allocation12 [shape = 'u8[1024]{0}', space=vmem, size = 0x400, scoped, tag = 'input window, operand 5, single buffered']
    #allocation13 [shape = 's32[1]{0}', space=sflag, size = 0x4, scoped, tag = 'scoped memory for tpu_custom_call.1']
    #allocation14 [shape = 'u8[262144]{0}', space=vmem, size = 0x40000, scoped, tag = 'input window, operand 6, single buffered']
    #allocation15 [shape = 'u8[262144]{0}', space=vmem, size = 0x40000, scoped, tag = 'input window, operand 9, single buffered']
    #allocation16 [shape = 's32[1]{0}', space=sflag, size = 0x4, scoped, tag = 'scoped memory for tpu_custom_call.1']
    #allocation17 [shape = 'u8[524288]{0}', space=vmem, size = 0x80000, scoped, tag = 'input window, operand 10, single buffered']
    #allocation18 [shape = 'u8[1024]{0}', space=vmem, size = 0x400, scoped, tag = 'output window, operand 0, single buffered']
    %22 = vsyncpa [#allocation4], 0
    %23 = vsyncpa [#allocation7], 0
    %24 = vsyncpa [#allocation10], 0
    %25 = vsyncpa [#allocation13], 0
    %26 = vsyncpa [#allocation16], 0
    %27 = vsyncpa [#allocation5], 0
    // Predicated region
    $region2: #{tpu_custom_call.1} parent=1 // pred_check
      _
    $region3: #{tpu_custom_call.1} parent=1 // pred_check_branch
      %29 = sbr.rel (0) target = $region5
    $region4: #{tpu_custom_call.1} parent=1 // pred_region
      %s31 = ssub.s32 256, 256
      %32 = vsyncadd [#allocation4], %s31
      %s33 = sshll.u32 [#allocation3], 4
      %s34 = int_to_ptr.vmem [resolvable:$true] %s33
      %39 = dma.hbm_to_vmem [thread:$0]  %s0, 256, %s34, [#allocation4], 128, 128, 8
    $region5: #{tpu_custom_call.1} parent=1 // pred_fallthru
      _
    // Predicated region
    $region6: #{tpu_custom_call.1} parent=1 // pred_check
      _
    $region7: #{tpu_custom_call.1} parent=1 // pred_check_branch
      %41 = sbr.rel (0) target = $region9
    $region8: #{tpu_custom_call.1} parent=1 // pred_region
      %s43 = ssub.s32 32, 32
      %44 = vsyncadd [#allocation7], %s43
      %s46 = sshll.u32 [#allocation6], 4
      %s47 = int_to_ptr.vmem [resolvable:$true] %s46
      %49 = dma.hbm_to_vmem [thread:$0]  %s1, 32, %s47, [#allocation7]
    $region9: #{tpu_custom_call.1} parent=1 // pred_fallthru
      _
    // Predicated region
    $region10: #{tpu_custom_call.1} parent=1 // pred_check
      _
    $region11: #{tpu_custom_call.1} parent=1 // pred_check_branch
      %51 = sbr.rel (0) target = $region13
    $region12: #{tpu_custom_call.1} parent=1 // pred_region
      %s53 = ssub.s32 12288, 12288
      %54 = vsyncadd [#allocation7], %s53
      %s55 = sshll.u32 [#allocation8], 4
      %s56 = int_to_ptr.vmem [resolvable:$true] %s55
      %61 = dma.hbm_to_vmem [thread:$0]  %s2, 12288, %s56, [#allocation7], 128, 128, 8
    $region13: #{tpu_custom_call.1} parent=1 // pred_fallthru
      _
    // Predicated region
    $region14: #{tpu_custom_call.1} parent=1 // pred_check
      _
    $region15: #{tpu_custom_call.1} parent=1 // pred_check_branch
      %63 = sbr.rel (0) target = $region17
    $region16: #{tpu_custom_call.1} parent=1 // pred_region
      %s65 = ssub.s32 32, 32
      %66 = vsyncadd [#allocation10], %s65
      %s67 = sshll.u32 [#allocation9], 4
      %s68 = int_to_ptr.vmem [resolvable:$true] %s67
      %73 = dma.hbm_to_vmem [thread:$0]  %s3, 32, %s68, [#allocation10], 16, 16, 1
    $region17: #{tpu_custom_call.1} parent=1 // pred_fallthru
      _
    // Predicated region
    $region18: #{tpu_custom_call.1} parent=1 // pred_check
      _
    $region19: #{tpu_custom_call.1} parent=1 // pred_check_branch
      %75 = sbr.rel (0) target = $region21
    $region20: #{tpu_custom_call.1} parent=1 // pred_region
      %s77 = ssub.s32 32, 32
      %78 = vsyncadd [#allocation10], %s77
      %s79 = sshll.u32 [#allocation11], 4
      %s80 = int_to_ptr.vmem [resolvable:$true] %s79
      %85 = dma.hbm_to_vmem [thread:$0]  %s4, 32, %s80, [#allocation10], 16, 16, 1
    $region21: #{tpu_custom_call.1} parent=1 // pred_fallthru
      _
    // Predicated region
    $region22: #{tpu_custom_call.1} parent=1 // pred_check
      _
    $region23: #{tpu_custom_call.1} parent=1 // pred_check_branch
      %87 = sbr.rel (0) target = $region25
    $region24: #{tpu_custom_call.1} parent=1 // pred_region
      %s89 = ssub.s32 32, 32
      %90 = vsyncadd [#allocation13], %s89
      %s91 = sshll.u32 [#allocation12], 4
      %s92 = int_to_ptr.vmem [resolvable:$true] %s91
      %97 = dma.hbm_to_vmem [thread:$0]  %s5, 32, %s92, [#allocation13], 16, 16, 1
    $region25: #{tpu_custom_call.1} parent=1 // pred_fallthru
      _
    // Predicated region
    $region26: #{tpu_custom_call.1} parent=1 // pred_check
      _
    $region27: #{tpu_custom_call.1} parent=1 // pred_check_branch
      %99 = sbr.rel (0) target = $region29
    $region28: #{tpu_custom_call.1} parent=1 // pred_region
      %s101 = ssub.s32 8192, 8192
      %102 = vsyncadd [#allocation13], %s101
      %s103 = sshll.u32 [#allocation14], 4
      %s104 = int_to_ptr.vmem [resolvable:$true] %s103
      %109 = dma.hbm_to_vmem [thread:$0]  %s6, 8192, %s104, [#allocation13], 512, 512, 32
    $region29: #{tpu_custom_call.1} parent=1 // pred_fallthru
      _
    // Predicated region
    $region30: #{tpu_custom_call.1} parent=1 // pred_check
      _
    $region31: #{tpu_custom_call.1} parent=1 // pred_check_branch
      %111 = sbr.rel (0) target = $region33
    $region32: #{tpu_custom_call.1} parent=1 // pred_region
      _
    $region33: #{tpu_custom_call.1} parent=1 // pred_fallthru
      _
    // Predicated region
    $region34: #{tpu_custom_call.1} parent=1 // pred_check
      _
    $region35: #{tpu_custom_call.1} parent=1 // pred_check_branch
      %113 = sbr.rel (0) target = $region37
    $region36: #{tpu_custom_call.1} parent=1 // pred_region
      _
    $region37: #{tpu_custom_call.1} parent=1 // pred_fallthru
      _
    // Predicated region
    $region38: #{tpu_custom_call.1} parent=1 // pred_check
      _
    $region39: #{tpu_custom_call.1} parent=1 // pred_check_branch
      %115 = sbr.rel (0) target = $region41
    $region40: #{tpu_custom_call.1} parent=1 // pred_region
      %s117 = ssub.s32 8192, 8192
      %118 = vsyncadd [#allocation16], %s117
      %s119 = sshll.u32 [#allocation15], 4
      %s120 = int_to_ptr.vmem [resolvable:$true] %s119
      %125 = dma.hbm_to_vmem [thread:$0]  %s9, 8192, %s120, [#allocation16], 512, 512, 32
    $region41: #{tpu_custom_call.1} parent=1 // pred_fallthru
      _
    // Predicated region
    $region42: #{tpu_custom_call.1} parent=1 // pred_check
      _
    $region43: #{tpu_custom_call.1} parent=1 // pred_check_branch
      %127 = sbr.rel (0) target = $region45
    $region44: #{tpu_custom_call.1} parent=1 // pred_region
      %s129 = ssub.s32 16384, 16384
      %130 = vsyncadd [#allocation16], %s129
      %s131 = sshll.u32 [#allocation17], 4
      %s132 = int_to_ptr.vmem [resolvable:$true] %s131
      %137 = dma.hbm_to_vmem [thread:$0]  %s10, 16384, %s132, [#allocation16], 512, 512, 32
    $region45: #{tpu_custom_call.1} parent=1 // pred_fallthru
      _
    // Predicated region
    $region46: #{tpu_custom_call.1} parent=1 // pred_check
      _
    $region47: #{tpu_custom_call.1} parent=1 // pred_check_branch
      %139 = sbr.rel (0) target = $region49
    $region48: #{tpu_custom_call.1} parent=1 // pred_region
      _
    $region49: #{tpu_custom_call.1} parent=1 // pred_fallthru
      _
    // Predicated region
    $region50: #{tpu_custom_call.1} parent=1 // pred_check
      _
    $region51: #{tpu_custom_call.1} parent=1 // pred_check_branch
      %141 = sbr.rel (0) target = $region53
    $region52: #{tpu_custom_call.1} parent=1 // pred_region
      _
    $region53: #{tpu_custom_call.1} parent=1 // pred_fallthru
      _
    // Predicated region
    $region54: #{tpu_custom_call.1} parent=1 // pred_check
      _
    $region55: #{tpu_custom_call.1} parent=1 // pred_check_branch
      %143 = sbr.rel (0) target = $region57
    $region56: #{tpu_custom_call.1} parent=1 // pred_region
      _
    $region57: #{tpu_custom_call.1} parent=1 // pred_fallthru
      _
    // Predicated region
    $region58: #{tpu_custom_call.1} parent=1 // pred_check
      _
    $region59: #{tpu_custom_call.1} parent=1 // pred_check_branch
      %145 = sbr.rel (0) target = $region61
    $region60: #{tpu_custom_call.1} parent=1 // pred_region
      _
    $region61: #{tpu_custom_call.1} parent=1 // pred_fallthru
      _
    // Predicated region
    $region62: #{tpu_custom_call.1} parent=1 // pred_check
      _
    $region63: #{tpu_custom_call.1} parent=1 // pred_check_branch
      %147 = sbr.rel (0) target = $region65
    $region64: #{tpu_custom_call.1} parent=1 // pred_region
      %148 = dma.done [#allocation4], 256
    $region65: #{tpu_custom_call.1} parent=1 // pred_fallthru
      _
    // Predicated region
    $region66: #{tpu_custom_call.1} parent=1 // pred_check
      _
    $region67: #{tpu_custom_call.1} parent=1 // pred_check_branch
      %150 = sbr.rel (0) target = $region69
    $region68: #{tpu_custom_call.1} parent=1 // pred_region
      %151 = dma.done [#allocation7], 32
    $region69: #{tpu_custom_call.1} parent=1 // pred_fallthru
      _
    // Predicated region
    $region70: #{tpu_custom_call.1} parent=1 // pred_check
      _
    $region71: #{tpu_custom_call.1} parent=1 // pred_check_branch
      %153 = sbr.rel (0) target = $region73
    $region72: #{tpu_custom_call.1} parent=1 // pred_region
      %154 = dma.done [#allocation7], 12288
    $region73: #{tpu_custom_call.1} parent=1 // pred_fallthru
      _
    // Predicated region
    $region74: #{tpu_custom_call.1} parent=1 // pred_check
      _
    $region75: #{tpu_custom_call.1} parent=1 // pred_check_branch
      %156 = sbr.rel (0) target = $region77
    $region76: #{tpu_custom_call.1} parent=1 // pred_region
      %157 = dma.done [#allocation10], 32
    $region77: #{tpu_custom_call.1} parent=1 // pred_fallthru
      _
    // Predicated region
    $region78: #{tpu_custom_call.1} parent=1 // pred_check
      _
    $region79: #{tpu_custom_call.1} parent=1 // pred_check_branch
      %159 = sbr.rel (0) target = $region81
    $region80: #{tpu_custom_call.1} parent=1 // pred_region
      %160 = dma.done [#allocation10], 32
    $region81: #{tpu_custom_call.1} parent=1 // pred_fallthru
      _
    // Predicated region
    $region82: #{tpu_custom_call.1} parent=1 // pred_check
      _
    $region83: #{tpu_custom_call.1} parent=1 // pred_check_branch
      %162 = sbr.rel (0) target = $region85
    $region84: #{tpu_custom_call.1} parent=1 // pred_region
      %163 = dma.done [#allocation13], 32
    $region85: #{tpu_custom_call.1} parent=1 // pred_fallthru
      _
    // Predicated region
    $region86: #{tpu_custom_call.1} parent=1 // pred_check
      _
    $region87: #{tpu_custom_call.1} parent=1 // pred_check_branch
      %165 = sbr.rel (0) target = $region89
    $region88: #{tpu_custom_call.1} parent=1 // pred_region
      %166 = dma.done [#allocation13], 8192
    $region89: #{tpu_custom_call.1} parent=1 // pred_fallthru
      _
    // Predicated region
    $region90: #{tpu_custom_call.1} parent=1 // pred_check
      _
    $region91: #{tpu_custom_call.1} parent=1 // pred_check_branch
      %168 = sbr.rel (0) target = $region93
    $region92: #{tpu_custom_call.1} parent=1 // pred_region
      %169 = dma.done [#allocation16], 8192
    $region93: #{tpu_custom_call.1} parent=1 // pred_fallthru
      _
    // Predicated region
    $region94: #{tpu_custom_call.1} parent=1 // pred_check
      _
    $region95: #{tpu_custom_call.1} parent=1 // pred_check_branch
      %171 = sbr.rel (0) target = $region97
    $region96: #{tpu_custom_call.1} parent=1 // pred_region
      %172 = dma.done [#allocation16], 16384
    $region97: #{tpu_custom_call.1} parent=1 // pred_fallthru
      _
    %v173 = vld [vmem:[#allocation3] sm:$0xff]
    %s174 = scalar_lea.vmem [#allocation3], 8
    %v175 = vld [vmem:[%s174] sm:$0xff]
    %v177 = vrot.slane %v173, 7
    %vm179 = vcmask 1040384
    %v180 = vsel %vm179, 0.0, %v177
    %v181 = vsel %vm179, %v177, 0.0
    %v183 = vrot.slane %v175, 7
    %v185 = vsel %vm179, 0.0, %v183
    %v186 = vsel %vm179, %v183, 0.0
    %v187 = vld [vmem:[#allocation8] sm:$0xff]
    %v188 = vld [vmem:[#allocation8 + $0x8] sm:$0xff]
    %v189 = vld [vmem:[#allocation8 + $0x10] sm:$0xff]
    %v190 = vld [vmem:[#allocation8 + $0x18] sm:$0xff]
    %v191 = vld [vmem:[#allocation8 + $0x20] sm:$0xff]
    %v192 = vld [vmem:[#allocation8 + $0x28] sm:$0xff]
    %v193 = vld [vmem:[#allocation8 + $0x30] sm:$0xff]
    %v194 = vld [vmem:[#allocation8 + $0x38] sm:$0xff]
    %v195 = vld [vmem:[#allocation8 + $0x40] sm:$0xff]
    %v196 = vld [vmem:[#allocation8 + $0x48] sm:$0xff]
    %v197 = vld [vmem:[#allocation8 + $0x50] sm:$0xff]
    %v198 = vld [vmem:[#allocation8 + $0x58] sm:$0xff]
    %v199 = vld [vmem:[#allocation8 + $0x60] sm:$0xff]
    %v200 = vld [vmem:[#allocation8 + $0x68] sm:$0xff]
    %v201 = vld [vmem:[#allocation8 + $0x70] sm:$0xff]
    %v202 = vld [vmem:[#allocation8 + $0x78] sm:$0xff]
    %vm205 = vcmask 1046528
    %v206 = vrot.slane %v180, 1
    %v207 = vrot.slane %v181, 1
    %v208 = vsel %vm205, %v206, %v207
    %v212 = vrot.slane %v185, 1
    %v213 = vrot.slane %v186, 1
    %v214 = vsel %vm205, %v212, %v213
    %s216 = scalar_lea.vmem [#allocation8], 128
    %v217 = vld [vmem:[%s216] sm:$0xff]
    %v218 = vld [vmem:[%s216 + $0x8] sm:$0xff]
    %v219 = vld [vmem:[%s216 + $0x10] sm:$0xff]
    %v220 = vld [vmem:[%s216 + $0x18] sm:$0xff]
    %v221 = vld [vmem:[%s216 + $0x20] sm:$0xff]
    %v222 = vld [vmem:[%s216 + $0x28] sm:$0xff]
    %v223 = vld [vmem:[%s216 + $0x30] sm:$0xff]
    %v224 = vld [vmem:[%s216 + $0x38] sm:$0xff]
    %v225 = vld [vmem:[%s216 + $0x40] sm:$0xff]
    %v226 = vld [vmem:[%s216 + $0x48] sm:$0xff]
    %v227 = vld [vmem:[%s216 + $0x50] sm:$0xff]
    %v228 = vld [vmem:[%s216 + $0x58] sm:$0xff]
    %v229 = vld [vmem:[%s216 + $0x60] sm:$0xff]
    %v230 = vld [vmem:[%s216 + $0x68] sm:$0xff]
    %v231 = vld [vmem:[%s216 + $0x70] sm:$0xff]
    %v232 = vld [vmem:[%s216 + $0x78] sm:$0xff]
    %233 = vmatprep.subr.mxu0 0.0
    %234 = vmatpush1.msra.mxu0 %v232
    %235 = vmatprep.subr.mxu0 0.0
    %236 = vmatpush1.msra.mxu0 %v231
    %237 = vmatprep.subr.mxu0 0.0
    %238 = vmatpush1.msra.mxu0 %v230
    %239 = vmatprep.subr.mxu0 0.0
    %240 = vmatpush1.msra.mxu0 %v229
    %241 = vmatprep.subr.mxu0 0.0
    %242 = vmatpush1.msra.mxu0 %v228
    %243 = vmatprep.subr.mxu0 0.0
    %244 = vmatpush1.msra.mxu0 %v227
    %245 = vmatprep.subr.mxu0 0.0
    %246 = vmatpush1.msra.mxu0 %v226
    %247 = vmatprep.subr.mxu0 0.0
    %248 = vmatpush1.msra.mxu0 %v225
    %249 = vmatprep.subr.mxu0 0.0
    %250 = vmatpush1.msra.mxu0 %v224
    %251 = vmatprep.subr.mxu0 0.0
    %252 = vmatpush1.msra.mxu0 %v223
    %253 = vmatprep.subr.mxu0 0.0
    %254 = vmatpush1.msra.mxu0 %v222
    %255 = vmatprep.subr.mxu0 0.0
    %256 = vmatpush1.msra.mxu0 %v221
    %257 = vmatprep.subr.mxu0 0.0
    %258 = vmatpush1.msra.mxu0 %v220
    %259 = vmatprep.subr.mxu0 0.0
    %260 = vmatpush1.msra.mxu0 %v219
    %261 = vmatprep.subr.mxu0 0.0
    %262 = vmatpush1.msra.mxu0 %v218
    %263 = vmatprep.subr.mxu0 0.0
    %264 = vmatpush1.msra.mxu0 %v217
    %265 = vmatprep.subr.mxu0 0.0
    %266 = vmatpush2.msra.mxu0 0.0
    %267 = vmatprep.subr.mxu0 0.0
    %268 = vmatpush2.msra.mxu0 0.0
    %269 = vmatprep.subr.mxu0 0.0
    %270 = vmatpush2.msra.mxu0 0.0
    %271 = vmatprep.subr.mxu0 0.0
    %272 = vmatpush2.msra.mxu0 0.0
    %273 = vmatprep.subr.mxu0 0.0
    %274 = vmatpush2.msra.mxu0 0.0
    %275 = vmatprep.subr.mxu0 0.0
    %276 = vmatpush2.msra.mxu0 0.0
    %277 = vmatprep.subr.mxu0 0.0
    %278 = vmatpush2.msra.mxu0 0.0
    %279 = vmatprep.subr.mxu0 0.0
    %280 = vmatpush2.msra.mxu0 0.0
    %281 = vmatprep.subr.mxu0 0.0
    %282 = vmatpush2.msra.mxu0 0.0
    %283 = vmatprep.subr.mxu0 0.0
    %284 = vmatpush2.msra.mxu0 0.0
    %285 = vmatprep.subr.mxu0 0.0
    %286 = vmatpush2.msra.mxu0 0.0
    %287 = vmatprep.subr.mxu0 0.0
    %288 = vmatpush2.msra.mxu0 0.0
    %289 = vmatprep.subr.mxu0 0.0
    %290 = vmatpush2.msra.mxu0 0.0
    %291 = vmatprep.subr.mxu0 0.0
    %292 = vmatpush2.msra.mxu0 0.0
    %293 = vmatprep.subr.mxu0 0.0
    %294 = vmatpush2.msra.mxu0 0.0
    %295 = vmatprep.subr.mxu0 0.0
    %296 = vmatpush2.msra.mxu0 0.0
    %297 = vmatprep.mubr.f32.mxu0 0.0
    %298 = vmatmul.mubr.f32.gmra.mxu0 %v208
    %v299 = vpop.f32.mrf.mxu0
    %v300 = vadd.f32 0.0, %v299
    %v301 = vpop.f32.mrf.mxu0
    %302 = vmatprep.mubr.f32.mxu0 0.0
    %303 = vmatmul.mubr.f32.gmra.mxu0 %v214
    %v304 = vpop.f32.mrf.mxu0
    %v305 = vadd.f32 0.0, %v304
    %v306 = vpop.f32.mrf.mxu0
    %307 = vdwg.mxu0
    %308 = vmatprep.subr.mxu0 0.0
    %309 = vmatpush1.msra.mxu0 %v202
    %310 = vmatprep.subr.mxu0 0.0
    %311 = vmatpush1.msra.mxu0 %v201
    %312 = vmatprep.subr.mxu0 0.0
    %313 = vmatpush1.msra.mxu0 %v200
    %314 = vmatprep.subr.mxu0 0.0
    %315 = vmatpush1.msra.mxu0 %v199
    %316 = vmatprep.subr.mxu0 0.0
    %317 = vmatpush1.msra.mxu0 %v198
    %318 = vmatprep.subr.mxu0 0.0
    %319 = vmatpush1.msra.mxu0 %v197
    %320 = vmatprep.subr.mxu0 0.0
    %321 = vmatpush1.msra.mxu0 %v196
    %322 = vmatprep.subr.mxu0 0.0
    %323 = vmatpush1.msra.mxu0 %v195
    %324 = vmatprep.subr.mxu0 0.0
    %325 = vmatpush1.msra.mxu0 %v194
    %326 = vmatprep.subr.mxu0 0.0
    %327 = vmatpush1.msra.mxu0 %v193
    %328 = vmatprep.subr.mxu0 0.0
    %329 = vmatpush1.msra.mxu0 %v192
    %330 = vmatprep.subr.mxu0 0.0
    %331 = vmatpush1.msra.mxu0 %v191
    %332 = vmatprep.subr.mxu0 0.0
    %333 = vmatpush1.msra.mxu0 %v190
    %334 = vmatprep.subr.mxu0 0.0
    %335 = vmatpush1.msra.mxu0 %v189
    %336 = vmatprep.subr.mxu0 0.0
    %337 = vmatpush1.msra.mxu0 %v188
    %338 = vmatprep.subr.mxu0 0.0
    %339 = vmatpush1.msra.mxu0 %v187
    %340 = vmatprep.subr.mxu0 0.0
    %341 = vmatpush2.msra.mxu0 0.0
    %342 = vmatprep.subr.mxu0 0.0
    %343 = vmatpush2.msra.mxu0 0.0
    %344 = vmatprep.subr.mxu0 0.0
    %345 = vmatpush2.msra.mxu0 0.0
    %346 = vmatprep.subr.mxu0 0.0
    %347 = vmatpush2.msra.mxu0 0.0
    %348 = vmatprep.subr.mxu0 0.0
    %349 = vmatpush2.msra.mxu0 0.0
    %350 = vmatprep.subr.mxu0 0.0
    %351 = vmatpush2.msra.mxu0 0.0
    %352 = vmatprep.subr.mxu0 0.0
    %353 = vmatpush2.msra.mxu0 0.0
    %354 = vmatprep.subr.mxu0 0.0
    %355 = vmatpush2.msra.mxu0 0.0
    %356 = vmatprep.subr.mxu0 0.0
    %357 = vmatpush2.msra.mxu0 0.0
    %358 = vmatprep.subr.mxu0 0.0
    %359 = vmatpush2.msra.mxu0 0.0
    %360 = vmatprep.subr.mxu0 0.0
    %361 = vmatpush2.msra.mxu0 0.0
    %362 = vmatprep.subr.mxu0 0.0
    %363 = vmatpush2.msra.mxu0 0.0
    %364 = vmatprep.subr.mxu0 0.0
    %365 = vmatpush2.msra.mxu0 0.0
    %366 = vmatprep.subr.mxu0 0.0
    %367 = vmatpush2.msra.mxu0 0.0
    %368 = vmatprep.subr.mxu0 0.0
    %369 = vmatpush2.msra.mxu0 0.0
    %370 = vmatprep.subr.mxu0 0.0
    %371 = vmatpush2.msra.mxu0 0.0
    %372 = vmatprep.mubr.f32.mxu0 0.0
    %373 = vmatmul.mubr.f32.gmra.mxu0 %v180
    %v374 = vpop.f32.mrf.mxu0
    %v375 = vadd.f32 %v300, %v374
    %v376 = vpop.f32.mrf.mxu0
    %377 = vmatprep.mubr.f32.mxu0 0.0
    %378 = vmatmul.mubr.f32.gmra.mxu0 %v185
    %v379 = vpop.f32.mrf.mxu0
    %v380 = vadd.f32 %v305, %v379
    %v381 = vpop.f32.mrf.mxu0
    %382 = vdwg.mxu0
    %vm383 = vcmask 1045504
    %v384 = vrot.slane %v180, 2
    %v385 = vrot.slane %v181, 2
    %v386 = vsel %vm383, %v384, %v385
    %v388 = vrot.slane %v185, 2
    %v389 = vrot.slane %v186, 2
    %v390 = vsel %vm383, %v388, %v389
    %s392 = scalar_lea.vmem [#allocation8], 256
    %v393 = vld [vmem:[%s392] sm:$0xff]
    %v394 = vld [vmem:[%s392 + $0x8] sm:$0xff]
    %v395 = vld [vmem:[%s392 + $0x10] sm:$0xff]
    %v396 = vld [vmem:[%s392 + $0x18] sm:$0xff]
    %v397 = vld [vmem:[%s392 + $0x20] sm:$0xff]
    %v398 = vld [vmem:[%s392 + $0x28] sm:$0xff]
    %v399 = vld [vmem:[%s392 + $0x30] sm:$0xff]
    %v400 = vld [vmem:[%s392 + $0x38] sm:$0xff]
    %v401 = vld [vmem:[%s392 + $0x40] sm:$0xff]
    %v402 = vld [vmem:[%s392 + $0x48] sm:$0xff]
    %v403 = vld [vmem:[%s392 + $0x50] sm:$0xff]
    %v404 = vld [vmem:[%s392 + $0x58] sm:$0xff]
    %v405 = vld [vmem:[%s392 + $0x60] sm:$0xff]
    %v406 = vld [vmem:[%s392 + $0x68] sm:$0xff]
    %v407 = vld [vmem:[%s392 + $0x70] sm:$0xff]
    %v408 = vld [vmem:[%s392 + $0x78] sm:$0xff]
    %409 = vmatprep.subr.mxu0 0.0
    %410 = vmatpush1.msra.mxu0 %v408
    %411 = vmatprep.subr.mxu0 0.0
    %412 = vmatpush1.msra.mxu0 %v407
    %413 = vmatprep.subr.mxu0 0.0
    %414 = vmatpush1.msra.mxu0 %v406
    %415 = vmatprep.subr.mxu0 0.0
    %416 = vmatpush1.msra.mxu0 %v405
    %417 = vmatprep.subr.mxu0 0.0
    %418 = vmatpush1.msra.mxu0 %v404
    %419 = vmatprep.subr.mxu0 0.0
    %420 = vmatpush1.msra.mxu0 %v403
    %421 = vmatprep.subr.mxu0 0.0
    %422 = vmatpush1.msra.mxu0 %v402
    %423 = vmatprep.subr.mxu0 0.0
    %424 = vmatpush1.msra.mxu0 %v401
    %425 = vmatprep.subr.mxu0 0.0
    %426 = vmatpush1.msra.mxu0 %v400
    %427 = vmatprep.subr.mxu0 0.0
    %428 = vmatpush1.msra.mxu0 %v399
    %429 = vmatprep.subr.mxu0 0.0
    %430 = vmatpush1.msra.mxu0 %v398
    %431 = vmatprep.subr.mxu0 0.0
    %432 = vmatpush1.msra.mxu0 %v397
    %433 = vmatprep.subr.mxu0 0.0
    %434 = vmatpush1.msra.mxu0 %v396
    %435 = vmatprep.subr.mxu0 0.0
    %436 = vmatpush1.msra.mxu0 %v395
    %437 = vmatprep.subr.mxu0 0.0
    %438 = vmatpush1.msra.mxu0 %v394
    %439 = vmatprep.subr.mxu0 0.0
    %440 = vmatpush1.msra.mxu0 %v393
    %441 = vmatprep.subr.mxu0 0.0
    %442 = vmatpush2.msra.mxu0 0.0
    %443 = vmatprep.subr.mxu0 0.0
    %444 = vmatpush2.msra.mxu0 0.0
    %445 = vmatprep.subr.mxu0 0.0
    %446 = vmatpush2.msra.mxu0 0.0
    %447 = vmatprep.subr.mxu0 0.0
    %448 = vmatpush2.msra.mxu0 0.0
    %449 = vmatprep.subr.mxu0 0.0
    %450 = vmatpush2.msra.mxu0 0.0
    %451 = vmatprep.subr.mxu0 0.0
    %452 = vmatpush2.msra.mxu0 0.0
    %453 = vmatprep.subr.mxu0 0.0
    %454 = vmatpush2.msra.mxu0 0.0
    %455 = vmatprep.subr.mxu0 0.0
    %456 = vmatpush2.msra.mxu0 0.0
    %457 = vmatprep.subr.mxu0 0.0
    %458 = vmatpush2.msra.mxu0 0.0
    %459 = vmatprep.subr.mxu0 0.0
    %460 = vmatpush2.msra.mxu0 0.0
    %461 = vmatprep.subr.mxu0 0.0
    %462 = vmatpush2.msra.mxu0 0.0
    %463 = vmatprep.subr.mxu0 0.0
    %464 = vmatpush2.msra.mxu0 0.0
    %465 = vmatprep.subr.mxu0 0.0
    %466 = vmatpush2.msra.mxu0 0.0
    %467 = vmatprep.subr.mxu0 0.0
    %468 = vmatpush2.msra.mxu0 0.0
    %469 = vmatprep.subr.mxu0 0.0
    %470 = vmatpush2.msra.mxu0 0.0
    %471 = vmatprep.subr.mxu0 0.0
    %472 = vmatpush2.msra.mxu0 0.0
    %473 = vmatprep.mubr.f32.mxu0 0.0
    %474 = vmatmul.mubr.f32.gmra.mxu0 %v386
    %v475 = vpop.f32.mrf.mxu0
    %v476 = vadd.f32 0.0, %v475
    %v477 = vpop.f32.mrf.mxu0
    %478 = vmatprep.mubr.f32.mxu0 0.0
    %479 = vmatmul.mubr.f32.gmra.mxu0 %v390
    %v480 = vpop.f32.mrf.mxu0
    %v481 = vadd.f32 0.0, %v480
    %v482 = vpop.f32.mrf.mxu0
    %483 = vdwg.mxu0
    %v484 = vadd.f32 %v375, %v476
    %v485 = vadd.f32 %v380, %v481
    %v486 = vld [vmem:[#allocation9] sm:$0x1]
    %v488 = vlaneseq
    %v489 = vshrl.u32 %v488, 7
    %v490 = vsub.s32 0, %v489
    %v491 = vrot.slane %v486, %v490
    %v493 = vadd.f32 %v484, %v491
    %v494 = vadd.f32 %v485, %v491
    %v495 = vmax.f32 %v493, 0.0
    %v496 = vmax.f32 %v494, 0.0
    %497 = vadd.xlane.f32.xlu0 %v495
    %v498 = vpop.xlane.xlu0 %497
    %499 = vadd.xlane.f32.xlu0 %v496
    %v500 = vpop.xlane.xlu0 %499
    %v501 = vrcp.pop 128.0
    %v502 = vmul.f32 %v498, %v501
    %v503 = vmul.f32 %v500, %v501
    %v504 = vsub.f32 %v495, %v502
    %v505 = vsub.f32 %v496, %v503
    %v506 = vmul.f32 %v504, %v504
    %v507 = vmul.f32 %v505, %v505
    %508 = vadd.xlane.f32.xlu0 %v506
    %v509 = vpop.xlane.xlu0 %508
    %510 = vadd.xlane.f32.xlu0 %v507
    %v511 = vpop.xlane.xlu0 %510
    %v512 = vmul.f32 %v509, %v501
    %v513 = vmul.f32 %v511, %v501
    %v514 = vadd.f32 %v512, 1e-05
    %v515 = vadd.f32 %v513, 1e-05
    %v516 = vrsqrt.pop %v514
    %v517 = vrsqrt.pop %v515
    %v518 = vmul.f32 %v504, %v516
    %v519 = vmul.f32 %v505, %v517
    %v520 = vld [vmem:[#allocation11] sm:$0x1]
    %v522 = vlaneseq
    %v523 = vshrl.u32 %v522, 7
    %v524 = vsub.s32 0, %v523
    %v525 = vrot.slane %v520, %v524
    %v527 = vmul.f32 %v518, %v525
    %v528 = vmul.f32 %v519, %v525
    %v529 = vld [vmem:[#allocation12] sm:$0x1]
    %v531 = vlaneseq
    %v532 = vshrl.u32 %v531, 7
    %v533 = vsub.s32 0, %v532
    %v534 = vrot.slane %v529, %v533
    %v536 = vadd.f32 %v527, %v534
    %v537 = vadd.f32 %v528, %v534
    %v539 = vrot.slane %v536, 7
    %v541 = vsel %vm179, 0.0, %v539
    %v542 = vsel %vm179, %v539, 0.0
    %v544 = vrot.slane %v537, 7
    %v546 = vsel %vm179, 0.0, %v544
    %v547 = vsel %vm179, %v544, 0.0
    %s548 = scalar_lea.vmem [#allocation8], 384
    %v549 = vld [vmem:[%s548] sm:$0xff]
    %v550 = vld [vmem:[%s548 + $0x8] sm:$0xff]
    %v551 = vld [vmem:[%s548 + $0x10] sm:$0xff]
    %v552 = vld [vmem:[%s548 + $0x18] sm:$0xff]
    %v553 = vld [vmem:[%s548 + $0x20] sm:$0xff]
    %v554 = vld [vmem:[%s548 + $0x28] sm:$0xff]
    %v555 = vld [vmem:[%s548 + $0x30] sm:$0xff]
    %v556 = vld [vmem:[%s548 + $0x38] sm:$0xff]
    %v557 = vld [vmem:[%s548 + $0x40] sm:$0xff]
    %v558 = vld [vmem:[%s548 + $0x48] sm:$0xff]
    %v559 = vld [vmem:[%s548 + $0x50] sm:$0xff]
    %v560 = vld [vmem:[%s548 + $0x58] sm:$0xff]
    %v561 = vld [vmem:[%s548 + $0x60] sm:$0xff]
    %v562 = vld [vmem:[%s548 + $0x68] sm:$0xff]
    %v563 = vld [vmem:[%s548 + $0x70] sm:$0xff]
    %v564 = vld [vmem:[%s548 + $0x78] sm:$0xff]
    %v567 = vrot.slane %v541, 1
    %v568 = vrot.slane %v542, 1
    %v569 = vsel %vm205, %v567, %v568
    %v573 = vrot.slane %v546, 1
    %v574 = vrot.slane %v547, 1
    %v575 = vsel %vm205, %v573, %v574
    %s577 = scalar_lea.vmem [#allocation8], 512
    %v578 = vld [vmem:[%s577] sm:$0xff]
    %v579 = vld [vmem:[%s577 + $0x8] sm:$0xff]
    %v580 = vld [vmem:[%s577 + $0x10] sm:$0xff]
    %v581 = vld [vmem:[%s577 + $0x18] sm:$0xff]
    %v582 = vld [vmem:[%s577 + $0x20] sm:$0xff]
    %v583 = vld [vmem:[%s577 + $0x28] sm:$0xff]
    %v584 = vld [vmem:[%s577 + $0x30] sm:$0xff]
    %v585 = vld [vmem:[%s577 + $0x38] sm:$0xff]
    %v586 = vld [vmem:[%s577 + $0x40] sm:$0xff]
    %v587 = vld [vmem:[%s577 + $0x48] sm:$0xff]
    %v588 = vld [vmem:[%s577 + $0x50] sm:$0xff]
    %v589 = vld [vmem:[%s577 + $0x58] sm:$0xff]
    %v590 = vld [vmem:[%s577 + $0x60] sm:$0xff]
    %v591 = vld [vmem:[%s577 + $0x68] sm:$0xff]
    %v592 = vld [vmem:[%s577 + $0x70] sm:$0xff]
    %v593 = vld [vmem:[%s577 + $0x78] sm:$0xff]
    %594 = vmatprep.subr.mxu0 0.0
    %595 = vmatpush1.msra.mxu0 %v593
    %596 = vmatprep.subr.mxu0 0.0
    %597 = vmatpush1.msra.mxu0 %v592
    %598 = vmatprep.subr.mxu0 0.0
    %599 = vmatpush1.msra.mxu0 %v591
    %600 = vmatprep.subr.mxu0 0.0
    %601 = vmatpush1.msra.mxu0 %v590
    %602 = vmatprep.subr.mxu0 0.0
    %603 = vmatpush1.msra.mxu0 %v589
    %604 = vmatprep.subr.mxu0 0.0
    %605 = vmatpush1.msra.mxu0 %v588
    %606 = vmatprep.subr.mxu0 0.0
    %607 = vmatpush1.msra.mxu0 %v587
    %608 = vmatprep.subr.mxu0 0.0
    %609 = vmatpush1.msra.mxu0 %v586
    %610 = vmatprep.subr.mxu0 0.0
    %611 = vmatpush1.msra.mxu0 %v585
    %612 = vmatprep.subr.mxu0 0.0
    %613 = vmatpush1.msra.mxu0 %v584
    %614 = vmatprep.subr.mxu0 0.0
    %615 = vmatpush1.msra.mxu0 %v583
    %616 = vmatprep.subr.mxu0 0.0
    %617 = vmatpush1.msra.mxu0 %v582
    %618 = vmatprep.subr.mxu0 0.0
    %619 = vmatpush1.msra.mxu0 %v581
    %620 = vmatprep.subr.mxu0 0.0
    %621 = vmatpush1.msra.mxu0 %v580
    %622 = vmatprep.subr.mxu0 0.0
    %623 = vmatpush1.msra.mxu0 %v579
    %624 = vmatprep.subr.mxu0 0.0
    %625 = vmatpush1.msra.mxu0 %v578
    %626 = vmatprep.subr.mxu0 0.0
    %627 = vmatpush2.msra.mxu0 0.0
    %628 = vmatprep.subr.mxu0 0.0
    %629 = vmatpush2.msra.mxu0 0.0
    %630 = vmatprep.subr.mxu0 0.0
    %631 = vmatpush2.msra.mxu0 0.0
    %632 = vmatprep.subr.mxu0 0.0
    %633 = vmatpush2.msra.mxu0 0.0
    %634 = vmatprep.subr.mxu0 0.0
    %635 = vmatpush2.msra.mxu0 0.0
    %636 = vmatprep.subr.mxu0 0.0
    %637 = vmatpush2.msra.mxu0 0.0
    %638 = vmatprep.subr.mxu0 0.0
    %639 = vmatpush2.msra.mxu0 0.0
    %640 = vmatprep.subr.mxu0 0.0
    %641 = vmatpush2.msra.mxu0 0.0
    %642 = vmatprep.subr.mxu0 0.0
    %643 = vmatpush2.msra.mxu0 0.0
    %644 = vmatprep.subr.mxu0 0.0
    %645 = vmatpush2.msra.mxu0 0.0
    %646 = vmatprep.subr.mxu0 0.0
    %647 = vmatpush2.msra.mxu0 0.0
    %648 = vmatprep.subr.mxu0 0.0
    %649 = vmatpush2.msra.mxu0 0.0
    %650 = vmatprep.subr.mxu0 0.0
    %651 = vmatpush2.msra.mxu0 0.0
    %652 = vmatprep.subr.mxu0 0.0
    %653 = vmatpush2.msra.mxu0 0.0
    %654 = vmatprep.subr.mxu0 0.0
    %655 = vmatpush2.msra.mxu0 0.0
    %656 = vmatprep.subr.mxu0 0.0
    %657 = vmatpush2.msra.mxu0 0.0
    %658 = vmatprep.mubr.f32.mxu0 0.0
    %659 = vmatmul.mubr.f32.gmra.mxu0 %v569
    %v660 = vpop.f32.mrf.mxu0
    %v661 = vadd.f32 0.0, %v660
    %v662 = vpop.f32.mrf.mxu0
    %663 = vmatprep.mubr.f32.mxu0 0.0
    %664 = vmatmul.mubr.f32.gmra.mxu0 %v575
    %v665 = vpop.f32.mrf.mxu0
    %v666 = vadd.f32 0.0, %v665
    %v667 = vpop.f32.mrf.mxu0
    %668 = vdwg.mxu0
    %669 = vmatprep.subr.mxu0 0.0
    %670 = vmatpush1.msra.mxu0 %v564
    %671 = vmatprep.subr.mxu0 0.0
    %672 = vmatpush1.msra.mxu0 %v563
    %673 = vmatprep.subr.mxu0 0.0
    %674 = vmatpush1.msra.mxu0 %v562
    %675 = vmatprep.subr.mxu0 0.0
    %676 = vmatpush1.msra.mxu0 %v561
    %677 = vmatprep.subr.mxu0 0.0
    %678 = vmatpush1.msra.mxu0 %v560
    %679 = vmatprep.subr.mxu0 0.0
    %680 = vmatpush1.msra.mxu0 %v559
    %681 = vmatprep.subr.mxu0 0.0
    %682 = vmatpush1.msra.mxu0 %v558
    %683 = vmatprep.subr.mxu0 0.0
    %684 = vmatpush1.msra.mxu0 %v557
    %685 = vmatprep.subr.mxu0 0.0
    %686 = vmatpush1.msra.mxu0 %v556
    %687 = vmatprep.subr.mxu0 0.0
    %688 = vmatpush1.msra.mxu0 %v555
    %689 = vmatprep.subr.mxu0 0.0
    %690 = vmatpush1.msra.mxu0 %v554
    %691 = vmatprep.subr.mxu0 0.0
    %692 = vmatpush1.msra.mxu0 %v553
    %693 = vmatprep.subr.mxu0 0.0
    %694 = vmatpush1.msra.mxu0 %v552
    %695 = vmatprep.subr.mxu0 0.0
    %696 = vmatpush1.msra.mxu0 %v551
    %697 = vmatprep.subr.mxu0 0.0
    %698 = vmatpush1.msra.mxu0 %v550
    %699 = vmatprep.subr.mxu0 0.0
    %700 = vmatpush1.msra.mxu0 %v549
    %701 = vmatprep.subr.mxu0 0.0
    %702 = vmatpush2.msra.mxu0 0.0
    %703 = vmatprep.subr.mxu0 0.0
    %704 = vmatpush2.msra.mxu0 0.0
    %705 = vmatprep.subr.mxu0 0.0
    %706 = vmatpush2.msra.mxu0 0.0
    %707 = vmatprep.subr.mxu0 0.0
    %708 = vmatpush2.msra.mxu0 0.0
    %709 = vmatprep.subr.mxu0 0.0
    %710 = vmatpush2.msra.mxu0 0.0
    %711 = vmatprep.subr.mxu0 0.0
    %712 = vmatpush2.msra.mxu0 0.0
    %713 = vmatprep.subr.mxu0 0.0
    %714 = vmatpush2.msra.mxu0 0.0
    %715 = vmatprep.subr.mxu0 0.0
    %716 = vmatpush2.msra.mxu0 0.0
    %717 = vmatprep.subr.mxu0 0.0
    %718 = vmatpush2.msra.mxu0 0.0
    %719 = vmatprep.subr.mxu0 0.0
    %720 = vmatpush2.msra.mxu0 0.0
    %721 = vmatprep.subr.mxu0 0.0
    %722 = vmatpush2.msra.mxu0 0.0
    %723 = vmatprep.subr.mxu0 0.0
    %724 = vmatpush2.msra.mxu0 0.0
    %725 = vmatprep.subr.mxu0 0.0
    %726 = vmatpush2.msra.mxu0 0.0
    %727 = vmatprep.subr.mxu0 0.0
    %728 = vmatpush2.msra.mxu0 0.0
    %729 = vmatprep.subr.mxu0 0.0
    %730 = vmatpush2.msra.mxu0 0.0
    %731 = vmatprep.subr.mxu0 0.0
    %732 = vmatpush2.msra.mxu0 0.0
    %733 = vmatprep.mubr.f32.mxu0 0.0
    %734 = vmatmul.mubr.f32.gmra.mxu0 %v541
    %v735 = vpop.f32.mrf.mxu0
    %v736 = vadd.f32 %v661, %v735
    %v737 = vpop.f32.mrf.mxu0
    %738 = vmatprep.mubr.f32.mxu0 0.0
    %739 = vmatmul.mubr.f32.gmra.mxu0 %v546
    %v740 = vpop.f32.mrf.mxu0
    %v741 = vadd.f32 %v666, %v740
    %v742 = vpop.f32.mrf.mxu0
    %743 = vdwg.mxu0
    %v744 = vrot.slane %v541, 2
    %v745 = vrot.slane %v542, 2
    %v746 = vsel %vm383, %v744, %v745
    %v748 = vrot.slane %v546, 2
    %v749 = vrot.slane %v547, 2
    %v750 = vsel %vm383, %v748, %v749
    %s752 = scalar_lea.vmem [#allocation8], 640
    %v753 = vld [vmem:[%s752] sm:$0xff]
    %v754 = vld [vmem:[%s752 + $0x8] sm:$0xff]
    %v755 = vld [vmem:[%s752 + $0x10] sm:$0xff]
    %v756 = vld [vmem:[%s752 + $0x18] sm:$0xff]
    %v757 = vld [vmem:[%s752 + $0x20] sm:$0xff]
    %v758 = vld [vmem:[%s752 + $0x28] sm:$0xff]
    %v759 = vld [vmem:[%s752 + $0x30] sm:$0xff]
    %v760 = vld [vmem:[%s752 + $0x38] sm:$0xff]
    %v761 = vld [vmem:[%s752 + $0x40] sm:$0xff]
    %v762 = vld [vmem:[%s752 + $0x48] sm:$0xff]
    %v763 = vld [vmem:[%s752 + $0x50] sm:$0xff]
    %v764 = vld [vmem:[%s752 + $0x58] sm:$0xff]
    %v765 = vld [vmem:[%s752 + $0x60] sm:$0xff]
    %v766 = vld [vmem:[%s752 + $0x68] sm:$0xff]
    %v767 = vld [vmem:[%s752 + $0x70] sm:$0xff]
    %v768 = vld [vmem:[%s752 + $0x78] sm:$0xff]
    %769 = vmatprep.subr.mxu0 0.0
    %770 = vmatpush1.msra.mxu0 %v768
    %771 = vmatprep.subr.mxu0 0.0
    %772 = vmatpush1.msra.mxu0 %v767
    %773 = vmatprep.subr.mxu0 0.0
    %774 = vmatpush1.msra.mxu0 %v766
    %775 = vmatprep.subr.mxu0 0.0
    %776 = vmatpush1.msra.mxu0 %v765
    %777 = vmatprep.subr.mxu0 0.0
    %778 = vmatpush1.msra.mxu0 %v764
    %779 = vmatprep.subr.mxu0 0.0
    %780 = vmatpush1.msra.mxu0 %v763
    %781 = vmatprep.subr.mxu0 0.0
    %782 = vmatpush1.msra.mxu0 %v762
    %783 = vmatprep.subr.mxu0 0.0
    %784 = vmatpush1.msra.mxu0 %v761
    %785 = vmatprep.subr.mxu0 0.0
    %786 = vmatpush1.msra.mxu0 %v760
    %787 = vmatprep.subr.mxu0 0.0
    %788 = vmatpush1.msra.mxu0 %v759
    %789 = vmatprep.subr.mxu0 0.0
    %790 = vmatpush1.msra.mxu0 %v758
    %791 = vmatprep.subr.mxu0 0.0
    %792 = vmatpush1.msra.mxu0 %v757
    %793 = vmatprep.subr.mxu0 0.0
    %794 = vmatpush1.msra.mxu0 %v756
    %795 = vmatprep.subr.mxu0 0.0
    %796 = vmatpush1.msra.mxu0 %v755
    %797 = vmatprep.subr.mxu0 0.0
    %798 = vmatpush1.msra.mxu0 %v754
    %799 = vmatprep.subr.mxu0 0.0
    %800 = vmatpush1.msra.mxu0 %v753
    %801 = vmatprep.subr.mxu0 0.0
    %802 = vmatpush2.msra.mxu0 0.0
    %803 = vmatprep.subr.mxu0 0.0
    %804 = vmatpush2.msra.mxu0 0.0
    %805 = vmatprep.subr.mxu0 0.0
    %806 = vmatpush2.msra.mxu0 0.0
    %807 = vmatprep.subr.mxu0 0.0
    %808 = vmatpush2.msra.mxu0 0.0
    %809 = vmatprep.subr.mxu0 0.0
    %810 = vmatpush2.msra.mxu0 0.0
    %811 = vmatprep.subr.mxu0 0.0
    %812 = vmatpush2.msra.mxu0 0.0
    %813 = vmatprep.subr.mxu0 0.0
    %814 = vmatpush2.msra.mxu0 0.0
    %815 = vmatprep.subr.mxu0 0.0
    %816 = vmatpush2.msra.mxu0 0.0
    %817 = vmatprep.subr.mxu0 0.0
    %818 = vmatpush2.msra.mxu0 0.0
    %819 = vmatprep.subr.mxu0 0.0
    %820 = vmatpush2.msra.mxu0 0.0
    %821 = vmatprep.subr.mxu0 0.0
    %822 = vmatpush2.msra.mxu0 0.0
    %823 = vmatprep.subr.mxu0 0.0
    %824 = vmatpush2.msra.mxu0 0.0
    %825 = vmatprep.subr.mxu0 0.0
    %826 = vmatpush2.msra.mxu0 0.0
    %827 = vmatprep.subr.mxu0 0.0
    %828 = vmatpush2.msra.mxu0 0.0
    %829 = vmatprep.subr.mxu0 0.0
    %830 = vmatpush2.msra.mxu0 0.0
    %831 = vmatprep.subr.mxu0 0.0
    %832 = vmatpush2.msra.mxu0 0.0
    %833 = vmatprep.mubr.f32.mxu0 0.0
    %834 = vmatmul.mubr.f32.gmra.mxu0 %v746
    %v835 = vpop.f32.mrf.mxu0
    %v836 = vadd.f32 0.0, %v835
    %v837 = vpop.f32.mrf.mxu0
    %838 = vmatprep.mubr.f32.mxu0 0.0
    %839 = vmatmul.mubr.f32.gmra.mxu0 %v750
    %v840 = vpop.f32.mrf.mxu0
    %v841 = vadd.f32 0.0, %v840
    %v842 = vpop.f32.mrf.mxu0
    %843 = vdwg.mxu0
    %v844 = vadd.f32 %v736, %v836
    %v845 = vadd.f32 %v741, %v841
    %s846 = scalar_lea.vmem [#allocation9], 1
    %v847 = vld [vmem:[%s846] sm:$0x1]
    %v849 = vlaneseq
    %v850 = vshrl.u32 %v849, 7
    %v851 = vsub.s32 0, %v850
    %v852 = vrot.slane %v847, %v851
    %v854 = vadd.f32 %v844, %v852
    %v855 = vadd.f32 %v845, %v852
    %v856 = vmax.f32 %v854, 0.0
    %v857 = vmax.f32 %v855, 0.0
    %858 = vadd.xlane.f32.xlu0 %v856
    %v859 = vpop.xlane.xlu0 %858
    %860 = vadd.xlane.f32.xlu0 %v857
    %v861 = vpop.xlane.xlu0 %860
    %v862 = vmul.f32 %v859, %v501
    %v863 = vmul.f32 %v861, %v501
    %v864 = vsub.f32 %v856, %v862
    %v865 = vsub.f32 %v857, %v863
    %v866 = vmul.f32 %v864, %v864
    %v867 = vmul.f32 %v865, %v865
    %868 = vadd.xlane.f32.xlu0 %v866
    %v869 = vpop.xlane.xlu0 %868
    %870 = vadd.xlane.f32.xlu0 %v867
    %v871 = vpop.xlane.xlu0 %870
    %v872 = vmul.f32 %v869, %v501
    %v873 = vmul.f32 %v871, %v501
    %v874 = vadd.f32 %v872, 1e-05
    %v875 = vadd.f32 %v873, 1e-05
    %v876 = vrsqrt.pop %v874
    %v877 = vrsqrt.pop %v875
    %v878 = vmul.f32 %v864, %v876
    %v879 = vmul.f32 %v865, %v877
    %s880 = scalar_lea.vmem [#allocation11], 1
    %v881 = vld [vmem:[%s880] sm:$0x1]
    %v883 = vlaneseq
    %v884 = vshrl.u32 %v883, 7
    %v885 = vsub.s32 0, %v884
    %v886 = vrot.slane %v881, %v885
    %v888 = vmul.f32 %v878, %v886
    %v889 = vmul.f32 %v879, %v886
    %s890 = scalar_lea.vmem [#allocation12], 1
    %v891 = vld [vmem:[%s890] sm:$0x1]
    %v893 = vlaneseq
    %v894 = vshrl.u32 %v893, 7
    %v895 = vsub.s32 0, %v894
    %v896 = vrot.slane %v891, %v895
    %v898 = vadd.f32 %v888, %v896
    %v899 = vadd.f32 %v889, %v896
    %v900 = vld [vmem:[#allocation14] sm:$0xff]
    %v901 = vld [vmem:[#allocation14 + $0x8] sm:$0xff]
    %v902 = vld [vmem:[#allocation14 + $0x10] sm:$0xff]
    %v903 = vld [vmem:[#allocation14 + $0x18] sm:$0xff]
    %v904 = vld [vmem:[#allocation14 + $0x20] sm:$0xff]
    %v905 = vld [vmem:[#allocation14 + $0x28] sm:$0xff]
    %v906 = vld [vmem:[#allocation14 + $0x30] sm:$0xff]
    %v907 = vld [vmem:[#allocation14 + $0x38] sm:$0xff]
    %v908 = vld [vmem:[#allocation14 + $0x40] sm:$0xff]
    %v909 = vld [vmem:[#allocation14 + $0x48] sm:$0xff]
    %v910 = vld [vmem:[#allocation14 + $0x50] sm:$0xff]
    %v911 = vld [vmem:[#allocation14 + $0x58] sm:$0xff]
    %v912 = vld [vmem:[#allocation14 + $0x60] sm:$0xff]
    %v913 = vld [vmem:[#allocation14 + $0x68] sm:$0xff]
    %v914 = vld [vmem:[#allocation14 + $0x70] sm:$0xff]
    %v915 = vld [vmem:[#allocation14 + $0x78] sm:$0xff]
    %v916 = vld [vmem:[#allocation14 + $0x80] sm:$0xff]
    %v917 = vld [vmem:[#allocation14 + $0x88] sm:$0xff]
    %v918 = vld [vmem:[#allocation14 + $0x90] sm:$0xff]
    %v919 = vld [vmem:[#allocation14 + $0x98] sm:$0xff]
    %v920 = vld [vmem:[#allocation14 + $0xa0] sm:$0xff]
    %v921 = vld [vmem:[#allocation14 + $0xa8] sm:$0xff]
    %v922 = vld [vmem:[#allocation14 + $0xb0] sm:$0xff]
    %v923 = vld [vmem:[#allocation14 + $0xb8] sm:$0xff]
    %v924 = vld [vmem:[#allocation14 + $0xc0] sm:$0xff]
    %v925 = vld [vmem:[#allocation14 + $0xc8] sm:$0xff]
    %v926 = vld [vmem:[#allocation14 + $0xd0] sm:$0xff]
    %v927 = vld [vmem:[#allocation14 + $0xd8] sm:$0xff]
    %v928 = vld [vmem:[#allocation14 + $0xe0] sm:$0xff]
    %v929 = vld [vmem:[#allocation14 + $0xe8] sm:$0xff]
    %v930 = vld [vmem:[#allocation14 + $0xf0] sm:$0xff]
    %v931 = vld [vmem:[#allocation14 + $0xf8] sm:$0xff]
    %v932 = vld [vmem:[#allocation14 + $0x100] sm:$0xff]
    %v933 = vld [vmem:[#allocation14 + $0x108] sm:$0xff]
    %v934 = vld [vmem:[#allocation14 + $0x110] sm:$0xff]
    %v935 = vld [vmem:[#allocation14 + $0x118] sm:$0xff]
    %v936 = vld [vmem:[#allocation14 + $0x120] sm:$0xff]
    %v937 = vld [vmem:[#allocation14 + $0x128] sm:$0xff]
    %v938 = vld [vmem:[#allocation14 + $0x130] sm:$0xff]
    %v939 = vld [vmem:[#allocation14 + $0x138] sm:$0xff]
    %v940 = vld [vmem:[#allocation14 + $0x140] sm:$0xff]
    %v941 = vld [vmem:[#allocation14 + $0x148] sm:$0xff]
    %v942 = vld [vmem:[#allocation14 + $0x150] sm:$0xff]
    %v943 = vld [vmem:[#allocation14 + $0x158] sm:$0xff]
    %v944 = vld [vmem:[#allocation14 + $0x160] sm:$0xff]
    %v945 = vld [vmem:[#allocation14 + $0x168] sm:$0xff]
    %v946 = vld [vmem:[#allocation14 + $0x170] sm:$0xff]
    %v947 = vld [vmem:[#allocation14 + $0x178] sm:$0xff]
    %v948 = vld [vmem:[#allocation14 + $0x180] sm:$0xff]
    %v949 = vld [vmem:[#allocation14 + $0x188] sm:$0xff]
    %v950 = vld [vmem:[#allocation14 + $0x190] sm:$0xff]
    %v951 = vld [vmem:[#allocation14 + $0x198] sm:$0xff]
    %v952 = vld [vmem:[#allocation14 + $0x1a0] sm:$0xff]
    %v953 = vld [vmem:[#allocation14 + $0x1a8] sm:$0xff]
    %v954 = vld [vmem:[#allocation14 + $0x1b0] sm:$0xff]
    %v955 = vld [vmem:[#allocation14 + $0x1b8] sm:$0xff]
    %v956 = vld [vmem:[#allocation14 + $0x1c0] sm:$0xff]
    %v957 = vld [vmem:[#allocation14 + $0x1c8] sm:$0xff]
    %v958 = vld [vmem:[#allocation14 + $0x1d0] sm:$0xff]
    %v959 = vld [vmem:[#allocation14 + $0x1d8] sm:$0xff]
    %v960 = vld [vmem:[#allocation14 + $0x1e0] sm:$0xff]
    %v961 = vld [vmem:[#allocation14 + $0x1e8] sm:$0xff]
    %v962 = vld [vmem:[#allocation14 + $0x1f0] sm:$0xff]
    %v963 = vld [vmem:[#allocation14 + $0x1f8] sm:$0xff]
    %v964 = vld [vmem:[%s8] sm:$0xf]
    %v966 = vlaneseq
    %v967 = vshrl.u32 %v966, 7
    %v968 = vsub.s32 0, %v967
    %v969 = vrot.slane %v964, %v968
    %v970 = vlaneseq
    %v971 = vshrl.u32 %v970, 7
    %v972 = vsub.s32 1, %v971
    %v973 = vrot.slane %v964, %v972
    %v974 = vlaneseq
    %v975 = vshrl.u32 %v974, 7
    %v976 = vsub.s32 2, %v975
    %v977 = vrot.slane %v964, %v976
    %v978 = vlaneseq
    %v979 = vshrl.u32 %v978, 7
    %v980 = vsub.s32 3, %v979
    %v981 = vrot.slane %v964, %v980
    %986 = vmatprep.subr.mxu0 %v961
    %987 = vmatpush1.msra.mxu0 %v960
    %988 = vmatprep.subr.mxu0 %v957
    %989 = vmatpush1.msra.mxu0 %v956
    %990 = vmatprep.subr.mxu0 %v953
    %991 = vmatpush1.msra.mxu0 %v952
    %992 = vmatprep.subr.mxu0 %v949
    %993 = vmatpush1.msra.mxu0 %v948
    %994 = vmatprep.subr.mxu0 %v945
    %995 = vmatpush1.msra.mxu0 %v944
    %996 = vmatprep.subr.mxu0 %v941
    %997 = vmatpush1.msra.mxu0 %v940
    %998 = vmatprep.subr.mxu0 %v937
    %999 = vmatpush1.msra.mxu0 %v936
    %1000 = vmatprep.subr.mxu0 %v933
    %1001 = vmatpush1.msra.mxu0 %v932
    %1002 = vmatprep.subr.mxu0 %v929
    %1003 = vmatpush1.msra.mxu0 %v928
    %1004 = vmatprep.subr.mxu0 %v925
    %1005 = vmatpush1.msra.mxu0 %v924
    %1006 = vmatprep.subr.mxu0 %v921
    %1007 = vmatpush1.msra.mxu0 %v920
    %1008 = vmatprep.subr.mxu0 %v917
    %1009 = vmatpush1.msra.mxu0 %v916
    %1010 = vmatprep.subr.mxu0 %v913
    %1011 = vmatpush1.msra.mxu0 %v912
    %1012 = vmatprep.subr.mxu0 %v909
    %1013 = vmatpush1.msra.mxu0 %v908
    %1014 = vmatprep.subr.mxu0 %v905
    %1015 = vmatpush1.msra.mxu0 %v904
    %1016 = vmatprep.subr.mxu0 %v901
    %1017 = vmatpush1.msra.mxu0 %v900
    %1018 = vmatprep.subr.mxu0 0.0
    %1019 = vmatpush2.msra.mxu0 0.0
    %1020 = vmatprep.subr.mxu0 0.0
    %1021 = vmatpush2.msra.mxu0 0.0
    %1022 = vmatprep.subr.mxu0 0.0
    %1023 = vmatpush2.msra.mxu0 0.0
    %1024 = vmatprep.subr.mxu0 0.0
    %1025 = vmatpush2.msra.mxu0 0.0
    %1026 = vmatprep.subr.mxu0 0.0
    %1027 = vmatpush2.msra.mxu0 0.0
    %1028 = vmatprep.subr.mxu0 0.0
    %1029 = vmatpush2.msra.mxu0 0.0
    %1030 = vmatprep.subr.mxu0 0.0
    %1031 = vmatpush2.msra.mxu0 0.0
    %1032 = vmatprep.subr.mxu0 0.0
    %1033 = vmatpush2.msra.mxu0 0.0
    %1034 = vmatprep.subr.mxu0 0.0
    %1035 = vmatpush2.msra.mxu0 0.0
    %1036 = vmatprep.subr.mxu0 0.0
    %1037 = vmatpush2.msra.mxu0 0.0
    %1038 = vmatprep.subr.mxu0 0.0
    %1039 = vmatpush2.msra.mxu0 0.0
    %1040 = vmatprep.subr.mxu0 0.0
    %1041 = vmatpush2.msra.mxu0 0.0
    %1042 = vmatprep.subr.mxu0 0.0
    %1043 = vmatpush2.msra.mxu0 0.0
    %1044 = vmatprep.subr.mxu0 0.0
    %1045 = vmatpush2.msra.mxu0 0.0
    %1046 = vmatprep.subr.mxu0 0.0
    %1047 = vmatpush2.msra.mxu0 0.0
    %1048 = vmatprep.subr.mxu0 0.0
    %1049 = vmatpush2.msra.mxu0 0.0
    %1050 = vmatprep.mubr.f32.mxu0 0.0
    %1051 = vmatmul.mubr.f32.gmra.mxu0 %v898
    %v1052 = vpop.f32.mrf.mxu0
    %v1053 = vadd.f32 %v969, %v1052
    %v1054 = vpop.f32.mrf.mxu0
    %v1055 = vadd.f32 %v973, %v1054
    %1056 = vmatprep.mubr.f32.mxu0 0.0
    %1057 = vmatmul.mubr.f32.gmra.mxu0 %v899
    %v1058 = vpop.f32.mrf.mxu0
    %v1059 = vadd.f32 %v969, %v1058
    %v1060 = vpop.f32.mrf.mxu0
    %v1061 = vadd.f32 %v973, %v1060
    %1062 = vdwg.mxu0
    %1063 = vmatprep.subr.mxu0 %v963
    %1064 = vmatpush1.msra.mxu0 %v962
    %1065 = vmatprep.subr.mxu0 %v959
    %1066 = vmatpush1.msra.mxu0 %v958
    %1067 = vmatprep.subr.mxu0 %v955
    %1068 = vmatpush1.msra.mxu0 %v954
    %1069 = vmatprep.subr.mxu0 %v951
    %1070 = vmatpush1.msra.mxu0 %v950
    %1071 = vmatprep.subr.mxu0 %v947
    %1072 = vmatpush1.msra.mxu0 %v946
    %1073 = vmatprep.subr.mxu0 %v943
    %1074 = vmatpush1.msra.mxu0 %v942
    %1075 = vmatprep.subr.mxu0 %v939
    %1076 = vmatpush1.msra.mxu0 %v938
    %1077 = vmatprep.subr.mxu0 %v935
    %1078 = vmatpush1.msra.mxu0 %v934
    %1079 = vmatprep.subr.mxu0 %v931
    %1080 = vmatpush1.msra.mxu0 %v930
    %1081 = vmatprep.subr.mxu0 %v927
    %1082 = vmatpush1.msra.mxu0 %v926
    %1083 = vmatprep.subr.mxu0 %v923
    %1084 = vmatpush1.msra.mxu0 %v922
    %1085 = vmatprep.subr.mxu0 %v919
    %1086 = vmatpush1.msra.mxu0 %v918
    %1087 = vmatprep.subr.mxu0 %v915
    %1088 = vmatpush1.msra.mxu0 %v914
    %1089 = vmatprep.subr.mxu0 %v911
    %1090 = vmatpush1.msra.mxu0 %v910
    %1091 = vmatprep.subr.mxu0 %v907
    %1092 = vmatpush1.msra.mxu0 %v906
    %1093 = vmatprep.subr.mxu0 %v903
    %1094 = vmatpush1.msra.mxu0 %v902
    %1095 = vmatprep.subr.mxu0 0.0
    %1096 = vmatpush2.msra.mxu0 0.0
    %1097 = vmatprep.subr.mxu0 0.0
    %1098 = vmatpush2.msra.mxu0 0.0
    %1099 = vmatprep.subr.mxu0 0.0
    %1100 = vmatpush2.msra.mxu0 0.0
    %1101 = vmatprep.subr.mxu0 0.0
    %1102 = vmatpush2.msra.mxu0 0.0
    %1103 = vmatprep.subr.mxu0 0.0
    %1104 = vmatpush2.msra.mxu0 0.0
    %1105 = vmatprep.subr.mxu0 0.0
    %1106 = vmatpush2.msra.mxu0 0.0
    %1107 = vmatprep.subr.mxu0 0.0
    %1108 = vmatpush2.msra.mxu0 0.0
    %1109 = vmatprep.subr.mxu0 0.0
    %1110 = vmatpush2.msra.mxu0 0.0
    %1111 = vmatprep.subr.mxu0 0.0
    %1112 = vmatpush2.msra.mxu0 0.0
    %1113 = vmatprep.subr.mxu0 0.0
    %1114 = vmatpush2.msra.mxu0 0.0
    %1115 = vmatprep.subr.mxu0 0.0
    %1116 = vmatpush2.msra.mxu0 0.0
    %1117 = vmatprep.subr.mxu0 0.0
    %1118 = vmatpush2.msra.mxu0 0.0
    %1119 = vmatprep.subr.mxu0 0.0
    %1120 = vmatpush2.msra.mxu0 0.0
    %1121 = vmatprep.subr.mxu0 0.0
    %1122 = vmatpush2.msra.mxu0 0.0
    %1123 = vmatprep.subr.mxu0 0.0
    %1124 = vmatpush2.msra.mxu0 0.0
    %1125 = vmatprep.subr.mxu0 0.0
    %1126 = vmatpush2.msra.mxu0 0.0
    %1127 = vmatprep.mubr.f32.mxu0 0.0
    %1128 = vmatmul.mubr.f32.gmra.mxu0 %v898
    %v1129 = vpop.f32.mrf.mxu0
    %v1130 = vadd.f32 %v977, %v1129
    %v1131 = vpop.f32.mrf.mxu0
    %v1132 = vadd.f32 %v981, %v1131
    %1133 = vmatprep.mubr.f32.mxu0 0.0
    %1134 = vmatmul.mubr.f32.gmra.mxu0 %v899
    %v1135 = vpop.f32.mrf.mxu0
    %v1136 = vadd.f32 %v977, %v1135
    %v1137 = vpop.f32.mrf.mxu0
    %v1138 = vadd.f32 %v981, %v1137
    %1139 = vdwg.mxu0
    %v1140 = vld [vmem:[%s13] sm:$0x1]
    %v1142 = vlaneseq
    %v1143 = vshrl.u32 %v1142, 7
    %v1144 = vsub.s32 0, %v1143
    %v1145 = vrot.slane %v1140, %v1144
    %v1147 = vmul.f32 %v898, %v1145
    %v1148 = vmul.f32 %v899, %v1145
    %1149 = vadd.xlane.f32.xlu0 %v1147
    %v1150 = vpop.xlane.xlu0 %1149
    %1151 = vadd.xlane.f32.xlu0 %v1148
    %v1152 = vpop.xlane.xlu0 %1151
    %v1153 = vld [vmem:[%s7] sm:$0xf]
    %v1154 = vld [vmem:[#allocation15] sm:$0xff]
    %v1155 = vld [vmem:[#allocation15 + $0x8] sm:$0xff]
    %v1156 = vld [vmem:[#allocation15 + $0x10] sm:$0xff]
    %v1157 = vld [vmem:[#allocation15 + $0x18] sm:$0xff]
    %v1158 = vld [vmem:[#allocation15 + $0x20] sm:$0xff]
    %v1159 = vld [vmem:[#allocation15 + $0x28] sm:$0xff]
    %v1160 = vld [vmem:[#allocation15 + $0x30] sm:$0xff]
    %v1161 = vld [vmem:[#allocation15 + $0x38] sm:$0xff]
    %v1162 = vld [vmem:[#allocation15 + $0x40] sm:$0xff]
    %v1163 = vld [vmem:[#allocation15 + $0x48] sm:$0xff]
    %v1164 = vld [vmem:[#allocation15 + $0x50] sm:$0xff]
    %v1165 = vld [vmem:[#allocation15 + $0x58] sm:$0xff]
    %v1166 = vld [vmem:[#allocation15 + $0x60] sm:$0xff]
    %v1167 = vld [vmem:[#allocation15 + $0x68] sm:$0xff]
    %v1168 = vld [vmem:[#allocation15 + $0x70] sm:$0xff]
    %v1169 = vld [vmem:[#allocation15 + $0x78] sm:$0xff]
    %v1170 = vld [vmem:[#allocation15 + $0x80] sm:$0xff]
    %v1171 = vld [vmem:[#allocation15 + $0x88] sm:$0xff]
    %v1172 = vld [vmem:[#allocation15 + $0x90] sm:$0xff]
    %v1173 = vld [vmem:[#allocation15 + $0x98] sm:$0xff]
    %v1174 = vld [vmem:[#allocation15 + $0xa0] sm:$0xff]
    %v1175 = vld [vmem:[#allocation15 + $0xa8] sm:$0xff]
    %v1176 = vld [vmem:[#allocation15 + $0xb0] sm:$0xff]
    %v1177 = vld [vmem:[#allocation15 + $0xb8] sm:$0xff]
    %v1178 = vld [vmem:[#allocation15 + $0xc0] sm:$0xff]
    %v1179 = vld [vmem:[#allocation15 + $0xc8] sm:$0xff]
    %v1180 = vld [vmem:[#allocation15 + $0xd0] sm:$0xff]
    %v1181 = vld [vmem:[#allocation15 + $0xd8] sm:$0xff]
    %v1182 = vld [vmem:[#allocation15 + $0xe0] sm:$0xff]
    %v1183 = vld [vmem:[#allocation15 + $0xe8] sm:$0xff]
    %v1184 = vld [vmem:[#allocation15 + $0xf0] sm:$0xff]
    %v1185 = vld [vmem:[#allocation15 + $0xf8] sm:$0xff]
    %v1186 = vld [vmem:[#allocation15 + $0x100] sm:$0xff]
    %v1187 = vld [vmem:[#allocation15 + $0x108] sm:$0xff]
    %v1188 = vld [vmem:[#allocation15 + $0x110] sm:$0xff]
    %v1189 = vld [vmem:[#allocation15 + $0x118] sm:$0xff]
    %v1190 = vld [vmem:[#allocation15 + $0x120] sm:$0xff]
    %v1191 = vld [vmem:[#allocation15 + $0x128] sm:$0xff]
    %v1192 = vld [vmem:[#allocation15 + $0x130] sm:$0xff]
    %v1193 = vld [vmem:[#allocation15 + $0x138] sm:$0xff]
    %v1194 = vld [vmem:[#allocation15 + $0x140] sm:$0xff]
    %v1195 = vld [vmem:[#allocation15 + $0x148] sm:$0xff]
    %v1196 = vld [vmem:[#allocation15 + $0x150] sm:$0xff]
    %v1197 = vld [vmem:[#allocation15 + $0x158] sm:$0xff]
    %v1198 = vld [vmem:[#allocation15 + $0x160] sm:$0xff]
    %v1199 = vld [vmem:[#allocation15 + $0x168] sm:$0xff]
    %v1200 = vld [vmem:[#allocation15 + $0x170] sm:$0xff]
    %v1201 = vld [vmem:[#allocation15 + $0x178] sm:$0xff]
    %v1202 = vld [vmem:[#allocation15 + $0x180] sm:$0xff]
    %v1203 = vld [vmem:[#allocation15 + $0x188] sm:$0xff]
    %v1204 = vld [vmem:[#allocation15 + $0x190] sm:$0xff]
    %v1205 = vld [vmem:[#allocation15 + $0x198] sm:$0xff]
    %v1206 = vld [vmem:[#allocation15 + $0x1a0] sm:$0xff]
    %v1207 = vld [vmem:[#allocation15 + $0x1a8] sm:$0xff]
    %v1208 = vld [vmem:[#allocation15 + $0x1b0] sm:$0xff]
    %v1209 = vld [vmem:[#allocation15 + $0x1b8] sm:$0xff]
    %v1210 = vld [vmem:[#allocation15 + $0x1c0] sm:$0xff]
    %v1211 = vld [vmem:[#allocation15 + $0x1c8] sm:$0xff]
    %v1212 = vld [vmem:[#allocation15 + $0x1d0] sm:$0xff]
    %v1213 = vld [vmem:[#allocation15 + $0x1d8] sm:$0xff]
    %v1214 = vld [vmem:[#allocation15 + $0x1e0] sm:$0xff]
    %v1215 = vld [vmem:[#allocation15 + $0x1e8] sm:$0xff]
    %v1216 = vld [vmem:[#allocation15 + $0x1f0] sm:$0xff]
    %v1217 = vld [vmem:[#allocation15 + $0x1f8] sm:$0xff]
    %v1218 = vld [vmem:[#allocation17] sm:$0xff]
    %v1219 = vld [vmem:[#allocation17 + $0x8] sm:$0xff]
    %v1220 = vld [vmem:[#allocation17 + $0x10] sm:$0xff]
    %v1221 = vld [vmem:[#allocation17 + $0x18] sm:$0xff]
    %v1222 = vld [vmem:[#allocation17 + $0x20] sm:$0xff]
    %v1223 = vld [vmem:[#allocation17 + $0x28] sm:$0xff]
    %v1224 = vld [vmem:[#allocation17 + $0x30] sm:$0xff]
    %v1225 = vld [vmem:[#allocation17 + $0x38] sm:$0xff]
    %v1226 = vld [vmem:[#allocation17 + $0x40] sm:$0xff]
    %v1227 = vld [vmem:[#allocation17 + $0x48] sm:$0xff]
    %v1228 = vld [vmem:[#allocation17 + $0x50] sm:$0xff]
    %v1229 = vld [vmem:[#allocation17 + $0x58] sm:$0xff]
    %v1230 = vld [vmem:[#allocation17 + $0x60] sm:$0xff]
    %v1231 = vld [vmem:[#allocation17 + $0x68] sm:$0xff]
    %v1232 = vld [vmem:[#allocation17 + $0x70] sm:$0xff]
    %v1233 = vld [vmem:[#allocation17 + $0x78] sm:$0xff]
    %v1234 = vld [vmem:[#allocation17 + $0x80] sm:$0xff]
    %v1235 = vld [vmem:[#allocation17 + $0x88] sm:$0xff]
    %v1236 = vld [vmem:[#allocation17 + $0x90] sm:$0xff]
    %v1237 = vld [vmem:[#allocation17 + $0x98] sm:$0xff]
    %v1238 = vld [vmem:[#allocation17 + $0xa0] sm:$0xff]
    %v1239 = vld [vmem:[#allocation17 + $0xa8] sm:$0xff]
    %v1240 = vld [vmem:[#allocation17 + $0xb0] sm:$0xff]
    %v1241 = vld [vmem:[#allocation17 + $0xb8] sm:$0xff]
    %v1242 = vld [vmem:[#allocation17 + $0xc0] sm:$0xff]
    %v1243 = vld [vmem:[#allocation17 + $0xc8] sm:$0xff]
    %v1244 = vld [vmem:[#allocation17 + $0xd0] sm:$0xff]
    %v1245 = vld [vmem:[#allocation17 + $0xd8] sm:$0xff]
    %v1246 = vld [vmem:[#allocation17 + $0xe0] sm:$0xff]
    %v1247 = vld [vmem:[#allocation17 + $0xe8] sm:$0xff]
    %v1248 = vld [vmem:[#allocation17 + $0xf0] sm:$0xff]
    %v1249 = vld [vmem:[#allocation17 + $0xf8] sm:$0xff]
    %v1250 = vld [vmem:[#allocation17 + $0x100] sm:$0xff]
    %v1251 = vld [vmem:[#allocation17 + $0x108] sm:$0xff]
    %v1252 = vld [vmem:[#allocation17 + $0x110] sm:$0xff]
    %v1253 = vld [vmem:[#allocation17 + $0x118] sm:$0xff]
    %v1254 = vld [vmem:[#allocation17 + $0x120] sm:$0xff]
    %v1255 = vld [vmem:[#allocation17 + $0x128] sm:$0xff]
    %v1256 = vld [vmem:[#allocation17 + $0x130] sm:$0xff]
    %v1257 = vld [vmem:[#allocation17 + $0x138] sm:$0xff]
    %v1258 = vld [vmem:[#allocation17 + $0x140] sm:$0xff]
    %v1259 = vld [vmem:[#allocation17 + $0x148] sm:$0xff]
    %v1260 = vld [vmem:[#allocation17 + $0x150] sm:$0xff]
    %v1261 = vld [vmem:[#allocation17 + $0x158] sm:$0xff]
    %v1262 = vld [vmem:[#allocation17 + $0x160] sm:$0xff]
    %v1263 = vld [vmem:[#allocation17 + $0x168] sm:$0xff]
    %v1264 = vld [vmem:[#allocation17 + $0x170] sm:$0xff]
    %v1265 = vld [vmem:[#allocation17 + $0x178] sm:$0xff]
    %v1266 = vld [vmem:[#allocation17 + $0x180] sm:$0xff]
    %v1267 = vld [vmem:[#allocation17 + $0x188] sm:$0xff]
    %v1268 = vld [vmem:[#allocation17 + $0x190] sm:$0xff]
    %v1269 = vld [vmem:[#allocation17 + $0x198] sm:$0xff]
    %v1270 = vld [vmem:[#allocation17 + $0x1a0] sm:$0xff]
    %v1271 = vld [vmem:[#allocation17 + $0x1a8] sm:$0xff]
    %v1272 = vld [vmem:[#allocation17 + $0x1b0] sm:$0xff]
    %v1273 = vld [vmem:[#allocation17 + $0x1b8] sm:$0xff]
    %v1274 = vld [vmem:[#allocation17 + $0x1c0] sm:$0xff]
    %v1275 = vld [vmem:[#allocation17 + $0x1c8] sm:$0xff]
    %v1276 = vld [vmem:[#allocation17 + $0x1d0] sm:$0xff]
    %v1277 = vld [vmem:[#allocation17 + $0x1d8] sm:$0xff]
    %v1278 = vld [vmem:[#allocation17 + $0x1e0] sm:$0xff]
    %v1279 = vld [vmem:[#allocation17 + $0x1e8] sm:$0xff]
    %v1280 = vld [vmem:[#allocation17 + $0x1f0] sm:$0xff]
    %v1281 = vld [vmem:[#allocation17 + $0x1f8] sm:$0xff]
    %v1282 = vld [vmem:[#allocation17 + $0x200] sm:$0xff]
    %v1283 = vld [vmem:[#allocation17 + $0x208] sm:$0xff]
    %v1284 = vld [vmem:[#allocation17 + $0x210] sm:$0xff]
    %v1285 = vld [vmem:[#allocation17 + $0x218] sm:$0xff]
    %v1286 = vld [vmem:[#allocation17 + $0x220] sm:$0xff]
    %v1287 = vld [vmem:[#allocation17 + $0x228] sm:$0xff]
    %v1288 = vld [vmem:[#allocation17 + $0x230] sm:$0xff]
    %v1289 = vld [vmem:[#allocation17 + $0x238] sm:$0xff]
    %v1290 = vld [vmem:[#allocation17 + $0x240] sm:$0xff]
    %v1291 = vld [vmem:[#allocation17 + $0x248] sm:$0xff]
    %v1292 = vld [vmem:[#allocation17 + $0x250] sm:$0xff]
    %v1293 = vld [vmem:[#allocation17 + $0x258] sm:$0xff]
    %v1294 = vld [vmem:[#allocation17 + $0x260] sm:$0xff]
    %v1295 = vld [vmem:[#allocation17 + $0x268] sm:$0xff]
    %v1296 = vld [vmem:[#allocation17 + $0x270] sm:$0xff]
    %v1297 = vld [vmem:[#allocation17 + $0x278] sm:$0xff]
    %v1298 = vld [vmem:[#allocation17 + $0x280] sm:$0xff]
    %v1299 = vld [vmem:[#allocation17 + $0x288] sm:$0xff]
    %v1300 = vld [vmem:[#allocation17 + $0x290] sm:$0xff]
    %v1301 = vld [vmem:[#allocation17 + $0x298] sm:$0xff]
    %v1302 = vld [vmem:[#allocation17 + $0x2a0] sm:$0xff]
    %v1303 = vld [vmem:[#allocation17 + $0x2a8] sm:$0xff]
    %v1304 = vld [vmem:[#allocation17 + $0x2b0] sm:$0xff]
    %v1305 = vld [vmem:[#allocation17 + $0x2b8] sm:$0xff]
    %v1306 = vld [vmem:[#allocation17 + $0x2c0] sm:$0xff]
    %v1307 = vld [vmem:[#allocation17 + $0x2c8] sm:$0xff]
    %v1308 = vld [vmem:[#allocation17 + $0x2d0] sm:$0xff]
    %v1309 = vld [vmem:[#allocation17 + $0x2d8] sm:$0xff]
    %v1310 = vld [vmem:[#allocation17 + $0x2e0] sm:$0xff]
    %v1311 = vld [vmem:[#allocation17 + $0x2e8] sm:$0xff]
    %v1312 = vld [vmem:[#allocation17 + $0x2f0] sm:$0xff]
    %v1313 = vld [vmem:[#allocation17 + $0x2f8] sm:$0xff]
    %v1314 = vld [vmem:[#allocation17 + $0x300] sm:$0xff]
    %v1315 = vld [vmem:[#allocation17 + $0x308] sm:$0xff]
    %v1316 = vld [vmem:[#allocation17 + $0x310] sm:$0xff]
    %v1317 = vld [vmem:[#allocation17 + $0x318] sm:$0xff]
    %v1318 = vld [vmem:[#allocation17 + $0x320] sm:$0xff]
    %v1319 = vld [vmem:[#allocation17 + $0x328] sm:$0xff]
    %v1320 = vld [vmem:[#allocation17 + $0x330] sm:$0xff]
    %v1321 = vld [vmem:[#allocation17 + $0x338] sm:$0xff]
    %v1322 = vld [vmem:[#allocation17 + $0x340] sm:$0xff]
    %v1323 = vld [vmem:[#allocation17 + $0x348] sm:$0xff]
    %v1324 = vld [vmem:[#allocation17 + $0x350] sm:$0xff]
    %v1325 = vld [vmem:[#allocation17 + $0x358] sm:$0xff]
    %v1326 = vld [vmem:[#allocation17 + $0x360] sm:$0xff]
    %v1327 = vld [vmem:[#allocation17 + $0x368] sm:$0xff]
    %v1328 = vld [vmem:[#allocation17 + $0x370] sm:$0xff]
    %v1329 = vld [vmem:[#allocation17 + $0x378] sm:$0xff]
    %v1330 = vld [vmem:[#allocation17 + $0x380] sm:$0xff]
    %v1331 = vld [vmem:[#allocation17 + $0x388] sm:$0xff]
    %v1332 = vld [vmem:[#allocation17 + $0x390] sm:$0xff]
    %v1333 = vld [vmem:[#allocation17 + $0x398] sm:$0xff]
    %v1334 = vld [vmem:[#allocation17 + $0x3a0] sm:$0xff]
    %v1335 = vld [vmem:[#allocation17 + $0x3a8] sm:$0xff]
    %v1336 = vld [vmem:[#allocation17 + $0x3b0] sm:$0xff]
    %v1337 = vld [vmem:[#allocation17 + $0x3b8] sm:$0xff]
    %v1338 = vld [vmem:[#allocation17 + $0x3c0] sm:$0xff]
    %v1339 = vld [vmem:[#allocation17 + $0x3c8] sm:$0xff]
    %v1340 = vld [vmem:[#allocation17 + $0x3d0] sm:$0xff]
    %v1341 = vld [vmem:[#allocation17 + $0x3d8] sm:$0xff]
    %v1342 = vld [vmem:[#allocation17 + $0x3e0] sm:$0xff]
    %v1343 = vld [vmem:[#allocation17 + $0x3e8] sm:$0xff]
    %v1344 = vld [vmem:[#allocation17 + $0x3f0] sm:$0xff]
    %v1345 = vld [vmem:[#allocation17 + $0x3f8] sm:$0xff]
    %v1346 = vld [vmem:[%s11] sm:$0xf]
    %v1347 = vld [vmem:[%s12] sm:$0x1]
    %v1348 = vld [vmem:[#allocation2] sm:$0x1]
    %v1349 = vlaneseq
    %v1350 = vand.u32 %v1349, 127
    %v1355 = vrot.slane %v1059, 7
    %v1356 = vrot.slane %v1061, 7
    %v1357 = vrot.slane %v1136, 7
    %v1358 = vrot.slane %v1138, 7
    %v1363 = vsel %vm179, %v1053, %v1355
    %v1364 = vsel %vm179, %v1055, %v1356
    %v1365 = vsel %vm179, %v1130, %v1357
    %v1366 = vsel %vm179, %v1132, %v1358
    %v1368 = vrot.slane %v1152, 7
    %v1370 = vsel %vm179, %v1150, %v1368
    %v1372 = vlaneseq
    %v1373 = vshrl.u32 %v1372, 7
    %v1374 = vsub.s32 0, %v1373
    %v1375 = vrot.slane %v1153, %v1374
    %v1376 = vlaneseq
    %v1377 = vshrl.u32 %v1376, 7
    %v1378 = vsub.s32 1, %v1377
    %v1379 = vrot.slane %v1153, %v1378
    %v1380 = vlaneseq
    %v1381 = vshrl.u32 %v1380, 7
    %v1382 = vsub.s32 2, %v1381
    %v1383 = vrot.slane %v1153, %v1382
    %v1384 = vlaneseq
    %v1385 = vshrl.u32 %v1384, 7
    %v1386 = vsub.s32 3, %v1385
    %v1387 = vrot.slane %v1153, %v1386
    %v1392 = vmul.f32 %v1375, 0.0
    %v1393 = vmul.f32 %v1379, 0.0
    %v1394 = vmul.f32 %v1383, 0.0
    %v1395 = vmul.f32 %v1387, 0.0
    %v1396 = vadd.f32 %v1363, %v1392
    %v1397 = vadd.f32 %v1364, %v1393
    %v1398 = vadd.f32 %v1365, %v1394
    %v1399 = vadd.f32 %v1366, %v1395
    %1400 = vmatprep.subr.mxu0 %v1215
    %1401 = vmatpush1.msra.mxu0 %v1214
    %1402 = vmatprep.subr.mxu0 %v1211
    %1403 = vmatpush1.msra.mxu0 %v1210
    %1404 = vmatprep.subr.mxu0 %v1207
    %1405 = vmatpush1.msra.mxu0 %v1206
    %1406 = vmatprep.subr.mxu0 %v1203
    %1407 = vmatpush1.msra.mxu0 %v1202
    %1408 = vmatprep.subr.mxu0 %v1199
    %1409 = vmatpush1.msra.mxu0 %v1198
    %1410 = vmatprep.subr.mxu0 %v1195
    %1411 = vmatpush1.msra.mxu0 %v1194
    %1412 = vmatprep.subr.mxu0 %v1191
    %1413 = vmatpush1.msra.mxu0 %v1190
    %1414 = vmatprep.subr.mxu0 %v1187
    %1415 = vmatpush1.msra.mxu0 %v1186
    %1416 = vmatprep.subr.mxu0 %v1183
    %1417 = vmatpush1.msra.mxu0 %v1182
    %1418 = vmatprep.subr.mxu0 %v1179
    %1419 = vmatpush1.msra.mxu0 %v1178
    %1420 = vmatprep.subr.mxu0 %v1175
    %1421 = vmatpush1.msra.mxu0 %v1174
    %1422 = vmatprep.subr.mxu0 %v1171
    %1423 = vmatpush1.msra.mxu0 %v1170
    %1424 = vmatprep.subr.mxu0 %v1167
    %1425 = vmatpush1.msra.mxu0 %v1166
    %1426 = vmatprep.subr.mxu0 %v1163
    %1427 = vmatpush1.msra.mxu0 %v1162
    %1428 = vmatprep.subr.mxu0 %v1159
    %1429 = vmatpush1.msra.mxu0 %v1158
    %1430 = vmatprep.subr.mxu0 %v1155
    %1431 = vmatpush1.msra.mxu0 %v1154
    %1432 = vmatprep.subr.mxu0 0.0
    %1433 = vmatpush2.msra.mxu0 0.0
    %1434 = vmatprep.subr.mxu0 0.0
    %1435 = vmatpush2.msra.mxu0 0.0
    %1436 = vmatprep.subr.mxu0 0.0
    %1437 = vmatpush2.msra.mxu0 0.0
    %1438 = vmatprep.subr.mxu0 0.0
    %1439 = vmatpush2.msra.mxu0 0.0
    %1440 = vmatprep.subr.mxu0 0.0
    %1441 = vmatpush2.msra.mxu0 0.0
    %1442 = vmatprep.subr.mxu0 0.0
    %1443 = vmatpush2.msra.mxu0 0.0
    %1444 = vmatprep.subr.mxu0 0.0
    %1445 = vmatpush2.msra.mxu0 0.0
    %1446 = vmatprep.subr.mxu0 0.0
    %1447 = vmatpush2.msra.mxu0 0.0
    %1448 = vmatprep.subr.mxu0 0.0
    %1449 = vmatpush2.msra.mxu0 0.0
    %1450 = vmatprep.subr.mxu0 0.0
    %1451 = vmatpush2.msra.mxu0 0.0
    %1452 = vmatprep.subr.mxu0 0.0
    %1453 = vmatpush2.msra.mxu0 0.0
    %1454 = vmatprep.subr.mxu0 0.0
    %1455 = vmatpush2.msra.mxu0 0.0
    %1456 = vmatprep.subr.mxu0 0.0
    %1457 = vmatpush2.msra.mxu0 0.0
    %1458 = vmatprep.subr.mxu0 0.0
    %1459 = vmatpush2.msra.mxu0 0.0
    %1460 = vmatprep.subr.mxu0 0.0
    %1461 = vmatpush2.msra.mxu0 0.0
    %1462 = vmatprep.subr.mxu0 0.0
    %1463 = vmatpush2.msra.mxu0 0.0
    %1464 = vmatprep.mubr.f32.mxu0 0.0
    %1465 = vmatmul.mubr.f32.gmra.mxu0 0.0
    %v1466 = vpop.f32.mrf.mxu0
    %v1467 = vadd.f32 0.0, %v1466
    %v1468 = vpop.f32.mrf.mxu0
    %v1469 = vadd.f32 0.0, %v1468
    %1470 = vdwg.mxu0
    %1471 = vmatprep.subr.mxu0 %v1217
    %1472 = vmatpush1.msra.mxu0 %v1216
    %1473 = vmatprep.subr.mxu0 %v1213
    %1474 = vmatpush1.msra.mxu0 %v1212
    %1475 = vmatprep.subr.mxu0 %v1209
    %1476 = vmatpush1.msra.mxu0 %v1208
    %1477 = vmatprep.subr.mxu0 %v1205
    %1478 = vmatpush1.msra.mxu0 %v1204
    %1479 = vmatprep.subr.mxu0 %v1201
    %1480 = vmatpush1.msra.mxu0 %v1200
    %1481 = vmatprep.subr.mxu0 %v1197
    %1482 = vmatpush1.msra.mxu0 %v1196
    %1483 = vmatprep.subr.mxu0 %v1193
    %1484 = vmatpush1.msra.mxu0 %v1192
    %1485 = vmatprep.subr.mxu0 %v1189
    %1486 = vmatpush1.msra.mxu0 %v1188
    %1487 = vmatprep.subr.mxu0 %v1185
    %1488 = vmatpush1.msra.mxu0 %v1184
    %1489 = vmatprep.subr.mxu0 %v1181
    %1490 = vmatpush1.msra.mxu0 %v1180
    %1491 = vmatprep.subr.mxu0 %v1177
    %1492 = vmatpush1.msra.mxu0 %v1176
    %1493 = vmatprep.subr.mxu0 %v1173
    %1494 = vmatpush1.msra.mxu0 %v1172
    %1495 = vmatprep.subr.mxu0 %v1169
    %1496 = vmatpush1.msra.mxu0 %v1168
    %1497 = vmatprep.subr.mxu0 %v1165
    %1498 = vmatpush1.msra.mxu0 %v1164
    %1499 = vmatprep.subr.mxu0 %v1161
    %1500 = vmatpush1.msra.mxu0 %v1160
    %1501 = vmatprep.subr.mxu0 %v1157
    %1502 = vmatpush1.msra.mxu0 %v1156
    %1503 = vmatprep.subr.mxu0 0.0
    %1504 = vmatpush2.msra.mxu0 0.0
    %1505 = vmatprep.subr.mxu0 0.0
    %1506 = vmatpush2.msra.mxu0 0.0
    %1507 = vmatprep.subr.mxu0 0.0
    %1508 = vmatpush2.msra.mxu0 0.0
    %1509 = vmatprep.subr.mxu0 0.0
    %1510 = vmatpush2.msra.mxu0 0.0
    %1511 = vmatprep.subr.mxu0 0.0
    %1512 = vmatpush2.msra.mxu0 0.0
    %1513 = vmatprep.subr.mxu0 0.0
    %1514 = vmatpush2.msra.mxu0 0.0
    %1515 = vmatprep.subr.mxu0 0.0
    %1516 = vmatpush2.msra.mxu0 0.0
    %1517 = vmatprep.subr.mxu0 0.0
    %1518 = vmatpush2.msra.mxu0 0.0
    %1519 = vmatprep.subr.mxu0 0.0
    %1520 = vmatpush2.msra.mxu0 0.0
    %1521 = vmatprep.subr.mxu0 0.0
    %1522 = vmatpush2.msra.mxu0 0.0
    %1523 = vmatprep.subr.mxu0 0.0
    %1524 = vmatpush2.msra.mxu0 0.0
    %1525 = vmatprep.subr.mxu0 0.0
    %1526 = vmatpush2.msra.mxu0 0.0
    %1527 = vmatprep.subr.mxu0 0.0
    %1528 = vmatpush2.msra.mxu0 0.0
    %1529 = vmatprep.subr.mxu0 0.0
    %1530 = vmatpush2.msra.mxu0 0.0
    %1531 = vmatprep.subr.mxu0 0.0
    %1532 = vmatpush2.msra.mxu0 0.0
    %1533 = vmatprep.subr.mxu0 0.0
    %1534 = vmatpush2.msra.mxu0 0.0
    %1535 = vmatprep.mubr.f32.mxu0 0.0
    %1536 = vmatmul.mubr.f32.gmra.mxu0 0.0
    %v1537 = vpop.f32.mrf.mxu0
    %v1538 = vadd.f32 0.0, %v1537
    %v1539 = vpop.f32.mrf.mxu0
    %v1540 = vadd.f32 0.0, %v1539
    %1541 = vdwg.mxu0
    %v1542 = vadd.f32 %v1396, %v1467
    %v1543 = vadd.f32 %v1397, %v1469
    %v1544 = vadd.f32 %v1398, %v1538
    %v1545 = vadd.f32 %v1399, %v1540
    %v1546 = vxor.u32 %v1542, 2147483648
    %v1547 = vxor.u32 %v1543, 2147483648
    %v1548 = vxor.u32 %v1544, 2147483648
    %v1549 = vmul.f32 %v1546, 1.442695
    %v1550 = vpow.pop %v1549
    %v1551 = vmul.f32 %v1547, 1.442695
    %v1552 = vpow.pop %v1551
    %v1553 = vmul.f32 %v1548, 1.442695
    %v1554 = vpow.pop %v1553
    %v1555 = vadd.f32 %v1550, 1.0
    %v1556 = vadd.f32 %v1552, 1.0
    %v1557 = vadd.f32 %v1554, 1.0
    %v1558 = vrcp.pop %v1555
    %v1559 = vmul.f32 1.0, %v1558
    %v1560 = vrcp.pop %v1556
    %v1561 = vmul.f32 1.0, %v1560
    %v1562 = vrcp.pop %v1557
    %v1563 = vmul.f32 1.0, %v1562
    %v1564 = vtanh.pop %v1545
    %v1565 = vmul.f32 %v1561, 0.0
    %v1566 = vmul.f32 %v1559, %v1564
    %v1567 = vadd.f32 %v1565, %v1566
    %v1568 = vtanh.pop %v1567
    %v1569 = vmul.f32 %v1563, %v1568
    %v1570 = vmul.f32 %v1569, 0.9
    %v1571 = vadd.f32 %v1570, 0.0
    %v1572 = vmul.f32 %v1567, 0.9
    %v1573 = vadd.f32 %v1572, 0.0
    %v1575 = vlaneseq
    %v1576 = vshrl.u32 %v1575, 7
    %v1577 = vsub.s32 0, %v1576
    %v1578 = vrot.slane %v1346, %v1577
    %v1579 = vlaneseq
    %v1580 = vshrl.u32 %v1579, 7
    %v1581 = vsub.s32 1, %v1580
    %v1582 = vrot.slane %v1346, %v1581
    %v1583 = vlaneseq
    %v1584 = vshrl.u32 %v1583, 7
    %v1585 = vsub.s32 2, %v1584
    %v1586 = vrot.slane %v1346, %v1585
    %v1587 = vlaneseq
    %v1588 = vshrl.u32 %v1587, 7
    %v1589 = vsub.s32 3, %v1588
    %v1590 = vrot.slane %v1346, %v1589
    %1595 = vmatprep.subr.mxu0 %v1279
    %1596 = vmatpush1.msra.mxu0 %v1278
    %1597 = vmatprep.subr.mxu0 %v1275
    %1598 = vmatpush1.msra.mxu0 %v1274
    %1599 = vmatprep.subr.mxu0 %v1271
    %1600 = vmatpush1.msra.mxu0 %v1270
    %1601 = vmatprep.subr.mxu0 %v1267
    %1602 = vmatpush1.msra.mxu0 %v1266
    %1603 = vmatprep.subr.mxu0 %v1263
    %1604 = vmatpush1.msra.mxu0 %v1262
    %1605 = vmatprep.subr.mxu0 %v1259
    %1606 = vmatpush1.msra.mxu0 %v1258
    %1607 = vmatprep.subr.mxu0 %v1255
    %1608 = vmatpush1.msra.mxu0 %v1254
    %1609 = vmatprep.subr.mxu0 %v1251
    %1610 = vmatpush1.msra.mxu0 %v1250
    %1611 = vmatprep.subr.mxu0 %v1247
    %1612 = vmatpush1.msra.mxu0 %v1246
    %1613 = vmatprep.subr.mxu0 %v1243
    %1614 = vmatpush1.msra.mxu0 %v1242
    %1615 = vmatprep.subr.mxu0 %v1239
    %1616 = vmatpush1.msra.mxu0 %v1238
    %1617 = vmatprep.subr.mxu0 %v1235
    %1618 = vmatpush1.msra.mxu0 %v1234
    %1619 = vmatprep.subr.mxu0 %v1231
    %1620 = vmatpush1.msra.mxu0 %v1230
    %1621 = vmatprep.subr.mxu0 %v1227
    %1622 = vmatpush1.msra.mxu0 %v1226
    %1623 = vmatprep.subr.mxu0 %v1223
    %1624 = vmatpush1.msra.mxu0 %v1222
    %1625 = vmatprep.subr.mxu0 %v1219
    %1626 = vmatpush1.msra.mxu0 %v1218
    %1627 = vmatprep.subr.mxu0 %v1343
    %1628 = vmatpush2.msra.mxu0 %v1342
    %1629 = vmatprep.subr.mxu0 %v1339
    %1630 = vmatpush2.msra.mxu0 %v1338
    %1631 = vmatprep.subr.mxu0 %v1335
    %1632 = vmatpush2.msra.mxu0 %v1334
    %1633 = vmatprep.subr.mxu0 %v1331
    %1634 = vmatpush2.msra.mxu0 %v1330
    %1635 = vmatprep.subr.mxu0 %v1327
    %1636 = vmatpush2.msra.mxu0 %v1326
    %1637 = vmatprep.subr.mxu0 %v1323
    %1638 = vmatpush2.msra.mxu0 %v1322
    %1639 = vmatprep.subr.mxu0 %v1319
    %1640 = vmatpush2.msra.mxu0 %v1318
    %1641 = vmatprep.subr.mxu0 %v1315
    %1642 = vmatpush2.msra.mxu0 %v1314
    %1643 = vmatprep.subr.mxu0 %v1311
    %1644 = vmatpush2.msra.mxu0 %v1310
    %1645 = vmatprep.subr.mxu0 %v1307
    %1646 = vmatpush2.msra.mxu0 %v1306
    %1647 = vmatprep.subr.mxu0 %v1303
    %1648 = vmatpush2.msra.mxu0 %v1302
    %1649 = vmatprep.subr.mxu0 %v1299
    %1650 = vmatpush2.msra.mxu0 %v1298
    %1651 = vmatprep.subr.mxu0 %v1295
    %1652 = vmatpush2.msra.mxu0 %v1294
    %1653 = vmatprep.subr.mxu0 %v1291
    %1654 = vmatpush2.msra.mxu0 %v1290
    %1655 = vmatprep.subr.mxu0 %v1287
    %1656 = vmatpush2.msra.mxu0 %v1286
    %1657 = vmatprep.subr.mxu0 %v1283
    %1658 = vmatpush2.msra.mxu0 %v1282
    %1659 = vmatprep.mubr.f32.mxu0 0.0
    %1660 = vmatmul.mubr.f32.gmra.mxu0 %v1571
    %v1661 = vpop.f32.mrf.mxu0
    %v1662 = vadd.f32 %v1578, %v1661
    %v1663 = vpop.f32.mrf.mxu0
    %v1664 = vadd.f32 %v1582, %v1663
    %1665 = vdwg.mxu0
    %1666 = vmatprep.subr.mxu0 %v1281
    %1667 = vmatpush1.msra.mxu0 %v1280
    %1668 = vmatprep.subr.mxu0 %v1277
    %1669 = vmatpush1.msra.mxu0 %v1276
    %1670 = vmatprep.subr.mxu0 %v1273
    %1671 = vmatpush1.msra.mxu0 %v1272
    %1672 = vmatprep.subr.mxu0 %v1269
    %1673 = vmatpush1.msra.mxu0 %v1268
    %1674 = vmatprep.subr.mxu0 %v1265
    %1675 = vmatpush1.msra.mxu0 %v1264
    %1676 = vmatprep.subr.mxu0 %v1261
    %1677 = vmatpush1.msra.mxu0 %v1260
    %1678 = vmatprep.subr.mxu0 %v1257
    %1679 = vmatpush1.msra.mxu0 %v1256
    %1680 = vmatprep.subr.mxu0 %v1253
    %1681 = vmatpush1.msra.mxu0 %v1252
    %1682 = vmatprep.subr.mxu0 %v1249
    %1683 = vmatpush1.msra.mxu0 %v1248
    %1684 = vmatprep.subr.mxu0 %v1245
    %1685 = vmatpush1.msra.mxu0 %v1244
    %1686 = vmatprep.subr.mxu0 %v1241
    %1687 = vmatpush1.msra.mxu0 %v1240
    %1688 = vmatprep.subr.mxu0 %v1237
    %1689 = vmatpush1.msra.mxu0 %v1236
    %1690 = vmatprep.subr.mxu0 %v1233
    %1691 = vmatpush1.msra.mxu0 %v1232
    %1692 = vmatprep.subr.mxu0 %v1229
    %1693 = vmatpush1.msra.mxu0 %v1228
    %1694 = vmatprep.subr.mxu0 %v1225
    %1695 = vmatpush1.msra.mxu0 %v1224
    %1696 = vmatprep.subr.mxu0 %v1221
    %1697 = vmatpush1.msra.mxu0 %v1220
    %1698 = vmatprep.subr.mxu0 %v1345
    %1699 = vmatpush2.msra.mxu0 %v1344
    %1700 = vmatprep.subr.mxu0 %v1341
    %1701 = vmatpush2.msra.mxu0 %v1340
    %1702 = vmatprep.subr.mxu0 %v1337
    %1703 = vmatpush2.msra.mxu0 %v1336
    %1704 = vmatprep.subr.mxu0 %v1333
    %1705 = vmatpush2.msra.mxu0 %v1332
    %1706 = vmatprep.subr.mxu0 %v1329
    %1707 = vmatpush2.msra.mxu0 %v1328
    %1708 = vmatprep.subr.mxu0 %v1325
    %1709 = vmatpush2.msra.mxu0 %v1324
    %1710 = vmatprep.subr.mxu0 %v1321
    %1711 = vmatpush2.msra.mxu0 %v1320
    %1712 = vmatprep.subr.mxu0 %v1317
    %1713 = vmatpush2.msra.mxu0 %v1316
    %1714 = vmatprep.subr.mxu0 %v1313
    %1715 = vmatpush2.msra.mxu0 %v1312
    %1716 = vmatprep.subr.mxu0 %v1309
    %1717 = vmatpush2.msra.mxu0 %v1308
    %1718 = vmatprep.subr.mxu0 %v1305
    %1719 = vmatpush2.msra.mxu0 %v1304
    %1720 = vmatprep.subr.mxu0 %v1301
    %1721 = vmatpush2.msra.mxu0 %v1300
    %1722 = vmatprep.subr.mxu0 %v1297
    %1723 = vmatpush2.msra.mxu0 %v1296
    %1724 = vmatprep.subr.mxu0 %v1293
    %1725 = vmatpush2.msra.mxu0 %v1292
    %1726 = vmatprep.subr.mxu0 %v1289
    %1727 = vmatpush2.msra.mxu0 %v1288
    %1728 = vmatprep.subr.mxu0 %v1285
    %1729 = vmatpush2.msra.mxu0 %v1284
    %1730 = vmatprep.mubr.f32.mxu0 0.0
    %1731 = vmatmul.mubr.f32.gmra.mxu0 %v1571
    %v1732 = vpop.f32.mrf.mxu0
    %v1733 = vadd.f32 %v1586, %v1732
    %v1734 = vpop.f32.mrf.mxu0
    %v1735 = vadd.f32 %v1590, %v1734
    %1736 = vdwg.mxu0
    %v1737 = vxor.u32 %v1662, 2147483648
    %v1738 = vxor.u32 %v1664, 2147483648
    %v1739 = vxor.u32 %v1733, 2147483648
    %v1740 = vmul.f32 %v1737, 1.442695
    %v1741 = vpow.pop %v1740
    %v1742 = vmul.f32 %v1738, 1.442695
    %v1743 = vpow.pop %v1742
    %v1744 = vmul.f32 %v1739, 1.442695
    %v1745 = vpow.pop %v1744
    %v1746 = vadd.f32 %v1741, 1.0
    %v1747 = vadd.f32 %v1743, 1.0
    %v1748 = vadd.f32 %v1745, 1.0
    %v1749 = vrcp.pop %v1746
    %v1750 = vmul.f32 1.0, %v1749
    %v1751 = vrcp.pop %v1747
    %v1752 = vmul.f32 1.0, %v1751
    %v1753 = vrcp.pop %v1748
    %v1754 = vmul.f32 1.0, %v1753
    %v1755 = vtanh.pop %v1735
    %v1756 = vmul.f32 %v1752, 0.0
    %v1757 = vmul.f32 %v1750, %v1755
    %v1758 = vadd.f32 %v1756, %v1757
    %v1759 = vtanh.pop %v1758
    %v1760 = vmul.f32 %v1754, %v1759
    %v1761 = vmul.f32 %v1760, 0.9
    %v1762 = vadd.f32 %v1761, 0.0
    %v1763 = vmul.f32 %v1758, 0.9
    %v1764 = vadd.f32 %v1763, 0.0
    %v1766 = vlaneseq
    %v1767 = vshrl.u32 %v1766, 7
    %v1768 = vsub.s32 0, %v1767
    %v1769 = vrot.slane %v1347, %v1768
    %v1771 = vmul.f32 %v1762, %v1769
    %vm1772 = vcmask 1041408
    %v1773 = vsel %vm1772, %v1771, 0.0
    %1774 = vadd.xlane.f32.xlu0 %v1773
    %v1775 = vpop.xlane.xlu0 %1774
    %v1776 = vadd.f32 %v1775, %v1370
    %v1778 = vlaneseq
    %v1779 = vshrl.u32 %v1778, 7
    %v1780 = vsub.s32 0, %v1779
    %v1781 = vrot.slane %v1348, %v1780
    %v1783 = vadd.f32 %v1776, %v1781
    %vm1784 = vcmp.eq.s32.totalorder %v1350, 0
    %v1785 = vsel %vm1784, 1, 0
    %v1786 = vcvt.s32.f32 %v1785
    %1788 = vset.pattern.permute.xlu0 0
    %1789 = vperm.xlu0 %1788, %v1783
    %v1790 = vpop.permute.xlu0 %1789
    %v1792 = vmul.f32 %v1790, %v1786
    %v1793 = vadd.f32 %v1792, 0.0
    %v1798 = vrot.slane %v1053, 1
    %v1799 = vrot.slane %v1055, 1
    %v1800 = vrot.slane %v1130, 1
    %v1801 = vrot.slane %v1132, 1
    %v1806 = vsel %vm179, %v1798, %v1059
    %v1807 = vsel %vm179, %v1799, %v1061
    %v1808 = vsel %vm179, %v1800, %v1136
    %v1809 = vsel %vm179, %v1801, %v1138
    %v1811 = vrot.slane %v1150, 1
    %v1813 = vsel %vm179, %v1811, %v1152
    %v1814 = vmul.f32 %v1790, %v1375
    %v1815 = vmul.f32 %v1790, %v1379
    %v1816 = vmul.f32 %v1790, %v1383
    %v1817 = vmul.f32 %v1790, %v1387
    %v1818 = vadd.f32 %v1806, %v1814
    %v1819 = vadd.f32 %v1807, %v1815
    %v1820 = vadd.f32 %v1808, %v1816
    %v1821 = vadd.f32 %v1809, %v1817
    %1822 = vmatprep.subr.mxu0 %v1215
    %1823 = vmatpush1.msra.mxu0 %v1214
    %1824 = vmatprep.subr.mxu0 %v1211
    %1825 = vmatpush1.msra.mxu0 %v1210
    %1826 = vmatprep.subr.mxu0 %v1207
    %1827 = vmatpush1.msra.mxu0 %v1206
    %1828 = vmatprep.subr.mxu0 %v1203
    %1829 = vmatpush1.msra.mxu0 %v1202
    %1830 = vmatprep.subr.mxu0 %v1199
    %1831 = vmatpush1.msra.mxu0 %v1198
    %1832 = vmatprep.subr.mxu0 %v1195
    %1833 = vmatpush1.msra.mxu0 %v1194
    %1834 = vmatprep.subr.mxu0 %v1191
    %1835 = vmatpush1.msra.mxu0 %v1190
    %1836 = vmatprep.subr.mxu0 %v1187
    %1837 = vmatpush1.msra.mxu0 %v1186
    %1838 = vmatprep.subr.mxu0 %v1183
    %1839 = vmatpush1.msra.mxu0 %v1182
    %1840 = vmatprep.subr.mxu0 %v1179
    %1841 = vmatpush1.msra.mxu0 %v1178
    %1842 = vmatprep.subr.mxu0 %v1175
    %1843 = vmatpush1.msra.mxu0 %v1174
    %1844 = vmatprep.subr.mxu0 %v1171
    %1845 = vmatpush1.msra.mxu0 %v1170
    %1846 = vmatprep.subr.mxu0 %v1167
    %1847 = vmatpush1.msra.mxu0 %v1166
    %1848 = vmatprep.subr.mxu0 %v1163
    %1849 = vmatpush1.msra.mxu0 %v1162
    %1850 = vmatprep.subr.mxu0 %v1159
    %1851 = vmatpush1.msra.mxu0 %v1158
    %1852 = vmatprep.subr.mxu0 %v1155
    %1853 = vmatpush1.msra.mxu0 %v1154
    %1854 = vmatprep.subr.mxu0 0.0
    %1855 = vmatpush2.msra.mxu0 0.0
    %1856 = vmatprep.subr.mxu0 0.0
    %1857 = vmatpush2.msra.mxu0 0.0
    %1858 = vmatprep.subr.mxu0 0.0
    %1859 = vmatpush2.msra.mxu0 0.0
    %1860 = vmatprep.subr.mxu0 0.0
    %1861 = vmatpush2.msra.mxu0 0.0
    %1862 = vmatprep.subr.mxu0 0.0
    %1863 = vmatpush2.msra.mxu0 0.0
    %1864 = vmatprep.subr.mxu0 0.0
    %1865 = vmatpush2.msra.mxu0 0.0
    %1866 = vmatprep.subr.mxu0 0.0
    %1867 = vmatpush2.msra.mxu0 0.0
    %1868 = vmatprep.subr.mxu0 0.0
    %1869 = vmatpush2.msra.mxu0 0.0
    %1870 = vmatprep.subr.mxu0 0.0
    %1871 = vmatpush2.msra.mxu0 0.0
    %1872 = vmatprep.subr.mxu0 0.0
    %1873 = vmatpush2.msra.mxu0 0.0
    %1874 = vmatprep.subr.mxu0 0.0
    %1875 = vmatpush2.msra.mxu0 0.0
    %1876 = vmatprep.subr.mxu0 0.0
    %1877 = vmatpush2.msra.mxu0 0.0
    %1878 = vmatprep.subr.mxu0 0.0
    %1879 = vmatpush2.msra.mxu0 0.0
    %1880 = vmatprep.subr.mxu0 0.0
    %1881 = vmatpush2.msra.mxu0 0.0
    %1882 = vmatprep.subr.mxu0 0.0
    %1883 = vmatpush2.msra.mxu0 0.0
    %1884 = vmatprep.subr.mxu0 0.0
    %1885 = vmatpush2.msra.mxu0 0.0
    %1886 = vmatprep.mubr.f32.mxu0 0.0
    %1887 = vmatmul.mubr.f32.gmra.mxu0 %v1571
    %v1888 = vpop.f32.mrf.mxu0
    %v1889 = vadd.f32 0.0, %v1888
    %v1890 = vpop.f32.mrf.mxu0
    %v1891 = vadd.f32 0.0, %v1890
    %1892 = vdwg.mxu0
    %1893 = vmatprep.subr.mxu0 %v1217
    %1894 = vmatpush1.msra.mxu0 %v1216
    %1895 = vmatprep.subr.mxu0 %v1213
    %1896 = vmatpush1.msra.mxu0 %v1212
    %1897 = vmatprep.subr.mxu0 %v1209
    %1898 = vmatpush1.msra.mxu0 %v1208
    %1899 = vmatprep.subr.mxu0 %v1205
    %1900 = vmatpush1.msra.mxu0 %v1204
    %1901 = vmatprep.subr.mxu0 %v1201
    %1902 = vmatpush1.msra.mxu0 %v1200
    %1903 = vmatprep.subr.mxu0 %v1197
    %1904 = vmatpush1.msra.mxu0 %v1196
    %1905 = vmatprep.subr.mxu0 %v1193
    %1906 = vmatpush1.msra.mxu0 %v1192
    %1907 = vmatprep.subr.mxu0 %v1189
    %1908 = vmatpush1.msra.mxu0 %v1188
    %1909 = vmatprep.subr.mxu0 %v1185
    %1910 = vmatpush1.msra.mxu0 %v1184
    %1911 = vmatprep.subr.mxu0 %v1181
    %1912 = vmatpush1.msra.mxu0 %v1180
    %1913 = vmatprep.subr.mxu0 %v1177
    %1914 = vmatpush1.msra.mxu0 %v1176
    %1915 = vmatprep.subr.mxu0 %v1173
    %1916 = vmatpush1.msra.mxu0 %v1172
    %1917 = vmatprep.subr.mxu0 %v1169
    %1918 = vmatpush1.msra.mxu0 %v1168
    %1919 = vmatprep.subr.mxu0 %v1165
    %1920 = vmatpush1.msra.mxu0 %v1164
    %1921 = vmatprep.subr.mxu0 %v1161
    %1922 = vmatpush1.msra.mxu0 %v1160
    %1923 = vmatprep.subr.mxu0 %v1157
    %1924 = vmatpush1.msra.mxu0 %v1156
    %1925 = vmatprep.subr.mxu0 0.0
    %1926 = vmatpush2.msra.mxu0 0.0
    %1927 = vmatprep.subr.mxu0 0.0
    %1928 = vmatpush2.msra.mxu0 0.0
    %1929 = vmatprep.subr.mxu0 0.0
    %1930 = vmatpush2.msra.mxu0 0.0
    %1931 = vmatprep.subr.mxu0 0.0
    %1932 = vmatpush2.msra.mxu0 0.0
    %1933 = vmatprep.subr.mxu0 0.0
    %1934 = vmatpush2.msra.mxu0 0.0
    %1935 = vmatprep.subr.mxu0 0.0
    %1936 = vmatpush2.msra.mxu0 0.0
    %1937 = vmatprep.subr.mxu0 0.0
    %1938 = vmatpush2.msra.mxu0 0.0
    %1939 = vmatprep.subr.mxu0 0.0
    %1940 = vmatpush2.msra.mxu0 0.0
    %1941 = vmatprep.subr.mxu0 0.0
    %1942 = vmatpush2.msra.mxu0 0.0
    %1943 = vmatprep.subr.mxu0 0.0
    %1944 = vmatpush2.msra.mxu0 0.0
    %1945 = vmatprep.subr.mxu0 0.0
    %1946 = vmatpush2.msra.mxu0 0.0
    %1947 = vmatprep.subr.mxu0 0.0
    %1948 = vmatpush2.msra.mxu0 0.0
    %1949 = vmatprep.subr.mxu0 0.0
    %1950 = vmatpush2.msra.mxu0 0.0
    %1951 = vmatprep.subr.mxu0 0.0
    %1952 = vmatpush2.msra.mxu0 0.0
    %1953 = vmatprep.subr.mxu0 0.0
    %1954 = vmatpush2.msra.mxu0 0.0
    %1955 = vmatprep.subr.mxu0 0.0
    %1956 = vmatpush2.msra.mxu0 0.0
    %1957 = vmatprep.mubr.f32.mxu0 0.0
    %1958 = vmatmul.mubr.f32.gmra.mxu0 %v1571
    %v1959 = vpop.f32.mrf.mxu0
    %v1960 = vadd.f32 0.0, %v1959
    %v1961 = vpop.f32.mrf.mxu0
    %v1962 = vadd.f32 0.0, %v1961
    %1963 = vdwg.mxu0
    %v1964 = vadd.f32 %v1818, %v1889
    %v1965 = vadd.f32 %v1819, %v1891
    %v1966 = vadd.f32 %v1820, %v1960
    %v1967 = vadd.f32 %v1821, %v1962
    %v1968 = vxor.u32 %v1964, 2147483648
    %v1969 = vxor.u32 %v1965, 2147483648
    %v1970 = vxor.u32 %v1966, 2147483648
    %v1971 = vmul.f32 %v1968, 1.442695
    %v1972 = vpow.pop %v1971
    %v1973 = vmul.f32 %v1969, 1.442695
    %v1974 = vpow.pop %v1973
    %v1975 = vmul.f32 %v1970, 1.442695
    %v1976 = vpow.pop %v1975
    %v1977 = vadd.f32 %v1972, 1.0
    %v1978 = vadd.f32 %v1974, 1.0
    %v1979 = vadd.f32 %v1976, 1.0
    %v1980 = vrcp.pop %v1977
    %v1981 = vmul.f32 1.0, %v1980
    %v1982 = vrcp.pop %v1978
    %v1983 = vmul.f32 1.0, %v1982
    %v1984 = vrcp.pop %v1979
    %v1985 = vmul.f32 1.0, %v1984
    %v1986 = vtanh.pop %v1967
    %v1987 = vmul.f32 %v1983, %v1573
    %v1988 = vmul.f32 %v1981, %v1986
    %v1989 = vadd.f32 %v1987, %v1988
    %v1990 = vtanh.pop %v1989
    %v1991 = vmul.f32 %v1985, %v1990
    %v1992 = vmul.f32 %v1571, 0.1
    %v1993 = vmul.f32 %v1991, 0.9
    %v1994 = vadd.f32 %v1992, %v1993
    %v1995 = vmul.f32 %v1573, 0.1
    %v1996 = vmul.f32 %v1989, 0.9
    %v1997 = vadd.f32 %v1995, %v1996
    %1998 = vmatprep.subr.mxu0 %v1279
    %1999 = vmatpush1.msra.mxu0 %v1278
    %2000 = vmatprep.subr.mxu0 %v1275
    %2001 = vmatpush1.msra.mxu0 %v1274
    %2002 = vmatprep.subr.mxu0 %v1271
    %2003 = vmatpush1.msra.mxu0 %v1270
    %2004 = vmatprep.subr.mxu0 %v1267
    %2005 = vmatpush1.msra.mxu0 %v1266
    %2006 = vmatprep.subr.mxu0 %v1263
    %2007 = vmatpush1.msra.mxu0 %v1262
    %2008 = vmatprep.subr.mxu0 %v1259
    %2009 = vmatpush1.msra.mxu0 %v1258
    %2010 = vmatprep.subr.mxu0 %v1255
    %2011 = vmatpush1.msra.mxu0 %v1254
    %2012 = vmatprep.subr.mxu0 %v1251
    %2013 = vmatpush1.msra.mxu0 %v1250
    %2014 = vmatprep.subr.mxu0 %v1247
    %2015 = vmatpush1.msra.mxu0 %v1246
    %2016 = vmatprep.subr.mxu0 %v1243
    %2017 = vmatpush1.msra.mxu0 %v1242
    %2018 = vmatprep.subr.mxu0 %v1239
    %2019 = vmatpush1.msra.mxu0 %v1238
    %2020 = vmatprep.subr.mxu0 %v1235
    %2021 = vmatpush1.msra.mxu0 %v1234
    %2022 = vmatprep.subr.mxu0 %v1231
    %2023 = vmatpush1.msra.mxu0 %v1230
    %2024 = vmatprep.subr.mxu0 %v1227
    %2025 = vmatpush1.msra.mxu0 %v1226
    %2026 = vmatprep.subr.mxu0 %v1223
    %2027 = vmatpush1.msra.mxu0 %v1222
    %2028 = vmatprep.subr.mxu0 %v1219
    %2029 = vmatpush1.msra.mxu0 %v1218
    %2030 = vmatprep.subr.mxu0 %v1343
    %2031 = vmatpush2.msra.mxu0 %v1342
    %2032 = vmatprep.subr.mxu0 %v1339
    %2033 = vmatpush2.msra.mxu0 %v1338
    %2034 = vmatprep.subr.mxu0 %v1335
    %2035 = vmatpush2.msra.mxu0 %v1334
    %2036 = vmatprep.subr.mxu0 %v1331
    %2037 = vmatpush2.msra.mxu0 %v1330
    %2038 = vmatprep.subr.mxu0 %v1327
    %2039 = vmatpush2.msra.mxu0 %v1326
    %2040 = vmatprep.subr.mxu0 %v1323
    %2041 = vmatpush2.msra.mxu0 %v1322
    %2042 = vmatprep.subr.mxu0 %v1319
    %2043 = vmatpush2.msra.mxu0 %v1318
    %2044 = vmatprep.subr.mxu0 %v1315
    %2045 = vmatpush2.msra.mxu0 %v1314
    %2046 = vmatprep.subr.mxu0 %v1311
    %2047 = vmatpush2.msra.mxu0 %v1310
    %2048 = vmatprep.subr.mxu0 %v1307
    %2049 = vmatpush2.msra.mxu0 %v1306
    %2050 = vmatprep.subr.mxu0 %v1303
    %2051 = vmatpush2.msra.mxu0 %v1302
    %2052 = vmatprep.subr.mxu0 %v1299
    %2053 = vmatpush2.msra.mxu0 %v1298
    %2054 = vmatprep.subr.mxu0 %v1295
    %2055 = vmatpush2.msra.mxu0 %v1294
    %2056 = vmatprep.subr.mxu0 %v1291
    %2057 = vmatpush2.msra.mxu0 %v1290
    %2058 = vmatprep.subr.mxu0 %v1287
    %2059 = vmatpush2.msra.mxu0 %v1286
    %2060 = vmatprep.subr.mxu0 %v1283
    %2061 = vmatpush2.msra.mxu0 %v1282
    %2062 = vmatprep.mubr.f32.mxu0 %v1762
    %2063 = vmatmul.mubr.f32.gmra.mxu0 %v1994
    %v2064 = vpop.f32.mrf.mxu0
    %v2065 = vadd.f32 %v1578, %v2064
    %v2066 = vpop.f32.mrf.mxu0
    %v2067 = vadd.f32 %v1582, %v2066
    %2068 = vdwg.mxu0
    %2069 = vmatprep.subr.mxu0 %v1281
    %2070 = vmatpush1.msra.mxu0 %v1280
    %2071 = vmatprep.subr.mxu0 %v1277
    %2072 = vmatpush1.msra.mxu0 %v1276
    %2073 = vmatprep.subr.mxu0 %v1273
    %2074 = vmatpush1.msra.mxu0 %v1272
    %2075 = vmatprep.subr.mxu0 %v1269
    %2076 = vmatpush1.msra.mxu0 %v1268
    %2077 = vmatprep.subr.mxu0 %v1265
    %2078 = vmatpush1.msra.mxu0 %v1264
    %2079 = vmatprep.subr.mxu0 %v1261
    %2080 = vmatpush1.msra.mxu0 %v1260
    %2081 = vmatprep.subr.mxu0 %v1257
    %2082 = vmatpush1.msra.mxu0 %v1256
    %2083 = vmatprep.subr.mxu0 %v1253
    %2084 = vmatpush1.msra.mxu0 %v1252
    %2085 = vmatprep.subr.mxu0 %v1249
    %2086 = vmatpush1.msra.mxu0 %v1248
    %2087 = vmatprep.subr.mxu0 %v1245
    %2088 = vmatpush1.msra.mxu0 %v1244
    %2089 = vmatprep.subr.mxu0 %v1241
    %2090 = vmatpush1.msra.mxu0 %v1240
    %2091 = vmatprep.subr.mxu0 %v1237
    %2092 = vmatpush1.msra.mxu0 %v1236
    %2093 = vmatprep.subr.mxu0 %v1233
    %2094 = vmatpush1.msra.mxu0 %v1232
    %2095 = vmatprep.subr.mxu0 %v1229
    %2096 = vmatpush1.msra.mxu0 %v1228
    %2097 = vmatprep.subr.mxu0 %v1225
    %2098 = vmatpush1.msra.mxu0 %v1224
    %2099 = vmatprep.subr.mxu0 %v1221
    %2100 = vmatpush1.msra.mxu0 %v1220
    %2101 = vmatprep.subr.mxu0 %v1345
    %2102 = vmatpush2.msra.mxu0 %v1344
    %2103 = vmatprep.subr.mxu0 %v1341
    %2104 = vmatpush2.msra.mxu0 %v1340
    %2105 = vmatprep.subr.mxu0 %v1337
    %2106 = vmatpush2.msra.mxu0 %v1336
    %2107 = vmatprep.subr.mxu0 %v1333
    %2108 = vmatpush2.msra.mxu0 %v1332
    %2109 = vmatprep.subr.mxu0 %v1329
    %2110 = vmatpush2.msra.mxu0 %v1328
    %2111 = vmatprep.subr.mxu0 %v1325
    %2112 = vmatpush2.msra.mxu0 %v1324
    %2113 = vmatprep.subr.mxu0 %v1321
    %2114 = vmatpush2.msra.mxu0 %v1320
    %2115 = vmatprep.subr.mxu0 %v1317
    %2116 = vmatpush2.msra.mxu0 %v1316
    %2117 = vmatprep.subr.mxu0 %v1313
    %2118 = vmatpush2.msra.mxu0 %v1312
    %2119 = vmatprep.subr.mxu0 %v1309
    %2120 = vmatpush2.msra.mxu0 %v1308
    %2121 = vmatprep.subr.mxu0 %v1305
    %2122 = vmatpush2.msra.mxu0 %v1304
    %2123 = vmatprep.subr.mxu0 %v1301
    %2124 = vmatpush2.msra.mxu0 %v1300
    %2125 = vmatprep.subr.mxu0 %v1297
    %2126 = vmatpush2.msra.mxu0 %v1296
    %2127 = vmatprep.subr.mxu0 %v1293
    %2128 = vmatpush2.msra.mxu0 %v1292
    %2129 = vmatprep.subr.mxu0 %v1289
    %2130 = vmatpush2.msra.mxu0 %v1288
    %2131 = vmatprep.subr.mxu0 %v1285
    %2132 = vmatpush2.msra.mxu0 %v1284
    %2133 = vmatprep.mubr.f32.mxu0 %v1762
    %2134 = vmatmul.mubr.f32.gmra.mxu0 %v1994
    %v2135 = vpop.f32.mrf.mxu0
    %v2136 = vadd.f32 %v1586, %v2135
    %v2137 = vpop.f32.mrf.mxu0
    %v2138 = vadd.f32 %v1590, %v2137
    %2139 = vdwg.mxu0
    %v2140 = vxor.u32 %v2065, 2147483648
    %v2141 = vxor.u32 %v2067, 2147483648
    %v2142 = vxor.u32 %v2136, 2147483648
    %v2143 = vmul.f32 %v2140, 1.442695
    %v2144 = vpow.pop %v2143
    %v2145 = vmul.f32 %v2141, 1.442695
    %v2146 = vpow.pop %v2145
    %v2147 = vmul.f32 %v2142, 1.442695
    %v2148 = vpow.pop %v2147
    %v2149 = vadd.f32 %v2144, 1.0
    %v2150 = vadd.f32 %v2146, 1.0
    %v2151 = vadd.f32 %v2148, 1.0
    %v2152 = vrcp.pop %v2149
    %v2153 = vmul.f32 1.0, %v2152
    %v2154 = vrcp.pop %v2150
    %v2155 = vmul.f32 1.0, %v2154
    %v2156 = vrcp.pop %v2151
    %v2157 = vmul.f32 1.0, %v2156
    %v2158 = vtanh.pop %v2138
    %v2159 = vmul.f32 %v2155, %v1764
    %v2160 = vmul.f32 %v2153, %v2158
    %v2161 = vadd.f32 %v2159, %v2160
    %v2162 = vtanh.pop %v2161
    %v2163 = vmul.f32 %v2157, %v2162
    %v2164 = vmul.f32 %v1762, 0.1
    %v2165 = vmul.f32 %v2163, 0.9
    %v2166 = vadd.f32 %v2164, %v2165
    %v2167 = vmul.f32 %v1764, 0.1
    %v2168 = vmul.f32 %v2161, 0.9
    %v2169 = vadd.f32 %v2167, %v2168
    %v2170 = vmul.f32 %v2166, %v1769
    %v2171 = vsel %vm1772, %v2170, 0.0
    %2172 = vadd.xlane.f32.xlu0 %v2171
    %v2173 = vpop.xlane.xlu0 %2172
    %v2174 = vadd.f32 %v2173, %v1813
    %v2175 = vadd.f32 %v2174, %v1781
    %vm2176 = vcmp.eq.s32.totalorder %v1350, 1
    %v2177 = vsel %vm2176, 1, 0
    %v2178 = vcvt.s32.f32 %v2177
    %2180 = vset.pattern.permute.xlu0 0
    %2181 = vperm.xlu0 %2180, %v2175
    %v2182 = vpop.permute.xlu0 %2181
    %v2184 = vmul.f32 %v2182, %v2178
    %v2185 = vadd.f32 %v1793, %v2184
    %v2186 = vrot.slane %v1053, 2
    %v2187 = vrot.slane %v1055, 2
    %v2188 = vrot.slane %v1130, 2
    %v2189 = vrot.slane %v1132, 2
    %v2194 = vrot.slane %v1059, 1
    %v2195 = vrot.slane %v1061, 1
    %v2196 = vrot.slane %v1136, 1
    %v2197 = vrot.slane %v1138, 1
    %v2202 = vsel %vm179, %v2186, %v2194
    %v2203 = vsel %vm179, %v2187, %v2195
    %v2204 = vsel %vm179, %v2188, %v2196
    %v2205 = vsel %vm179, %v2189, %v2197
    %v2206 = vrot.slane %v1150, 2
    %v2208 = vrot.slane %v1152, 1
    %v2210 = vsel %vm179, %v2206, %v2208
    %v2211 = vmul.f32 %v2182, %v1375
    %v2212 = vmul.f32 %v2182, %v1379
    %v2213 = vmul.f32 %v2182, %v1383
    %v2214 = vmul.f32 %v2182, %v1387
    %v2215 = vadd.f32 %v2202, %v2211
    %v2216 = vadd.f32 %v2203, %v2212
    %v2217 = vadd.f32 %v2204, %v2213
    %v2218 = vadd.f32 %v2205, %v2214
    %2219 = vmatprep.subr.mxu0 %v1215
    %2220 = vmatpush1.msra.mxu0 %v1214
    %2221 = vmatprep.subr.mxu0 %v1211
    %2222 = vmatpush1.msra.mxu0 %v1210
    %2223 = vmatprep.subr.mxu0 %v1207
    %2224 = vmatpush1.msra.mxu0 %v1206
    %2225 = vmatprep.subr.mxu0 %v1203
    %2226 = vmatpush1.msra.mxu0 %v1202
    %2227 = vmatprep.subr.mxu0 %v1199
    %2228 = vmatpush1.msra.mxu0 %v1198
    %2229 = vmatprep.subr.mxu0 %v1195
    %2230 = vmatpush1.msra.mxu0 %v1194
    %2231 = vmatprep.subr.mxu0 %v1191
    %2232 = vmatpush1.msra.mxu0 %v1190
    %2233 = vmatprep.subr.mxu0 %v1187
    %2234 = vmatpush1.msra.mxu0 %v1186
    %2235 = vmatprep.subr.mxu0 %v1183
    %2236 = vmatpush1.msra.mxu0 %v1182
    %2237 = vmatprep.subr.mxu0 %v1179
    %2238 = vmatpush1.msra.mxu0 %v1178
    %2239 = vmatprep.subr.mxu0 %v1175
    %2240 = vmatpush1.msra.mxu0 %v1174
    %2241 = vmatprep.subr.mxu0 %v1171
    %2242 = vmatpush1.msra.mxu0 %v1170
    %2243 = vmatprep.subr.mxu0 %v1167
    %2244 = vmatpush1.msra.mxu0 %v1166
    %2245 = vmatprep.subr.mxu0 %v1163
    %2246 = vmatpush1.msra.mxu0 %v1162
    %2247 = vmatprep.subr.mxu0 %v1159
    %2248 = vmatpush1.msra.mxu0 %v1158
    %2249 = vmatprep.subr.mxu0 %v1155
    %2250 = vmatpush1.msra.mxu0 %v1154
    %2251 = vmatprep.subr.mxu0 0.0
    %2252 = vmatpush2.msra.mxu0 0.0
    %2253 = vmatprep.subr.mxu0 0.0
    %2254 = vmatpush2.msra.mxu0 0.0
    %2255 = vmatprep.subr.mxu0 0.0
    %2256 = vmatpush2.msra.mxu0 0.0
    %2257 = vmatprep.subr.mxu0 0.0
    %2258 = vmatpush2.msra.mxu0 0.0
    %2259 = vmatprep.subr.mxu0 0.0
    %2260 = vmatpush2.msra.mxu0 0.0
    %2261 = vmatprep.subr.mxu0 0.0
    %2262 = vmatpush2.msra.mxu0 0.0
    %2263 = vmatprep.subr.mxu0 0.0
    %2264 = vmatpush2.msra.mxu0 0.0
    %2265 = vmatprep.subr.mxu0 0.0
    %2266 = vmatpush2.msra.mxu0 0.0
    %2267 = vmatprep.subr.mxu0 0.0
    %2268 = vmatpush2.msra.mxu0 0.0
    %2269 = vmatprep.subr.mxu0 0.0
    %2270 = vmatpush2.msra.mxu0 0.0
    %2271 = vmatprep.subr.mxu0 0.0
    %2272 = vmatpush2.msra.mxu0 0.0
    %2273 = vmatprep.subr.mxu0 0.0
    %2274 = vmatpush2.msra.mxu0 0.0
    %2275 = vmatprep.subr.mxu0 0.0
    %2276 = vmatpush2.msra.mxu0 0.0
    %2277 = vmatprep.subr.mxu0 0.0
    %2278 = vmatpush2.msra.mxu0 0.0
    %2279 = vmatprep.subr.mxu0 0.0
    %2280 = vmatpush2.msra.mxu0 0.0
    %2281 = vmatprep.subr.mxu0 0.0
    %2282 = vmatpush2.msra.mxu0 0.0
    %2283 = vmatprep.mubr.f32.mxu0 0.0
    %2284 = vmatmul.mubr.f32.gmra.mxu0 %v1994
    %v2285 = vpop.f32.mrf.mxu0
    %v2286 = vadd.f32 0.0, %v2285
    %v2287 = vpop.f32.mrf.mxu0
    %v2288 = vadd.f32 0.0, %v2287
    %2289 = vdwg.mxu0
    %2290 = vmatprep.subr.mxu0 %v1217
    %2291 = vmatpush1.msra.mxu0 %v1216
    %2292 = vmatprep.subr.mxu0 %v1213
    %2293 = vmatpush1.msra.mxu0 %v1212
    %2294 = vmatprep.subr.mxu0 %v1209
    %2295 = vmatpush1.msra.mxu0 %v1208
    %2296 = vmatprep.subr.mxu0 %v1205
    %2297 = vmatpush1.msra.mxu0 %v1204
    %2298 = vmatprep.subr.mxu0 %v1201
    %2299 = vmatpush1.msra.mxu0 %v1200
    %2300 = vmatprep.subr.mxu0 %v1197
    %2301 = vmatpush1.msra.mxu0 %v1196
    %2302 = vmatprep.subr.mxu0 %v1193
    %2303 = vmatpush1.msra.mxu0 %v1192
    %2304 = vmatprep.subr.mxu0 %v1189
    %2305 = vmatpush1.msra.mxu0 %v1188
    %2306 = vmatprep.subr.mxu0 %v1185
    %2307 = vmatpush1.msra.mxu0 %v1184
    %2308 = vmatprep.subr.mxu0 %v1181
    %2309 = vmatpush1.msra.mxu0 %v1180
    %2310 = vmatprep.subr.mxu0 %v1177
    %2311 = vmatpush1.msra.mxu0 %v1176
    %2312 = vmatprep.subr.mxu0 %v1173
    %2313 = vmatpush1.msra.mxu0 %v1172
    %2314 = vmatprep.subr.mxu0 %v1169
    %2315 = vmatpush1.msra.mxu0 %v1168
    %2316 = vmatprep.subr.mxu0 %v1165
    %2317 = vmatpush1.msra.mxu0 %v1164
    %2318 = vmatprep.subr.mxu0 %v1161
    %2319 = vmatpush1.msra.mxu0 %v1160
    %2320 = vmatprep.subr.mxu0 %v1157
    %2321 = vmatpush1.msra.mxu0 %v1156
    %2322 = vmatprep.subr.mxu0 0.0
    %2323 = vmatpush2.msra.mxu0 0.0
    %2324 = vmatprep.subr.mxu0 0.0
    %2325 = vmatpush2.msra.mxu0 0.0
    %2326 = vmatprep.subr.mxu0 0.0
    %2327 = vmatpush2.msra.mxu0 0.0
    %2328 = vmatprep.subr.mxu0 0.0
    %2329 = vmatpush2.msra.mxu0 0.0
    %2330 = vmatprep.subr.mxu0 0.0
    %2331 = vmatpush2.msra.mxu0 0.0
    %2332 = vmatprep.subr.mxu0 0.0
    %2333 = vmatpush2.msra.mxu0 0.0
    %2334 = vmatprep.subr.mxu0 0.0
    %2335 = vmatpush2.msra.mxu0 0.0
    %2336 = vmatprep.subr.mxu0 0.0
    %2337 = vmatpush2.msra.mxu0 0.0
    %2338 = vmatprep.subr.mxu0 0.0
    %2339 = vmatpush2.msra.mxu0 0.0
    %2340 = vmatprep.subr.mxu0 0.0
    %2341 = vmatpush2.msra.mxu0 0.0
    %2342 = vmatprep.subr.mxu0 0.0
    %2343 = vmatpush2.msra.mxu0 0.0
    %2344 = vmatprep.subr.mxu0 0.0
    %2345 = vmatpush2.msra.mxu0 0.0
    %2346 = vmatprep.subr.mxu0 0.0
    %2347 = vmatpush2.msra.mxu0 0.0
    %2348 = vmatprep.subr.mxu0 0.0
    %2349 = vmatpush2.msra.mxu0 0.0
    %2350 = vmatprep.subr.mxu0 0.0
    %2351 = vmatpush2.msra.mxu0 0.0
    %2352 = vmatprep.subr.mxu0 0.0
    %2353 = vmatpush2.msra.mxu0 0.0
    %2354 = vmatprep.mubr.f32.mxu0 0.0
    %2355 = vmatmul.mubr.f32.gmra.mxu0 %v1994
    %v2356 = vpop.f32.mrf.mxu0
    %v2357 = vadd.f32 0.0, %v2356
    %v2358 = vpop.f32.mrf.mxu0
    %v2359 = vadd.f32 0.0, %v2358
    %2360 = vdwg.mxu0
    %v2361 = vadd.f32 %v2215, %v2286
    %v2362 = vadd.f32 %v2216, %v2288
    %v2363 = vadd.f32 %v2217, %v2357
    %v2364 = vadd.f32 %v2218, %v2359
    %v2365 = vxor.u32 %v2361, 2147483648
    %v2366 = vxor.u32 %v2362, 2147483648
    %v2367 = vxor.u32 %v2363, 2147483648
    %v2368 = vmul.f32 %v2365, 1.442695
    %v2369 = vpow.pop %v2368
    %v2370 = vmul.f32 %v2366, 1.442695
    %v2371 = vpow.pop %v2370
    %v2372 = vmul.f32 %v2367, 1.442695
    %v2373 = vpow.pop %v2372
    %v2374 = vadd.f32 %v2369, 1.0
    %v2375 = vadd.f32 %v2371, 1.0
    %v2376 = vadd.f32 %v2373, 1.0
    %v2377 = vrcp.pop %v2374
    %v2378 = vmul.f32 1.0, %v2377
    %v2379 = vrcp.pop %v2375
    %v2380 = vmul.f32 1.0, %v2379
    %v2381 = vrcp.pop %v2376
    %v2382 = vmul.f32 1.0, %v2381
    %v2383 = vtanh.pop %v2364
    %v2384 = vmul.f32 %v2380, %v1997
    %v2385 = vmul.f32 %v2378, %v2383
    %v2386 = vadd.f32 %v2384, %v2385
    %v2387 = vtanh.pop %v2386
    %v2388 = vmul.f32 %v2382, %v2387
    %v2389 = vmul.f32 %v1994, 0.1
    %v2390 = vmul.f32 %v2388, 0.9
    %v2391 = vadd.f32 %v2389, %v2390
    %v2392 = vmul.f32 %v1997, 0.1
    %v2393 = vmul.f32 %v2386, 0.9
    %v2394 = vadd.f32 %v2392, %v2393
    %2395 = vmatprep.subr.mxu0 %v1279
    %2396 = vmatpush1.msra.mxu0 %v1278
    %2397 = vmatprep.subr.mxu0 %v1275
    %2398 = vmatpush1.msra.mxu0 %v1274
    %2399 = vmatprep.subr.mxu0 %v1271
    %2400 = vmatpush1.msra.mxu0 %v1270
    %2401 = vmatprep.subr.mxu0 %v1267
    %2402 = vmatpush1.msra.mxu0 %v1266
    %2403 = vmatprep.subr.mxu0 %v1263
    %2404 = vmatpush1.msra.mxu0 %v1262
    %2405 = vmatprep.subr.mxu0 %v1259
    %2406 = vmatpush1.msra.mxu0 %v1258
    %2407 = vmatprep.subr.mxu0 %v1255
    %2408 = vmatpush1.msra.mxu0 %v1254
    %2409 = vmatprep.subr.mxu0 %v1251
    %2410 = vmatpush1.msra.mxu0 %v1250
    %2411 = vmatprep.subr.mxu0 %v1247
    %2412 = vmatpush1.msra.mxu0 %v1246
    %2413 = vmatprep.subr.mxu0 %v1243
    %2414 = vmatpush1.msra.mxu0 %v1242
    %2415 = vmatprep.subr.mxu0 %v1239
    %2416 = vmatpush1.msra.mxu0 %v1238
    %2417 = vmatprep.subr.mxu0 %v1235
    %2418 = vmatpush1.msra.mxu0 %v1234
    %2419 = vmatprep.subr.mxu0 %v1231
    %2420 = vmatpush1.msra.mxu0 %v1230
    %2421 = vmatprep.subr.mxu0 %v1227
    %2422 = vmatpush1.msra.mxu0 %v1226
    %2423 = vmatprep.subr.mxu0 %v1223
    %2424 = vmatpush1.msra.mxu0 %v1222
    %2425 = vmatprep.subr.mxu0 %v1219
    %2426 = vmatpush1.msra.mxu0 %v1218
    %2427 = vmatprep.subr.mxu0 %v1343
    %2428 = vmatpush2.msra.mxu0 %v1342
    %2429 = vmatprep.subr.mxu0 %v1339
    %2430 = vmatpush2.msra.mxu0 %v1338
    %2431 = vmatprep.subr.mxu0 %v1335
    %2432 = vmatpush2.msra.mxu0 %v1334
    %2433 = vmatprep.subr.mxu0 %v1331
    %2434 = vmatpush2.msra.mxu0 %v1330
    %2435 = vmatprep.subr.mxu0 %v1327
    %2436 = vmatpush2.msra.mxu0 %v1326
    %2437 = vmatprep.subr.mxu0 %v1323
    %2438 = vmatpush2.msra.mxu0 %v1322
    %2439 = vmatprep.subr.mxu0 %v1319
    %2440 = vmatpush2.msra.mxu0 %v1318
    %2441 = vmatprep.subr.mxu0 %v1315
    %2442 = vmatpush2.msra.mxu0 %v1314
    %2443 = vmatprep.subr.mxu0 %v1311
    %2444 = vmatpush2.msra.mxu0 %v1310
    %2445 = vmatprep.subr.mxu0 %v1307
    %2446 = vmatpush2.msra.mxu0 %v1306
    %2447 = vmatprep.subr.mxu0 %v1303
    %2448 = vmatpush2.msra.mxu0 %v1302
    %2449 = vmatprep.subr.mxu0 %v1299
    %2450 = vmatpush2.msra.mxu0 %v1298
    %2451 = vmatprep.subr.mxu0 %v1295
    %2452 = vmatpush2.msra.mxu0 %v1294
    %2453 = vmatprep.subr.mxu0 %v1291
    %2454 = vmatpush2.msra.mxu0 %v1290
    %2455 = vmatprep.subr.mxu0 %v1287
    %2456 = vmatpush2.msra.mxu0 %v1286
    %2457 = vmatprep.subr.mxu0 %v1283
    %2458 = vmatpush2.msra.mxu0 %v1282
    %2459 = vmatprep.mubr.f32.mxu0 %v2166
    %2460 = vmatmul.mubr.f32.gmra.mxu0 %v2391
    %v2461 = vpop.f32.mrf.mxu0
    %v2462 = vadd.f32 %v1578, %v2461
    %v2463 = vpop.f32.mrf.mxu0
    %v2464 = vadd.f32 %v1582, %v2463
    %2465 = vdwg.mxu0
    %2466 = vmatprep.subr.mxu0 %v1281
    %2467 = vmatpush1.msra.mxu0 %v1280
    %2468 = vmatprep.subr.mxu0 %v1277
    %2469 = vmatpush1.msra.mxu0 %v1276
    %2470 = vmatprep.subr.mxu0 %v1273
    %2471 = vmatpush1.msra.mxu0 %v1272
    %2472 = vmatprep.subr.mxu0 %v1269
    %2473 = vmatpush1.msra.mxu0 %v1268
    %2474 = vmatprep.subr.mxu0 %v1265
    %2475 = vmatpush1.msra.mxu0 %v1264
    %2476 = vmatprep.subr.mxu0 %v1261
    %2477 = vmatpush1.msra.mxu0 %v1260
    %2478 = vmatprep.subr.mxu0 %v1257
    %2479 = vmatpush1.msra.mxu0 %v1256
    %2480 = vmatprep.subr.mxu0 %v1253
    %2481 = vmatpush1.msra.mxu0 %v1252
    %2482 = vmatprep.subr.mxu0 %v1249
    %2483 = vmatpush1.msra.mxu0 %v1248
    %2484 = vmatprep.subr.mxu0 %v1245
    %2485 = vmatpush1.msra.mxu0 %v1244
    %2486 = vmatprep.subr.mxu0 %v1241
    %2487 = vmatpush1.msra.mxu0 %v1240
    %2488 = vmatprep.subr.mxu0 %v1237
    %2489 = vmatpush1.msra.mxu0 %v1236
    %2490 = vmatprep.subr.mxu0 %v1233
    %2491 = vmatpush1.msra.mxu0 %v1232
    %2492 = vmatprep.subr.mxu0 %v1229
    %2493 = vmatpush1.msra.mxu0 %v1228
    %2494 = vmatprep.subr.mxu0 %v1225
    %2495 = vmatpush1.msra.mxu0 %v1224
    %2496 = vmatprep.subr.mxu0 %v1221
    %2497 = vmatpush1.msra.mxu0 %v1220
    %2498 = vmatprep.subr.mxu0 %v1345
    %2499 = vmatpush2.msra.mxu0 %v1344
    %2500 = vmatprep.subr.mxu0 %v1341
    %2501 = vmatpush2.msra.mxu0 %v1340
    %2502 = vmatprep.subr.mxu0 %v1337
    %2503 = vmatpush2.msra.mxu0 %v1336
    %2504 = vmatprep.subr.mxu0 %v1333
    %2505 = vmatpush2.msra.mxu0 %v1332
    %2506 = vmatprep.subr.mxu0 %v1329
    %2507 = vmatpush2.msra.mxu0 %v1328
    %2508 = vmatprep.subr.mxu0 %v1325
    %2509 = vmatpush2.msra.mxu0 %v1324
    %2510 = vmatprep.subr.mxu0 %v1321
    %2511 = vmatpush2.msra.mxu0 %v1320
    %2512 = vmatprep.subr.mxu0 %v1317
    %2513 = vmatpush2.msra.mxu0 %v1316
    %2514 = vmatprep.subr.mxu0 %v1313
    %2515 = vmatpush2.msra.mxu0 %v1312
    %2516 = vmatprep.subr.mxu0 %v1309
    %2517 = vmatpush2.msra.mxu0 %v1308
    %2518 = vmatprep.subr.mxu0 %v1305
    %2519 = vmatpush2.msra.mxu0 %v1304
    %2520 = vmatprep.subr.mxu0 %v1301
    %2521 = vmatpush2.msra.mxu0 %v1300
    %2522 = vmatprep.subr.mxu0 %v1297
    %2523 = vmatpush2.msra.mxu0 %v1296
    %2524 = vmatprep.subr.mxu0 %v1293
    %2525 = vmatpush2.msra.mxu0 %v1292
    %2526 = vmatprep.subr.mxu0 %v1289
    %2527 = vmatpush2.msra.mxu0 %v1288
    %2528 = vmatprep.subr.mxu0 %v1285
    %2529 = vmatpush2.msra.mxu0 %v1284
    %2530 = vmatprep.mubr.f32.mxu0 %v2166
    %2531 = vmatmul.mubr.f32.gmra.mxu0 %v2391
    %v2532 = vpop.f32.mrf.mxu0
    %v2533 = vadd.f32 %v1586, %v2532
    %v2534 = vpop.f32.mrf.mxu0
    %v2535 = vadd.f32 %v1590, %v2534
    %2536 = vdwg.mxu0
    %v2537 = vxor.u32 %v2462, 2147483648
    %v2538 = vxor.u32 %v2464, 2147483648
    %v2539 = vxor.u32 %v2533, 2147483648
    %v2540 = vmul.f32 %v2537, 1.442695
    %v2541 = vpow.pop %v2540
    %v2542 = vmul.f32 %v2538, 1.442695
    %v2543 = vpow.pop %v2542
    %v2544 = vmul.f32 %v2539, 1.442695
    %v2545 = vpow.pop %v2544
    %v2546 = vadd.f32 %v2541, 1.0
    %v2547 = vadd.f32 %v2543, 1.0
    %v2548 = vadd.f32 %v2545, 1.0
    %v2549 = vrcp.pop %v2546
    %v2550 = vmul.f32 1.0, %v2549
    %v2551 = vrcp.pop %v2547
    %v2552 = vmul.f32 1.0, %v2551
    %v2553 = vrcp.pop %v2548
    %v2554 = vmul.f32 1.0, %v2553
    %v2555 = vtanh.pop %v2535
    %v2556 = vmul.f32 %v2552, %v2169
    %v2557 = vmul.f32 %v2550, %v2555
    %v2558 = vadd.f32 %v2556, %v2557
    %v2559 = vtanh.pop %v2558
    %v2560 = vmul.f32 %v2554, %v2559
    %v2561 = vmul.f32 %v2166, 0.1
    %v2562 = vmul.f32 %v2560, 0.9
    %v2563 = vadd.f32 %v2561, %v2562
    %v2564 = vmul.f32 %v2169, 0.1
    %v2565 = vmul.f32 %v2558, 0.9
    %v2566 = vadd.f32 %v2564, %v2565
    %v2567 = vmul.f32 %v2563, %v1769
    %v2568 = vsel %vm1772, %v2567, 0.0
    %2569 = vadd.xlane.f32.xlu0 %v2568
    %v2570 = vpop.xlane.xlu0 %2569
    %v2571 = vadd.f32 %v2570, %v2210
    %v2572 = vadd.f32 %v2571, %v1781
    %vm2573 = vcmp.eq.s32.totalorder %v1350, 2
    %v2574 = vsel %vm2573, 1, 0
    %v2575 = vcvt.s32.f32 %v2574
    %2577 = vset.pattern.permute.xlu0 0
    %2578 = vperm.xlu0 %2577, %v2572
    %v2579 = vpop.permute.xlu0 %2578
    %v2581 = vmul.f32 %v2579, %v2575
    %v2582 = vadd.f32 %v2185, %v2581
    %v2583 = vrot.slane %v1053, 3
    %v2584 = vrot.slane %v1055, 3
    %v2585 = vrot.slane %v1130, 3
    %v2586 = vrot.slane %v1132, 3
    %v2591 = vrot.slane %v1059, 2
    %v2592 = vrot.slane %v1061, 2
    %v2593 = vrot.slane %v1136, 2
    %v2594 = vrot.slane %v1138, 2
    %v2599 = vsel %vm179, %v2583, %v2591
    %v2600 = vsel %vm179, %v2584, %v2592
    %v2601 = vsel %vm179, %v2585, %v2593
    %v2602 = vsel %vm179, %v2586, %v2594
    %v2603 = vrot.slane %v1150, 3
    %v2605 = vrot.slane %v1152, 2
    %v2607 = vsel %vm179, %v2603, %v2605
    %v2608 = vmul.f32 %v2579, %v1375
    %v2609 = vmul.f32 %v2579, %v1379
    %v2610 = vmul.f32 %v2579, %v1383
    %v2611 = vmul.f32 %v2579, %v1387
    %v2612 = vadd.f32 %v2599, %v2608
    %v2613 = vadd.f32 %v2600, %v2609
    %v2614 = vadd.f32 %v2601, %v2610
    %v2615 = vadd.f32 %v2602, %v2611
    %2616 = vmatprep.subr.mxu0 %v1215
    %2617 = vmatpush1.msra.mxu0 %v1214
    %2618 = vmatprep.subr.mxu0 %v1211
    %2619 = vmatpush1.msra.mxu0 %v1210
    %2620 = vmatprep.subr.mxu0 %v1207
    %2621 = vmatpush1.msra.mxu0 %v1206
    %2622 = vmatprep.subr.mxu0 %v1203
    %2623 = vmatpush1.msra.mxu0 %v1202
    %2624 = vmatprep.subr.mxu0 %v1199
    %2625 = vmatpush1.msra.mxu0 %v1198
    %2626 = vmatprep.subr.mxu0 %v1195
    %2627 = vmatpush1.msra.mxu0 %v1194
    %2628 = vmatprep.subr.mxu0 %v1191
    %2629 = vmatpush1.msra.mxu0 %v1190
    %2630 = vmatprep.subr.mxu0 %v1187
    %2631 = vmatpush1.msra.mxu0 %v1186
    %2632 = vmatprep.subr.mxu0 %v1183
    %2633 = vmatpush1.msra.mxu0 %v1182
    %2634 = vmatprep.subr.mxu0 %v1179
    %2635 = vmatpush1.msra.mxu0 %v1178
    %2636 = vmatprep.subr.mxu0 %v1175
    %2637 = vmatpush1.msra.mxu0 %v1174
    %2638 = vmatprep.subr.mxu0 %v1171
    %2639 = vmatpush1.msra.mxu0 %v1170
    %2640 = vmatprep.subr.mxu0 %v1167
    %2641 = vmatpush1.msra.mxu0 %v1166
    %2642 = vmatprep.subr.mxu0 %v1163
    %2643 = vmatpush1.msra.mxu0 %v1162
    %2644 = vmatprep.subr.mxu0 %v1159
    %2645 = vmatpush1.msra.mxu0 %v1158
    %2646 = vmatprep.subr.mxu0 %v1155
    %2647 = vmatpush1.msra.mxu0 %v1154
    %2648 = vmatprep.subr.mxu0 0.0
    %2649 = vmatpush2.msra.mxu0 0.0
    %2650 = vmatprep.subr.mxu0 0.0
    %2651 = vmatpush2.msra.mxu0 0.0
    %2652 = vmatprep.subr.mxu0 0.0
    %2653 = vmatpush2.msra.mxu0 0.0
    %2654 = vmatprep.subr.mxu0 0.0
    %2655 = vmatpush2.msra.mxu0 0.0
    %2656 = vmatprep.subr.mxu0 0.0
    %2657 = vmatpush2.msra.mxu0 0.0
    %2658 = vmatprep.subr.mxu0 0.0
    %2659 = vmatpush2.msra.mxu0 0.0
    %2660 = vmatprep.subr.mxu0 0.0
    %2661 = vmatpush2.msra.mxu0 0.0
    %2662 = vmatprep.subr.mxu0 0.0
    %2663 = vmatpush2.msra.mxu0 0.0
    %2664 = vmatprep.subr.mxu0 0.0
    %2665 = vmatpush2.msra.mxu0 0.0
    %2666 = vmatprep.subr.mxu0 0.0
    %2667 = vmatpush2.msra.mxu0 0.0
    %2668 = vmatprep.subr.mxu0 0.0
    %2669 = vmatpush2.msra.mxu0 0.0
    %2670 = vmatprep.subr.mxu0 0.0
    %2671 = vmatpush2.msra.mxu0 0.0
    %2672 = vmatprep.subr.mxu0 0.0
    %2673 = vmatpush2.msra.mxu0 0.0
    %2674 = vmatprep.subr.mxu0 0.0
    %2675 = vmatpush2.msra.mxu0 0.0
    %2676 = vmatprep.subr.mxu0 0.0
    %2677 = vmatpush2.msra.mxu0 0.0
    %2678 = vmatprep.subr.mxu0 0.0
    %2679 = vmatpush2.msra.mxu0 0.0
    %2680 = vmatprep.mubr.f32.mxu0 0.0
    %2681 = vmatmul.mubr.f32.gmra.mxu0 %v2391
    %v2682 = vpop.f32.mrf.mxu0
    %v2683 = vadd.f32 0.0, %v2682
    %v2684 = vpop.f32.mrf.mxu0
    %v2685 = vadd.f32 0.0, %v2684
    %2686 = vdwg.mxu0
    %2687 = vmatprep.subr.mxu0 %v1217
    %2688 = vmatpush1.msra.mxu0 %v1216
    %2689 = vmatprep.subr.mxu0 %v1213
    %2690 = vmatpush1.msra.mxu0 %v1212
    %2691 = vmatprep.subr.mxu0 %v1209
    %2692 = vmatpush1.msra.mxu0 %v1208
    %2693 = vmatprep.subr.mxu0 %v1205
    %2694 = vmatpush1.msra.mxu0 %v1204
    %2695 = vmatprep.subr.mxu0 %v1201
    %2696 = vmatpush1.msra.mxu0 %v1200
    %2697 = vmatprep.subr.mxu0 %v1197
    %2698 = vmatpush1.msra.mxu0 %v1196
    %2699 = vmatprep.subr.mxu0 %v1193
    %2700 = vmatpush1.msra.mxu0 %v1192
    %2701 = vmatprep.subr.mxu0 %v1189
    %2702 = vmatpush1.msra.mxu0 %v1188
    %2703 = vmatprep.subr.mxu0 %v1185
    %2704 = vmatpush1.msra.mxu0 %v1184
    %2705 = vmatprep.subr.mxu0 %v1181
    %2706 = vmatpush1.msra.mxu0 %v1180
    %2707 = vmatprep.subr.mxu0 %v1177
    %2708 = vmatpush1.msra.mxu0 %v1176
    %2709 = vmatprep.subr.mxu0 %v1173
    %2710 = vmatpush1.msra.mxu0 %v1172
    %2711 = vmatprep.subr.mxu0 %v1169
    %2712 = vmatpush1.msra.mxu0 %v1168
    %2713 = vmatprep.subr.mxu0 %v1165
    %2714 = vmatpush1.msra.mxu0 %v1164
    %2715 = vmatprep.subr.mxu0 %v1161
    %2716 = vmatpush1.msra.mxu0 %v1160
    %2717 = vmatprep.subr.mxu0 %v1157
    %2718 = vmatpush1.msra.mxu0 %v1156
    %2719 = vmatprep.subr.mxu0 0.0
    %2720 = vmatpush2.msra.mxu0 0.0
    %2721 = vmatprep.subr.mxu0 0.0
    %2722 = vmatpush2.msra.mxu0 0.0
    %2723 = vmatprep.subr.mxu0 0.0
    %2724 = vmatpush2.msra.mxu0 0.0
    %2725 = vmatprep.subr.mxu0 0.0
    %2726 = vmatpush2.msra.mxu0 0.0
    %2727 = vmatprep.subr.mxu0 0.0
    %2728 = vmatpush2.msra.mxu0 0.0
    %2729 = vmatprep.subr.mxu0 0.0
    %2730 = vmatpush2.msra.mxu0 0.0
    %2731 = vmatprep.subr.mxu0 0.0
    %2732 = vmatpush2.msra.mxu0 0.0
    %2733 = vmatprep.subr.mxu0 0.0
    %2734 = vmatpush2.msra.mxu0 0.0
    %2735 = vmatprep.subr.mxu0 0.0
    %2736 = vmatpush2.msra.mxu0 0.0
    %2737 = vmatprep.subr.mxu0 0.0
    %2738 = vmatpush2.msra.mxu0 0.0
    %2739 = vmatprep.subr.mxu0 0.0
    %2740 = vmatpush2.msra.mxu0 0.0
    %2741 = vmatprep.subr.mxu0 0.0
    %2742 = vmatpush2.msra.mxu0 0.0
    %2743 = vmatprep.subr.mxu0 0.0
    %2744 = vmatpush2.msra.mxu0 0.0
    %2745 = vmatprep.subr.mxu0 0.0
    %2746 = vmatpush2.msra.mxu0 0.0
    %2747 = vmatprep.subr.mxu0 0.0
    %2748 = vmatpush2.msra.mxu0 0.0
    %2749 = vmatprep.subr.mxu0 0.0
    %2750 = vmatpush2.msra.mxu0 0.0
    %2751 = vmatprep.mubr.f32.mxu0 0.0
    %2752 = vmatmul.mubr.f32.gmra.mxu0 %v2391
    %v2753 = vpop.f32.mrf.mxu0
    %v2754 = vadd.f32 0.0, %v2753
    %v2755 = vpop.f32.mrf.mxu0
    %v2756 = vadd.f32 0.0, %v2755
    %2757 = vdwg.mxu0
    %v2758 = vadd.f32 %v2612, %v2683
    %v2759 = vadd.f32 %v2613, %v2685
    %v2760 = vadd.f32 %v2614, %v2754
    %v2761 = vadd.f32 %v2615, %v2756
    %v2762 = vxor.u32 %v2758, 2147483648
    %v2763 = vxor.u32 %v2759, 2147483648
    %v2764 = vxor.u32 %v2760, 2147483648
    %v2765 = vmul.f32 %v2762, 1.442695
    %v2766 = vpow.pop %v2765
    %v2767 = vmul.f32 %v2763, 1.442695
    %v2768 = vpow.pop %v2767
    %v2769 = vmul.f32 %v2764, 1.442695
    %v2770 = vpow.pop %v2769
    %v2771 = vadd.f32 %v2766, 1.0
    %v2772 = vadd.f32 %v2768, 1.0
    %v2773 = vadd.f32 %v2770, 1.0
    %v2774 = vrcp.pop %v2771
    %v2775 = vmul.f32 1.0, %v2774
    %v2776 = vrcp.pop %v2772
    %v2777 = vmul.f32 1.0, %v2776
    %v2778 = vrcp.pop %v2773
    %v2779 = vmul.f32 1.0, %v2778
    %v2780 = vtanh.pop %v2761
    %v2781 = vmul.f32 %v2777, %v2394
    %v2782 = vmul.f32 %v2775, %v2780
    %v2783 = vadd.f32 %v2781, %v2782
    %v2784 = vtanh.pop %v2783
    %v2785 = vmul.f32 %v2779, %v2784
    %v2786 = vmul.f32 %v2391, 0.1
    %v2787 = vmul.f32 %v2785, 0.9
    %v2788 = vadd.f32 %v2786, %v2787
    %v2789 = vmul.f32 %v2394, 0.1
    %v2790 = vmul.f32 %v2783, 0.9
    %v2791 = vadd.f32 %v2789, %v2790
    %2792 = vmatprep.subr.mxu0 %v1279
    %2793 = vmatpush1.msra.mxu0 %v1278
    %2794 = vmatprep.subr.mxu0 %v1275
    %2795 = vmatpush1.msra.mxu0 %v1274
    %2796 = vmatprep.subr.mxu0 %v1271
    %2797 = vmatpush1.msra.mxu0 %v1270
    %2798 = vmatprep.subr.mxu0 %v1267
    %2799 = vmatpush1.msra.mxu0 %v1266
    %2800 = vmatprep.subr.mxu0 %v1263
    %2801 = vmatpush1.msra.mxu0 %v1262
    %2802 = vmatprep.subr.mxu0 %v1259
    %2803 = vmatpush1.msra.mxu0 %v1258
    %2804 = vmatprep.subr.mxu0 %v1255
    %2805 = vmatpush1.msra.mxu0 %v1254
    %2806 = vmatprep.subr.mxu0 %v1251
    %2807 = vmatpush1.msra.mxu0 %v1250
    %2808 = vmatprep.subr.mxu0 %v1247
    %2809 = vmatpush1.msra.mxu0 %v1246
    %2810 = vmatprep.subr.mxu0 %v1243
    %2811 = vmatpush1.msra.mxu0 %v1242
    %2812 = vmatprep.subr.mxu0 %v1239
    %2813 = vmatpush1.msra.mxu0 %v1238
    %2814 = vmatprep.subr.mxu0 %v1235
    %2815 = vmatpush1.msra.mxu0 %v1234
    %2816 = vmatprep.subr.mxu0 %v1231
    %2817 = vmatpush1.msra.mxu0 %v1230
    %2818 = vmatprep.subr.mxu0 %v1227
    %2819 = vmatpush1.msra.mxu0 %v1226
    %2820 = vmatprep.subr.mxu0 %v1223
    %2821 = vmatpush1.msra.mxu0 %v1222
    %2822 = vmatprep.subr.mxu0 %v1219
    %2823 = vmatpush1.msra.mxu0 %v1218
    %2824 = vmatprep.subr.mxu0 %v1343
    %2825 = vmatpush2.msra.mxu0 %v1342
    %2826 = vmatprep.subr.mxu0 %v1339
    %2827 = vmatpush2.msra.mxu0 %v1338
    %2828 = vmatprep.subr.mxu0 %v1335
    %2829 = vmatpush2.msra.mxu0 %v1334
    %2830 = vmatprep.subr.mxu0 %v1331
    %2831 = vmatpush2.msra.mxu0 %v1330
    %2832 = vmatprep.subr.mxu0 %v1327
    %2833 = vmatpush2.msra.mxu0 %v1326
    %2834 = vmatprep.subr.mxu0 %v1323
    %2835 = vmatpush2.msra.mxu0 %v1322
    %2836 = vmatprep.subr.mxu0 %v1319
    %2837 = vmatpush2.msra.mxu0 %v1318
    %2838 = vmatprep.subr.mxu0 %v1315
    %2839 = vmatpush2.msra.mxu0 %v1314
    %2840 = vmatprep.subr.mxu0 %v1311
    %2841 = vmatpush2.msra.mxu0 %v1310
    %2842 = vmatprep.subr.mxu0 %v1307
    %2843 = vmatpush2.msra.mxu0 %v1306
    %2844 = vmatprep.subr.mxu0 %v1303
    %2845 = vmatpush2.msra.mxu0 %v1302
    %2846 = vmatprep.subr.mxu0 %v1299
    %2847 = vmatpush2.msra.mxu0 %v1298
    %2848 = vmatprep.subr.mxu0 %v1295
    %2849 = vmatpush2.msra.mxu0 %v1294
    %2850 = vmatprep.subr.mxu0 %v1291
    %2851 = vmatpush2.msra.mxu0 %v1290
    %2852 = vmatprep.subr.mxu0 %v1287
    %2853 = vmatpush2.msra.mxu0 %v1286
    %2854 = vmatprep.subr.mxu0 %v1283
    %2855 = vmatpush2.msra.mxu0 %v1282
    %2856 = vmatprep.mubr.f32.mxu0 %v2563
    %2857 = vmatmul.mubr.f32.gmra.mxu0 %v2788
    %v2858 = vpop.f32.mrf.mxu0
    %v2859 = vadd.f32 %v1578, %v2858
    %v2860 = vpop.f32.mrf.mxu0
    %v2861 = vadd.f32 %v1582, %v2860
    %2862 = vdwg.mxu0
    %2863 = vmatprep.subr.mxu0 %v1281
    %2864 = vmatpush1.msra.mxu0 %v1280
    %2865 = vmatprep.subr.mxu0 %v1277
    %2866 = vmatpush1.msra.mxu0 %v1276
    %2867 = vmatprep.subr.mxu0 %v1273
    %2868 = vmatpush1.msra.mxu0 %v1272
    %2869 = vmatprep.subr.mxu0 %v1269
    %2870 = vmatpush1.msra.mxu0 %v1268
    %2871 = vmatprep.subr.mxu0 %v1265
    %2872 = vmatpush1.msra.mxu0 %v1264
    %2873 = vmatprep.subr.mxu0 %v1261
    %2874 = vmatpush1.msra.mxu0 %v1260
    %2875 = vmatprep.subr.mxu0 %v1257
    %2876 = vmatpush1.msra.mxu0 %v1256
    %2877 = vmatprep.subr.mxu0 %v1253
    %2878 = vmatpush1.msra.mxu0 %v1252
    %2879 = vmatprep.subr.mxu0 %v1249
    %2880 = vmatpush1.msra.mxu0 %v1248
    %2881 = vmatprep.subr.mxu0 %v1245
    %2882 = vmatpush1.msra.mxu0 %v1244
    %2883 = vmatprep.subr.mxu0 %v1241
    %2884 = vmatpush1.msra.mxu0 %v1240
    %2885 = vmatprep.subr.mxu0 %v1237
    %2886 = vmatpush1.msra.mxu0 %v1236
    %2887 = vmatprep.subr.mxu0 %v1233
    %2888 = vmatpush1.msra.mxu0 %v1232
    %2889 = vmatprep.subr.mxu0 %v1229
    %2890 = vmatpush1.msra.mxu0 %v1228
    %2891 = vmatprep.subr.mxu0 %v1225
    %2892 = vmatpush1.msra.mxu0 %v1224
    %2893 = vmatprep.subr.mxu0 %v1221
    %2894 = vmatpush1.msra.mxu0 %v1220
    %2895 = vmatprep.subr.mxu0 %v1345
    %2896 = vmatpush2.msra.mxu0 %v1344
    %2897 = vmatprep.subr.mxu0 %v1341
    %2898 = vmatpush2.msra.mxu0 %v1340
    %2899 = vmatprep.subr.mxu0 %v1337
    %2900 = vmatpush2.msra.mxu0 %v1336
    %2901 = vmatprep.subr.mxu0 %v1333
    %2902 = vmatpush2.msra.mxu0 %v1332
    %2903 = vmatprep.subr.mxu0 %v1329
    %2904 = vmatpush2.msra.mxu0 %v1328
    %2905 = vmatprep.subr.mxu0 %v1325
    %2906 = vmatpush2.msra.mxu0 %v1324
    %2907 = vmatprep.subr.mxu0 %v1321
    %2908 = vmatpush2.msra.mxu0 %v1320
    %2909 = vmatprep.subr.mxu0 %v1317
    %2910 = vmatpush2.msra.mxu0 %v1316
    %2911 = vmatprep.subr.mxu0 %v1313
    %2912 = vmatpush2.msra.mxu0 %v1312
    %2913 = vmatprep.subr.mxu0 %v1309
    %2914 = vmatpush2.msra.mxu0 %v1308
    %2915 = vmatprep.subr.mxu0 %v1305
    %2916 = vmatpush2.msra.mxu0 %v1304
    %2917 = vmatprep.subr.mxu0 %v1301
    %2918 = vmatpush2.msra.mxu0 %v1300
    %2919 = vmatprep.subr.mxu0 %v1297
    %2920 = vmatpush2.msra.mxu0 %v1296
    %2921 = vmatprep.subr.mxu0 %v1293
    %2922 = vmatpush2.msra.mxu0 %v1292
    %2923 = vmatprep.subr.mxu0 %v1289
    %2924 = vmatpush2.msra.mxu0 %v1288
    %2925 = vmatprep.subr.mxu0 %v1285
    %2926 = vmatpush2.msra.mxu0 %v1284
    %2927 = vmatprep.mubr.f32.mxu0 %v2563
    %2928 = vmatmul.mubr.f32.gmra.mxu0 %v2788
    %v2929 = vpop.f32.mrf.mxu0
    %v2930 = vadd.f32 %v1586, %v2929
    %v2931 = vpop.f32.mrf.mxu0
    %v2932 = vadd.f32 %v1590, %v2931
    %2933 = vdwg.mxu0
    %v2934 = vxor.u32 %v2859, 2147483648
    %v2935 = vxor.u32 %v2861, 2147483648
    %v2936 = vxor.u32 %v2930, 2147483648
    %v2937 = vmul.f32 %v2934, 1.442695
    %v2938 = vpow.pop %v2937
    %v2939 = vmul.f32 %v2935, 1.442695
    %v2940 = vpow.pop %v2939
    %v2941 = vmul.f32 %v2936, 1.442695
    %v2942 = vpow.pop %v2941
    %v2943 = vadd.f32 %v2938, 1.0
    %v2944 = vadd.f32 %v2940, 1.0
    %v2945 = vadd.f32 %v2942, 1.0
    %v2946 = vrcp.pop %v2943
    %v2947 = vmul.f32 1.0, %v2946
    %v2948 = vrcp.pop %v2944
    %v2949 = vmul.f32 1.0, %v2948
    %v2950 = vrcp.pop %v2945
    %v2951 = vmul.f32 1.0, %v2950
    %v2952 = vtanh.pop %v2932
    %v2953 = vmul.f32 %v2949, %v2566
    %v2954 = vmul.f32 %v2947, %v2952
    %v2955 = vadd.f32 %v2953, %v2954
    %v2956 = vtanh.pop %v2955
    %v2957 = vmul.f32 %v2951, %v2956
    %v2958 = vmul.f32 %v2563, 0.1
    %v2959 = vmul.f32 %v2957, 0.9
    %v2960 = vadd.f32 %v2958, %v2959
    %v2961 = vmul.f32 %v2566, 0.1
    %v2962 = vmul.f32 %v2955, 0.9
    %v2963 = vadd.f32 %v2961, %v2962
    %v2964 = vmul.f32 %v2960, %v1769
    %v2965 = vsel %vm1772, %v2964, 0.0
    %2966 = vadd.xlane.f32.xlu0 %v2965
    %v2967 = vpop.xlane.xlu0 %2966
    %v2968 = vadd.f32 %v2967, %v2607
    %v2969 = vadd.f32 %v2968, %v1781
    %vm2970 = vcmp.eq.s32.totalorder %v1350, 3
    %v2971 = vsel %vm2970, 1, 0
    %v2972 = vcvt.s32.f32 %v2971
    %2974 = vset.pattern.permute.xlu0 0
    %2975 = vperm.xlu0 %2974, %v2969
    %v2976 = vpop.permute.xlu0 %2975
    %v2978 = vmul.f32 %v2976, %v2972
    %v2979 = vadd.f32 %v2582, %v2978
    %v2980 = vrot.slane %v1053, 4
    %v2981 = vrot.slane %v1055, 4
    %v2982 = vrot.slane %v1130, 4
    %v2983 = vrot.slane %v1132, 4
    %v2988 = vrot.slane %v1059, 3
    %v2989 = vrot.slane %v1061, 3
    %v2990 = vrot.slane %v1136, 3
    %v2991 = vrot.slane %v1138, 3
    %v2996 = vsel %vm179, %v2980, %v2988
    %v2997 = vsel %vm179, %v2981, %v2989
    %v2998 = vsel %vm179, %v2982, %v2990
    %v2999 = vsel %vm179, %v2983, %v2991
    %v3000 = vrot.slane %v1150, 4
    %v3002 = vrot.slane %v1152, 3
    %v3004 = vsel %vm179, %v3000, %v3002
    %v3005 = vmul.f32 %v2976, %v1375
    %v3006 = vmul.f32 %v2976, %v1379
    %v3007 = vmul.f32 %v2976, %v1383
    %v3008 = vmul.f32 %v2976, %v1387
    %v3009 = vadd.f32 %v2996, %v3005
    %v3010 = vadd.f32 %v2997, %v3006
    %v3011 = vadd.f32 %v2998, %v3007
    %v3012 = vadd.f32 %v2999, %v3008
    %3013 = vmatprep.subr.mxu0 %v1215
    %3014 = vmatpush1.msra.mxu0 %v1214
    %3015 = vmatprep.subr.mxu0 %v1211
    %3016 = vmatpush1.msra.mxu0 %v1210
    %3017 = vmatprep.subr.mxu0 %v1207
    %3018 = vmatpush1.msra.mxu0 %v1206
    %3019 = vmatprep.subr.mxu0 %v1203
    %3020 = vmatpush1.msra.mxu0 %v1202
    %3021 = vmatprep.subr.mxu0 %v1199
    %3022 = vmatpush1.msra.mxu0 %v1198
    %3023 = vmatprep.subr.mxu0 %v1195
    %3024 = vmatpush1.msra.mxu0 %v1194
    %3025 = vmatprep.subr.mxu0 %v1191
    %3026 = vmatpush1.msra.mxu0 %v1190
    %3027 = vmatprep.subr.mxu0 %v1187
    %3028 = vmatpush1.msra.mxu0 %v1186
    %3029 = vmatprep.subr.mxu0 %v1183
    %3030 = vmatpush1.msra.mxu0 %v1182
    %3031 = vmatprep.subr.mxu0 %v1179
    %3032 = vmatpush1.msra.mxu0 %v1178
    %3033 = vmatprep.subr.mxu0 %v1175
    %3034 = vmatpush1.msra.mxu0 %v1174
    %3035 = vmatprep.subr.mxu0 %v1171
    %3036 = vmatpush1.msra.mxu0 %v1170
    %3037 = vmatprep.subr.mxu0 %v1167
    %3038 = vmatpush1.msra.mxu0 %v1166
    %3039 = vmatprep.subr.mxu0 %v1163
    %3040 = vmatpush1.msra.mxu0 %v1162
    %3041 = vmatprep.subr.mxu0 %v1159
    %3042 = vmatpush1.msra.mxu0 %v1158
    %3043 = vmatprep.subr.mxu0 %v1155
    %3044 = vmatpush1.msra.mxu0 %v1154
    %3045 = vmatprep.subr.mxu0 0.0
    %3046 = vmatpush2.msra.mxu0 0.0
    %3047 = vmatprep.subr.mxu0 0.0
    %3048 = vmatpush2.msra.mxu0 0.0
    %3049 = vmatprep.subr.mxu0 0.0
    %3050 = vmatpush2.msra.mxu0 0.0
    %3051 = vmatprep.subr.mxu0 0.0
    %3052 = vmatpush2.msra.mxu0 0.0
    %3053 = vmatprep.subr.mxu0 0.0
    %3054 = vmatpush2.msra.mxu0 0.0
    %3055 = vmatprep.subr.mxu0 0.0
    %3056 = vmatpush2.msra.mxu0 0.0
    %3057 = vmatprep.subr.mxu0 0.0
    %3058 = vmatpush2.msra.mxu0 0.0
    %3059 = vmatprep.subr.mxu0 0.0
    %3060 = vmatpush2.msra.mxu0 0.0
    %3061 = vmatprep.subr.mxu0 0.0
    %3062 = vmatpush2.msra.mxu0 0.0
    %3063 = vmatprep.subr.mxu0 0.0
    %3064 = vmatpush2.msra.mxu0 0.0
    %3065 = vmatprep.subr.mxu0 0.0
    %3066 = vmatpush2.msra.mxu0 0.0
    %3067 = vmatprep.subr.mxu0 0.0
    %3068 = vmatpush2.msra.mxu0 0.0
    %3069 = vmatprep.subr.mxu0 0.0
    %3070 = vmatpush2.msra.mxu0 0.0
    %3071 = vmatprep.subr.mxu0 0.0
    %3072 = vmatpush2.msra.mxu0 0.0
    %3073 = vmatprep.subr.mxu0 0.0
    %3074 = vmatpush2.msra.mxu0 0.0
    %3075 = vmatprep.subr.mxu0 0.0
    %3076 = vmatpush2.msra.mxu0 0.0
    %3077 = vmatprep.mubr.f32.mxu0 0.0
    %3078 = vmatmul.mubr.f32.gmra.mxu0 %v2788
    %v3079 = vpop.f32.mrf.mxu0
    %v3080 = vadd.f32 0.0, %v3079
    %v3081 = vpop.f32.mrf.mxu0
    %v3082 = vadd.f32 0.0, %v3081
    %3083 = vdwg.mxu0
    %3084 = vmatprep.subr.mxu0 %v1217
    %3085 = vmatpush1.msra.mxu0 %v1216
    %3086 = vmatprep.subr.mxu0 %v1213
    %3087 = vmatpush1.msra.mxu0 %v1212
    %3088 = vmatprep.subr.mxu0 %v1209
    %3089 = vmatpush1.msra.mxu0 %v1208
    %3090 = vmatprep.subr.mxu0 %v1205
    %3091 = vmatpush1.msra.mxu0 %v1204
    %3092 = vmatprep.subr.mxu0 %v1201
    %3093 = vmatpush1.msra.mxu0 %v1200
    %3094 = vmatprep.subr.mxu0 %v1197
    %3095 = vmatpush1.msra.mxu0 %v1196
    %3096 = vmatprep.subr.mxu0 %v1193
    %3097 = vmatpush1.msra.mxu0 %v1192
    %3098 = vmatprep.subr.mxu0 %v1189
    %3099 = vmatpush1.msra.mxu0 %v1188
    %3100 = vmatprep.subr.mxu0 %v1185
    %3101 = vmatpush1.msra.mxu0 %v1184
    %3102 = vmatprep.subr.mxu0 %v1181
    %3103 = vmatpush1.msra.mxu0 %v1180
    %3104 = vmatprep.subr.mxu0 %v1177
    %3105 = vmatpush1.msra.mxu0 %v1176
    %3106 = vmatprep.subr.mxu0 %v1173
    %3107 = vmatpush1.msra.mxu0 %v1172
    %3108 = vmatprep.subr.mxu0 %v1169
    %3109 = vmatpush1.msra.mxu0 %v1168
    %3110 = vmatprep.subr.mxu0 %v1165
    %3111 = vmatpush1.msra.mxu0 %v1164
    %3112 = vmatprep.subr.mxu0 %v1161
    %3113 = vmatpush1.msra.mxu0 %v1160
    %3114 = vmatprep.subr.mxu0 %v1157
    %3115 = vmatpush1.msra.mxu0 %v1156
    %3116 = vmatprep.subr.mxu0 0.0
    %3117 = vmatpush2.msra.mxu0 0.0
    %3118 = vmatprep.subr.mxu0 0.0
    %3119 = vmatpush2.msra.mxu0 0.0
    %3120 = vmatprep.subr.mxu0 0.0
    %3121 = vmatpush2.msra.mxu0 0.0
    %3122 = vmatprep.subr.mxu0 0.0
    %3123 = vmatpush2.msra.mxu0 0.0
    %3124 = vmatprep.subr.mxu0 0.0
    %3125 = vmatpush2.msra.mxu0 0.0
    %3126 = vmatprep.subr.mxu0 0.0
    %3127 = vmatpush2.msra.mxu0 0.0
    %3128 = vmatprep.subr.mxu0 0.0
    %3129 = vmatpush2.msra.mxu0 0.0
    %3130 = vmatprep.subr.mxu0 0.0
    %3131 = vmatpush2.msra.mxu0 0.0
    %3132 = vmatprep.subr.mxu0 0.0
    %3133 = vmatpush2.msra.mxu0 0.0
    %3134 = vmatprep.subr.mxu0 0.0
    %3135 = vmatpush2.msra.mxu0 0.0
    %3136 = vmatprep.subr.mxu0 0.0
    %3137 = vmatpush2.msra.mxu0 0.0
    %3138 = vmatprep.subr.mxu0 0.0
    %3139 = vmatpush2.msra.mxu0 0.0
    %3140 = vmatprep.subr.mxu0 0.0
    %3141 = vmatpush2.msra.mxu0 0.0
    %3142 = vmatprep.subr.mxu0 0.0
    %3143 = vmatpush2.msra.mxu0 0.0
    %3144 = vmatprep.subr.mxu0 0.0
    %3145 = vmatpush2.msra.mxu0 0.0
    %3146 = vmatprep.subr.mxu0 0.0
    %3147 = vmatpush2.msra.mxu0 0.0
    %3148 = vmatprep.mubr.f32.mxu0 0.0
    %3149 = vmatmul.mubr.f32.gmra.mxu0 %v2788
    %v3150 = vpop.f32.mrf.mxu0
    %v3151 = vadd.f32 0.0, %v3150
    %v3152 = vpop.f32.mrf.mxu0
    %v3153 = vadd.f32 0.0, %v3152
    %3154 = vdwg.mxu0
    %v3155 = vadd.f32 %v3009, %v3080
    %v3156 = vadd.f32 %v3010, %v3082
    %v3157 = vadd.f32 %v3011, %v3151
    %v3158 = vadd.f32 %v3012, %v3153
    %v3159 = vxor.u32 %v3155, 2147483648
    %v3160 = vxor.u32 %v3156, 2147483648
    %v3161 = vxor.u32 %v3157, 2147483648
    %v3162 = vmul.f32 %v3159, 1.442695
    %v3163 = vpow.pop %v3162
    %v3164 = vmul.f32 %v3160, 1.442695
    %v3165 = vpow.pop %v3164
    %v3166 = vmul.f32 %v3161, 1.442695
    %v3167 = vpow.pop %v3166
    %v3168 = vadd.f32 %v3163, 1.0
    %v3169 = vadd.f32 %v3165, 1.0
    %v3170 = vadd.f32 %v3167, 1.0
    %v3171 = vrcp.pop %v3168
    %v3172 = vmul.f32 1.0, %v3171
    %v3173 = vrcp.pop %v3169
    %v3174 = vmul.f32 1.0, %v3173
    %v3175 = vrcp.pop %v3170
    %v3176 = vmul.f32 1.0, %v3175
    %v3177 = vtanh.pop %v3158
    %v3178 = vmul.f32 %v3174, %v2791
    %v3179 = vmul.f32 %v3172, %v3177
    %v3180 = vadd.f32 %v3178, %v3179
    %v3181 = vtanh.pop %v3180
    %v3182 = vmul.f32 %v3176, %v3181
    %v3183 = vmul.f32 %v2788, 0.1
    %v3184 = vmul.f32 %v3182, 0.9
    %v3185 = vadd.f32 %v3183, %v3184
    %v3186 = vmul.f32 %v2791, 0.1
    %v3187 = vmul.f32 %v3180, 0.9
    %v3188 = vadd.f32 %v3186, %v3187
    %3189 = vmatprep.subr.mxu0 %v1279
    %3190 = vmatpush1.msra.mxu0 %v1278
    %3191 = vmatprep.subr.mxu0 %v1275
    %3192 = vmatpush1.msra.mxu0 %v1274
    %3193 = vmatprep.subr.mxu0 %v1271
    %3194 = vmatpush1.msra.mxu0 %v1270
    %3195 = vmatprep.subr.mxu0 %v1267
    %3196 = vmatpush1.msra.mxu0 %v1266
    %3197 = vmatprep.subr.mxu0 %v1263
    %3198 = vmatpush1.msra.mxu0 %v1262
    %3199 = vmatprep.subr.mxu0 %v1259
    %3200 = vmatpush1.msra.mxu0 %v1258
    %3201 = vmatprep.subr.mxu0 %v1255
    %3202 = vmatpush1.msra.mxu0 %v1254
    %3203 = vmatprep.subr.mxu0 %v1251
    %3204 = vmatpush1.msra.mxu0 %v1250
    %3205 = vmatprep.subr.mxu0 %v1247
    %3206 = vmatpush1.msra.mxu0 %v1246
    %3207 = vmatprep.subr.mxu0 %v1243
    %3208 = vmatpush1.msra.mxu0 %v1242
    %3209 = vmatprep.subr.mxu0 %v1239
    %3210 = vmatpush1.msra.mxu0 %v1238
    %3211 = vmatprep.subr.mxu0 %v1235
    %3212 = vmatpush1.msra.mxu0 %v1234
    %3213 = vmatprep.subr.mxu0 %v1231
    %3214 = vmatpush1.msra.mxu0 %v1230
    %3215 = vmatprep.subr.mxu0 %v1227
    %3216 = vmatpush1.msra.mxu0 %v1226
    %3217 = vmatprep.subr.mxu0 %v1223
    %3218 = vmatpush1.msra.mxu0 %v1222
    %3219 = vmatprep.subr.mxu0 %v1219
    %3220 = vmatpush1.msra.mxu0 %v1218
    %3221 = vmatprep.subr.mxu0 %v1343
    %3222 = vmatpush2.msra.mxu0 %v1342
    %3223 = vmatprep.subr.mxu0 %v1339
    %3224 = vmatpush2.msra.mxu0 %v1338
    %3225 = vmatprep.subr.mxu0 %v1335
    %3226 = vmatpush2.msra.mxu0 %v1334
    %3227 = vmatprep.subr.mxu0 %v1331
    %3228 = vmatpush2.msra.mxu0 %v1330
    %3229 = vmatprep.subr.mxu0 %v1327
    %3230 = vmatpush2.msra.mxu0 %v1326
    %3231 = vmatprep.subr.mxu0 %v1323
    %3232 = vmatpush2.msra.mxu0 %v1322
    %3233 = vmatprep.subr.mxu0 %v1319
    %3234 = vmatpush2.msra.mxu0 %v1318
    %3235 = vmatprep.subr.mxu0 %v1315
    %3236 = vmatpush2.msra.mxu0 %v1314
    %3237 = vmatprep.subr.mxu0 %v1311
    %3238 = vmatpush2.msra.mxu0 %v1310
    %3239 = vmatprep.subr.mxu0 %v1307
    %3240 = vmatpush2.msra.mxu0 %v1306
    %3241 = vmatprep.subr.mxu0 %v1303
    %3242 = vmatpush2.msra.mxu0 %v1302
    %3243 = vmatprep.subr.mxu0 %v1299
    %3244 = vmatpush2.msra.mxu0 %v1298
    %3245 = vmatprep.subr.mxu0 %v1295
    %3246 = vmatpush2.msra.mxu0 %v1294
    %3247 = vmatprep.subr.mxu0 %v1291
    %3248 = vmatpush2.msra.mxu0 %v1290
    %3249 = vmatprep.subr.mxu0 %v1287
    %3250 = vmatpush2.msra.mxu0 %v1286
    %3251 = vmatprep.subr.mxu0 %v1283
    %3252 = vmatpush2.msra.mxu0 %v1282
    %3253 = vmatprep.mubr.f32.mxu0 %v2960
    %3254 = vmatmul.mubr.f32.gmra.mxu0 %v3185
    %v3255 = vpop.f32.mrf.mxu0
    %v3256 = vadd.f32 %v1578, %v3255
    %v3257 = vpop.f32.mrf.mxu0
    %v3258 = vadd.f32 %v1582, %v3257
    %3259 = vdwg.mxu0
    %3260 = vmatprep.subr.mxu0 %v1281
    %3261 = vmatpush1.msra.mxu0 %v1280
    %3262 = vmatprep.subr.mxu0 %v1277
    %3263 = vmatpush1.msra.mxu0 %v1276
    %3264 = vmatprep.subr.mxu0 %v1273
    %3265 = vmatpush1.msra.mxu0 %v1272
    %3266 = vmatprep.subr.mxu0 %v1269
    %3267 = vmatpush1.msra.mxu0 %v1268
    %3268 = vmatprep.subr.mxu0 %v1265
    %3269 = vmatpush1.msra.mxu0 %v1264
    %3270 = vmatprep.subr.mxu0 %v1261
    %3271 = vmatpush1.msra.mxu0 %v1260
    %3272 = vmatprep.subr.mxu0 %v1257
    %3273 = vmatpush1.msra.mxu0 %v1256
    %3274 = vmatprep.subr.mxu0 %v1253
    %3275 = vmatpush1.msra.mxu0 %v1252
    %3276 = vmatprep.subr.mxu0 %v1249
    %3277 = vmatpush1.msra.mxu0 %v1248
    %3278 = vmatprep.subr.mxu0 %v1245
    %3279 = vmatpush1.msra.mxu0 %v1244
    %3280 = vmatprep.subr.mxu0 %v1241
    %3281 = vmatpush1.msra.mxu0 %v1240
    %3282 = vmatprep.subr.mxu0 %v1237
    %3283 = vmatpush1.msra.mxu0 %v1236
    %3284 = vmatprep.subr.mxu0 %v1233
    %3285 = vmatpush1.msra.mxu0 %v1232
    %3286 = vmatprep.subr.mxu0 %v1229
    %3287 = vmatpush1.msra.mxu0 %v1228
    %3288 = vmatprep.subr.mxu0 %v1225
    %3289 = vmatpush1.msra.mxu0 %v1224
    %3290 = vmatprep.subr.mxu0 %v1221
    %3291 = vmatpush1.msra.mxu0 %v1220
    %3292 = vmatprep.subr.mxu0 %v1345
    %3293 = vmatpush2.msra.mxu0 %v1344
    %3294 = vmatprep.subr.mxu0 %v1341
    %3295 = vmatpush2.msra.mxu0 %v1340
    %3296 = vmatprep.subr.mxu0 %v1337
    %3297 = vmatpush2.msra.mxu0 %v1336
    %3298 = vmatprep.subr.mxu0 %v1333
    %3299 = vmatpush2.msra.mxu0 %v1332
    %3300 = vmatprep.subr.mxu0 %v1329
    %3301 = vmatpush2.msra.mxu0 %v1328
    %3302 = vmatprep.subr.mxu0 %v1325
    %3303 = vmatpush2.msra.mxu0 %v1324
    %3304 = vmatprep.subr.mxu0 %v1321
    %3305 = vmatpush2.msra.mxu0 %v1320
    %3306 = vmatprep.subr.mxu0 %v1317
    %3307 = vmatpush2.msra.mxu0 %v1316
    %3308 = vmatprep.subr.mxu0 %v1313
    %3309 = vmatpush2.msra.mxu0 %v1312
    %3310 = vmatprep.subr.mxu0 %v1309
    %3311 = vmatpush2.msra.mxu0 %v1308
    %3312 = vmatprep.subr.mxu0 %v1305
    %3313 = vmatpush2.msra.mxu0 %v1304
    %3314 = vmatprep.subr.mxu0 %v1301
    %3315 = vmatpush2.msra.mxu0 %v1300
    %3316 = vmatprep.subr.mxu0 %v1297
    %3317 = vmatpush2.msra.mxu0 %v1296
    %3318 = vmatprep.subr.mxu0 %v1293
    %3319 = vmatpush2.msra.mxu0 %v1292
    %3320 = vmatprep.subr.mxu0 %v1289
    %3321 = vmatpush2.msra.mxu0 %v1288
    %3322 = vmatprep.subr.mxu0 %v1285
    %3323 = vmatpush2.msra.mxu0 %v1284
    %3324 = vmatprep.mubr.f32.mxu0 %v2960
    %3325 = vmatmul.mubr.f32.gmra.mxu0 %v3185
    %v3326 = vpop.f32.mrf.mxu0
    %v3327 = vadd.f32 %v1586, %v3326
    %v3328 = vpop.f32.mrf.mxu0
    %v3329 = vadd.f32 %v1590, %v3328
    %3330 = vdwg.mxu0
    %v3331 = vxor.u32 %v3256, 2147483648
    %v3332 = vxor.u32 %v3258, 2147483648
    %v3333 = vxor.u32 %v3327, 2147483648
    %v3334 = vmul.f32 %v3331, 1.442695
    %v3335 = vpow.pop %v3334
    %v3336 = vmul.f32 %v3332, 1.442695
    %v3337 = vpow.pop %v3336
    %v3338 = vmul.f32 %v3333, 1.442695
    %v3339 = vpow.pop %v3338
    %v3340 = vadd.f32 %v3335, 1.0
    %v3341 = vadd.f32 %v3337, 1.0
    %v3342 = vadd.f32 %v3339, 1.0
    %v3343 = vrcp.pop %v3340
    %v3344 = vmul.f32 1.0, %v3343
    %v3345 = vrcp.pop %v3341
    %v3346 = vmul.f32 1.0, %v3345
    %v3347 = vrcp.pop %v3342
    %v3348 = vmul.f32 1.0, %v3347
    %v3349 = vtanh.pop %v3329
    %v3350 = vmul.f32 %v3346, %v2963
    %v3351 = vmul.f32 %v3344, %v3349
    %v3352 = vadd.f32 %v3350, %v3351
    %v3353 = vtanh.pop %v3352
    %v3354 = vmul.f32 %v3348, %v3353
    %v3355 = vmul.f32 %v2960, 0.1
    %v3356 = vmul.f32 %v3354, 0.9
    %v3357 = vadd.f32 %v3355, %v3356
    %v3358 = vmul.f32 %v2963, 0.1
    %v3359 = vmul.f32 %v3352, 0.9
    %v3360 = vadd.f32 %v3358, %v3359
    %v3361 = vmul.f32 %v3357, %v1769
    %v3362 = vsel %vm1772, %v3361, 0.0
    %3363 = vadd.xlane.f32.xlu0 %v3362
    %v3364 = vpop.xlane.xlu0 %3363
    %v3365 = vadd.f32 %v3364, %v3004
    %v3366 = vadd.f32 %v3365, %v1781
    %vm3367 = vcmp.eq.s32.totalorder %v1350, 4
    %v3368 = vsel %vm3367, 1, 0
    %v3369 = vcvt.s32.f32 %v3368
    %3371 = vset.pattern.permute.xlu0 0
    %3372 = vperm.xlu0 %3371, %v3366
    %v3373 = vpop.permute.xlu0 %3372
    %v3375 = vmul.f32 %v3373, %v3369
    %v3376 = vadd.f32 %v2979, %v3375
    %v3377 = vrot.slane %v1053, 5
    %v3378 = vrot.slane %v1055, 5
    %v3379 = vrot.slane %v1130, 5
    %v3380 = vrot.slane %v1132, 5
    %v3385 = vrot.slane %v1059, 4
    %v3386 = vrot.slane %v1061, 4
    %v3387 = vrot.slane %v1136, 4
    %v3388 = vrot.slane %v1138, 4
    %v3393 = vsel %vm179, %v3377, %v3385
    %v3394 = vsel %vm179, %v3378, %v3386
    %v3395 = vsel %vm179, %v3379, %v3387
    %v3396 = vsel %vm179, %v3380, %v3388
    %v3397 = vrot.slane %v1150, 5
    %v3399 = vrot.slane %v1152, 4
    %v3401 = vsel %vm179, %v3397, %v3399
    %v3402 = vmul.f32 %v3373, %v1375
    %v3403 = vmul.f32 %v3373, %v1379
    %v3404 = vmul.f32 %v3373, %v1383
    %v3405 = vmul.f32 %v3373, %v1387
    %v3406 = vadd.f32 %v3393, %v3402
    %v3407 = vadd.f32 %v3394, %v3403
    %v3408 = vadd.f32 %v3395, %v3404
    %v3409 = vadd.f32 %v3396, %v3405
    %3410 = vmatprep.subr.mxu0 %v1215
    %3411 = vmatpush1.msra.mxu0 %v1214
    %3412 = vmatprep.subr.mxu0 %v1211
    %3413 = vmatpush1.msra.mxu0 %v1210
    %3414 = vmatprep.subr.mxu0 %v1207
    %3415 = vmatpush1.msra.mxu0 %v1206
    %3416 = vmatprep.subr.mxu0 %v1203
    %3417 = vmatpush1.msra.mxu0 %v1202
    %3418 = vmatprep.subr.mxu0 %v1199
    %3419 = vmatpush1.msra.mxu0 %v1198
    %3420 = vmatprep.subr.mxu0 %v1195
    %3421 = vmatpush1.msra.mxu0 %v1194
    %3422 = vmatprep.subr.mxu0 %v1191
    %3423 = vmatpush1.msra.mxu0 %v1190
    %3424 = vmatprep.subr.mxu0 %v1187
    %3425 = vmatpush1.msra.mxu0 %v1186
    %3426 = vmatprep.subr.mxu0 %v1183
    %3427 = vmatpush1.msra.mxu0 %v1182
    %3428 = vmatprep.subr.mxu0 %v1179
    %3429 = vmatpush1.msra.mxu0 %v1178
    %3430 = vmatprep.subr.mxu0 %v1175
    %3431 = vmatpush1.msra.mxu0 %v1174
    %3432 = vmatprep.subr.mxu0 %v1171
    %3433 = vmatpush1.msra.mxu0 %v1170
    %3434 = vmatprep.subr.mxu0 %v1167
    %3435 = vmatpush1.msra.mxu0 %v1166
    %3436 = vmatprep.subr.mxu0 %v1163
    %3437 = vmatpush1.msra.mxu0 %v1162
    %3438 = vmatprep.subr.mxu0 %v1159
    %3439 = vmatpush1.msra.mxu0 %v1158
    %3440 = vmatprep.subr.mxu0 %v1155
    %3441 = vmatpush1.msra.mxu0 %v1154
    %3442 = vmatprep.subr.mxu0 0.0
    %3443 = vmatpush2.msra.mxu0 0.0
    %3444 = vmatprep.subr.mxu0 0.0
    %3445 = vmatpush2.msra.mxu0 0.0
    %3446 = vmatprep.subr.mxu0 0.0
    %3447 = vmatpush2.msra.mxu0 0.0
    %3448 = vmatprep.subr.mxu0 0.0
    %3449 = vmatpush2.msra.mxu0 0.0
    %3450 = vmatprep.subr.mxu0 0.0
    %3451 = vmatpush2.msra.mxu0 0.0
    %3452 = vmatprep.subr.mxu0 0.0
    %3453 = vmatpush2.msra.mxu0 0.0
    %3454 = vmatprep.subr.mxu0 0.0
    %3455 = vmatpush2.msra.mxu0 0.0
    %3456 = vmatprep.subr.mxu0 0.0
    %3457 = vmatpush2.msra.mxu0 0.0
    %3458 = vmatprep.subr.mxu0 0.0
    %3459 = vmatpush2.msra.mxu0 0.0
    %3460 = vmatprep.subr.mxu0 0.0
    %3461 = vmatpush2.msra.mxu0 0.0
    %3462 = vmatprep.subr.mxu0 0.0
    %3463 = vmatpush2.msra.mxu0 0.0
    %3464 = vmatprep.subr.mxu0 0.0
    %3465 = vmatpush2.msra.mxu0 0.0
    %3466 = vmatprep.subr.mxu0 0.0
    %3467 = vmatpush2.msra.mxu0 0.0
    %3468 = vmatprep.subr.mxu0 0.0
    %3469 = vmatpush2.msra.mxu0 0.0
    %3470 = vmatprep.subr.mxu0 0.0
    %3471 = vmatpush2.msra.mxu0 0.0
    %3472 = vmatprep.subr.mxu0 0.0
    %3473 = vmatpush2.msra.mxu0 0.0
    %3474 = vmatprep.mubr.f32.mxu0 0.0
    %3475 = vmatmul.mubr.f32.gmra.mxu0 %v3185
    %v3476 = vpop.f32.mrf.mxu0
    %v3477 = vadd.f32 0.0, %v3476
    %v3478 = vpop.f32.mrf.mxu0
    %v3479 = vadd.f32 0.0, %v3478
    %3480 = vdwg.mxu0
    %3481 = vmatprep.subr.mxu0 %v1217
    %3482 = vmatpush1.msra.mxu0 %v1216
    %3483 = vmatprep.subr.mxu0 %v1213
    %3484 = vmatpush1.msra.mxu0 %v1212
    %3485 = vmatprep.subr.mxu0 %v1209
    %3486 = vmatpush1.msra.mxu0 %v1208
    %3487 = vmatprep.subr.mxu0 %v1205
    %3488 = vmatpush1.msra.mxu0 %v1204
    %3489 = vmatprep.subr.mxu0 %v1201
    %3490 = vmatpush1.msra.mxu0 %v1200
    %3491 = vmatprep.subr.mxu0 %v1197
    %3492 = vmatpush1.msra.mxu0 %v1196
    %3493 = vmatprep.subr.mxu0 %v1193
    %3494 = vmatpush1.msra.mxu0 %v1192
    %3495 = vmatprep.subr.mxu0 %v1189
    %3496 = vmatpush1.msra.mxu0 %v1188
    %3497 = vmatprep.subr.mxu0 %v1185
    %3498 = vmatpush1.msra.mxu0 %v1184
    %3499 = vmatprep.subr.mxu0 %v1181
    %3500 = vmatpush1.msra.mxu0 %v1180
    %3501 = vmatprep.subr.mxu0 %v1177
    %3502 = vmatpush1.msra.mxu0 %v1176
    %3503 = vmatprep.subr.mxu0 %v1173
    %3504 = vmatpush1.msra.mxu0 %v1172
    %3505 = vmatprep.subr.mxu0 %v1169
    %3506 = vmatpush1.msra.mxu0 %v1168
    %3507 = vmatprep.subr.mxu0 %v1165
    %3508 = vmatpush1.msra.mxu0 %v1164
    %3509 = vmatprep.subr.mxu0 %v1161
    %3510 = vmatpush1.msra.mxu0 %v1160
    %3511 = vmatprep.subr.mxu0 %v1157
    %3512 = vmatpush1.msra.mxu0 %v1156
    %3513 = vmatprep.subr.mxu0 0.0
    %3514 = vmatpush2.msra.mxu0 0.0
    %3515 = vmatprep.subr.mxu0 0.0
    %3516 = vmatpush2.msra.mxu0 0.0
    %3517 = vmatprep.subr.mxu0 0.0
    %3518 = vmatpush2.msra.mxu0 0.0
    %3519 = vmatprep.subr.mxu0 0.0
    %3520 = vmatpush2.msra.mxu0 0.0
    %3521 = vmatprep.subr.mxu0 0.0
    %3522 = vmatpush2.msra.mxu0 0.0
    %3523 = vmatprep.subr.mxu0 0.0
    %3524 = vmatpush2.msra.mxu0 0.0
    %3525 = vmatprep.subr.mxu0 0.0
    %3526 = vmatpush2.msra.mxu0 0.0
    %3527 = vmatprep.subr.mxu0 0.0
    %3528 = vmatpush2.msra.mxu0 0.0
    %3529 = vmatprep.subr.mxu0 0.0
    %3530 = vmatpush2.msra.mxu0 0.0
    %3531 = vmatprep.subr.mxu0 0.0
    %3532 = vmatpush2.msra.mxu0 0.0
    %3533 = vmatprep.subr.mxu0 0.0
    %3534 = vmatpush2.msra.mxu0 0.0
    %3535 = vmatprep.subr.mxu0 0.0
    %3536 = vmatpush2.msra.mxu0 0.0
    %3537 = vmatprep.subr.mxu0 0.0
    %3538 = vmatpush2.msra.mxu0 0.0
    %3539 = vmatprep.subr.mxu0 0.0
    %3540 = vmatpush2.msra.mxu0 0.0
    %3541 = vmatprep.subr.mxu0 0.0
    %3542 = vmatpush2.msra.mxu0 0.0
    %3543 = vmatprep.subr.mxu0 0.0
    %3544 = vmatpush2.msra.mxu0 0.0
    %3545 = vmatprep.mubr.f32.mxu0 0.0
    %3546 = vmatmul.mubr.f32.gmra.mxu0 %v3185
    %v3547 = vpop.f32.mrf.mxu0
    %v3548 = vadd.f32 0.0, %v3547
    %v3549 = vpop.f32.mrf.mxu0
    %v3550 = vadd.f32 0.0, %v3549
    %3551 = vdwg.mxu0
    %v3552 = vadd.f32 %v3406, %v3477
    %v3553 = vadd.f32 %v3407, %v3479
    %v3554 = vadd.f32 %v3408, %v3548
    %v3555 = vadd.f32 %v3409, %v3550
    %v3556 = vxor.u32 %v3552, 2147483648
    %v3557 = vxor.u32 %v3553, 2147483648
    %v3558 = vxor.u32 %v3554, 2147483648
    %v3559 = vmul.f32 %v3556, 1.442695
    %v3560 = vpow.pop %v3559
    %v3561 = vmul.f32 %v3557, 1.442695
    %v3562 = vpow.pop %v3561
    %v3563 = vmul.f32 %v3558, 1.442695
    %v3564 = vpow.pop %v3563
    %v3565 = vadd.f32 %v3560, 1.0
    %v3566 = vadd.f32 %v3562, 1.0
    %v3567 = vadd.f32 %v3564, 1.0
    %v3568 = vrcp.pop %v3565
    %v3569 = vmul.f32 1.0, %v3568
    %v3570 = vrcp.pop %v3566
    %v3571 = vmul.f32 1.0, %v3570
    %v3572 = vrcp.pop %v3567
    %v3573 = vmul.f32 1.0, %v3572
    %v3574 = vtanh.pop %v3555
    %v3575 = vmul.f32 %v3571, %v3188
    %v3576 = vmul.f32 %v3569, %v3574
    %v3577 = vadd.f32 %v3575, %v3576
    %v3578 = vtanh.pop %v3577
    %v3579 = vmul.f32 %v3573, %v3578
    %v3580 = vmul.f32 %v3185, 0.1
    %v3581 = vmul.f32 %v3579, 0.9
    %v3582 = vadd.f32 %v3580, %v3581
    %v3583 = vmul.f32 %v3188, 0.1
    %v3584 = vmul.f32 %v3577, 0.9
    %v3585 = vadd.f32 %v3583, %v3584
    %3586 = vmatprep.subr.mxu0 %v1279
    %3587 = vmatpush1.msra.mxu0 %v1278
    %3588 = vmatprep.subr.mxu0 %v1275
    %3589 = vmatpush1.msra.mxu0 %v1274
    %3590 = vmatprep.subr.mxu0 %v1271
    %3591 = vmatpush1.msra.mxu0 %v1270
    %3592 = vmatprep.subr.mxu0 %v1267
    %3593 = vmatpush1.msra.mxu0 %v1266
    %3594 = vmatprep.subr.mxu0 %v1263
    %3595 = vmatpush1.msra.mxu0 %v1262
    %3596 = vmatprep.subr.mxu0 %v1259
    %3597 = vmatpush1.msra.mxu0 %v1258
    %3598 = vmatprep.subr.mxu0 %v1255
    %3599 = vmatpush1.msra.mxu0 %v1254
    %3600 = vmatprep.subr.mxu0 %v1251
    %3601 = vmatpush1.msra.mxu0 %v1250
    %3602 = vmatprep.subr.mxu0 %v1247
    %3603 = vmatpush1.msra.mxu0 %v1246
    %3604 = vmatprep.subr.mxu0 %v1243
    %3605 = vmatpush1.msra.mxu0 %v1242
    %3606 = vmatprep.subr.mxu0 %v1239
    %3607 = vmatpush1.msra.mxu0 %v1238
    %3608 = vmatprep.subr.mxu0 %v1235
    %3609 = vmatpush1.msra.mxu0 %v1234
    %3610 = vmatprep.subr.mxu0 %v1231
    %3611 = vmatpush1.msra.mxu0 %v1230
    %3612 = vmatprep.subr.mxu0 %v1227
    %3613 = vmatpush1.msra.mxu0 %v1226
    %3614 = vmatprep.subr.mxu0 %v1223
    %3615 = vmatpush1.msra.mxu0 %v1222
    %3616 = vmatprep.subr.mxu0 %v1219
    %3617 = vmatpush1.msra.mxu0 %v1218
    %3618 = vmatprep.subr.mxu0 %v1343
    %3619 = vmatpush2.msra.mxu0 %v1342
    %3620 = vmatprep.subr.mxu0 %v1339
    %3621 = vmatpush2.msra.mxu0 %v1338
    %3622 = vmatprep.subr.mxu0 %v1335
    %3623 = vmatpush2.msra.mxu0 %v1334
    %3624 = vmatprep.subr.mxu0 %v1331
    %3625 = vmatpush2.msra.mxu0 %v1330
    %3626 = vmatprep.subr.mxu0 %v1327
    %3627 = vmatpush2.msra.mxu0 %v1326
    %3628 = vmatprep.subr.mxu0 %v1323
    %3629 = vmatpush2.msra.mxu0 %v1322
    %3630 = vmatprep.subr.mxu0 %v1319
    %3631 = vmatpush2.msra.mxu0 %v1318
    %3632 = vmatprep.subr.mxu0 %v1315
    %3633 = vmatpush2.msra.mxu0 %v1314
    %3634 = vmatprep.subr.mxu0 %v1311
    %3635 = vmatpush2.msra.mxu0 %v1310
    %3636 = vmatprep.subr.mxu0 %v1307
    %3637 = vmatpush2.msra.mxu0 %v1306
    %3638 = vmatprep.subr.mxu0 %v1303
    %3639 = vmatpush2.msra.mxu0 %v1302
    %3640 = vmatprep.subr.mxu0 %v1299
    %3641 = vmatpush2.msra.mxu0 %v1298
    %3642 = vmatprep.subr.mxu0 %v1295
    %3643 = vmatpush2.msra.mxu0 %v1294
    %3644 = vmatprep.subr.mxu0 %v1291
    %3645 = vmatpush2.msra.mxu0 %v1290
    %3646 = vmatprep.subr.mxu0 %v1287
    %3647 = vmatpush2.msra.mxu0 %v1286
    %3648 = vmatprep.subr.mxu0 %v1283
    %3649 = vmatpush2.msra.mxu0 %v1282
    %3650 = vmatprep.mubr.f32.mxu0 %v3357
    %3651 = vmatmul.mubr.f32.gmra.mxu0 %v3582
    %v3652 = vpop.f32.mrf.mxu0
    %v3653 = vadd.f32 %v1578, %v3652
    %v3654 = vpop.f32.mrf.mxu0
    %v3655 = vadd.f32 %v1582, %v3654
    %3656 = vdwg.mxu0
    %3657 = vmatprep.subr.mxu0 %v1281
    %3658 = vmatpush1.msra.mxu0 %v1280
    %3659 = vmatprep.subr.mxu0 %v1277
    %3660 = vmatpush1.msra.mxu0 %v1276
    %3661 = vmatprep.subr.mxu0 %v1273
    %3662 = vmatpush1.msra.mxu0 %v1272
    %3663 = vmatprep.subr.mxu0 %v1269
    %3664 = vmatpush1.msra.mxu0 %v1268
    %3665 = vmatprep.subr.mxu0 %v1265
    %3666 = vmatpush1.msra.mxu0 %v1264
    %3667 = vmatprep.subr.mxu0 %v1261
    %3668 = vmatpush1.msra.mxu0 %v1260
    %3669 = vmatprep.subr.mxu0 %v1257
    %3670 = vmatpush1.msra.mxu0 %v1256
    %3671 = vmatprep.subr.mxu0 %v1253
    %3672 = vmatpush1.msra.mxu0 %v1252
    %3673 = vmatprep.subr.mxu0 %v1249
    %3674 = vmatpush1.msra.mxu0 %v1248
    %3675 = vmatprep.subr.mxu0 %v1245
    %3676 = vmatpush1.msra.mxu0 %v1244
    %3677 = vmatprep.subr.mxu0 %v1241
    %3678 = vmatpush1.msra.mxu0 %v1240
    %3679 = vmatprep.subr.mxu0 %v1237
    %3680 = vmatpush1.msra.mxu0 %v1236
    %3681 = vmatprep.subr.mxu0 %v1233
    %3682 = vmatpush1.msra.mxu0 %v1232
    %3683 = vmatprep.subr.mxu0 %v1229
    %3684 = vmatpush1.msra.mxu0 %v1228
    %3685 = vmatprep.subr.mxu0 %v1225
    %3686 = vmatpush1.msra.mxu0 %v1224
    %3687 = vmatprep.subr.mxu0 %v1221
    %3688 = vmatpush1.msra.mxu0 %v1220
    %3689 = vmatprep.subr.mxu0 %v1345
    %3690 = vmatpush2.msra.mxu0 %v1344
    %3691 = vmatprep.subr.mxu0 %v1341
    %3692 = vmatpush2.msra.mxu0 %v1340
    %3693 = vmatprep.subr.mxu0 %v1337
    %3694 = vmatpush2.msra.mxu0 %v1336
    %3695 = vmatprep.subr.mxu0 %v1333
    %3696 = vmatpush2.msra.mxu0 %v1332
    %3697 = vmatprep.subr.mxu0 %v1329
    %3698 = vmatpush2.msra.mxu0 %v1328
    %3699 = vmatprep.subr.mxu0 %v1325
    %3700 = vmatpush2.msra.mxu0 %v1324
    %3701 = vmatprep.subr.mxu0 %v1321
    %3702 = vmatpush2.msra.mxu0 %v1320
    %3703 = vmatprep.subr.mxu0 %v1317
    %3704 = vmatpush2.msra.mxu0 %v1316
    %3705 = vmatprep.subr.mxu0 %v1313
    %3706 = vmatpush2.msra.mxu0 %v1312
    %3707 = vmatprep.subr.mxu0 %v1309
    %3708 = vmatpush2.msra.mxu0 %v1308
    %3709 = vmatprep.subr.mxu0 %v1305
    %3710 = vmatpush2.msra.mxu0 %v1304
    %3711 = vmatprep.subr.mxu0 %v1301
    %3712 = vmatpush2.msra.mxu0 %v1300
    %3713 = vmatprep.subr.mxu0 %v1297
    %3714 = vmatpush2.msra.mxu0 %v1296
    %3715 = vmatprep.subr.mxu0 %v1293
    %3716 = vmatpush2.msra.mxu0 %v1292
    %3717 = vmatprep.subr.mxu0 %v1289
    %3718 = vmatpush2.msra.mxu0 %v1288
    %3719 = vmatprep.subr.mxu0 %v1285
    %3720 = vmatpush2.msra.mxu0 %v1284
    %3721 = vmatprep.mubr.f32.mxu0 %v3357
    %3722 = vmatmul.mubr.f32.gmra.mxu0 %v3582
    %v3723 = vpop.f32.mrf.mxu0
    %v3724 = vadd.f32 %v1586, %v3723
    %v3725 = vpop.f32.mrf.mxu0
    %v3726 = vadd.f32 %v1590, %v3725
    %3727 = vdwg.mxu0
    %v3728 = vxor.u32 %v3653, 2147483648
    %v3729 = vxor.u32 %v3655, 2147483648
    %v3730 = vxor.u32 %v3724, 2147483648
    %v3731 = vmul.f32 %v3728, 1.442695
    %v3732 = vpow.pop %v3731
    %v3733 = vmul.f32 %v3729, 1.442695
    %v3734 = vpow.pop %v3733
    %v3735 = vmul.f32 %v3730, 1.442695
    %v3736 = vpow.pop %v3735
    %v3737 = vadd.f32 %v3732, 1.0
    %v3738 = vadd.f32 %v3734, 1.0
    %v3739 = vadd.f32 %v3736, 1.0
    %v3740 = vrcp.pop %v3737
    %v3741 = vmul.f32 1.0, %v3740
    %v3742 = vrcp.pop %v3738
    %v3743 = vmul.f32 1.0, %v3742
    %v3744 = vrcp.pop %v3739
    %v3745 = vmul.f32 1.0, %v3744
    %v3746 = vtanh.pop %v3726
    %v3747 = vmul.f32 %v3743, %v3360
    %v3748 = vmul.f32 %v3741, %v3746
    %v3749 = vadd.f32 %v3747, %v3748
    %v3750 = vtanh.pop %v3749
    %v3751 = vmul.f32 %v3745, %v3750
    %v3752 = vmul.f32 %v3357, 0.1
    %v3753 = vmul.f32 %v3751, 0.9
    %v3754 = vadd.f32 %v3752, %v3753
    %v3755 = vmul.f32 %v3360, 0.1
    %v3756 = vmul.f32 %v3749, 0.9
    %v3757 = vadd.f32 %v3755, %v3756
    %v3758 = vmul.f32 %v3754, %v1769
    %v3759 = vsel %vm1772, %v3758, 0.0
    %3760 = vadd.xlane.f32.xlu0 %v3759
    %v3761 = vpop.xlane.xlu0 %3760
    %v3762 = vadd.f32 %v3761, %v3401
    %v3763 = vadd.f32 %v3762, %v1781
    %vm3764 = vcmp.eq.s32.totalorder %v1350, 5
    %v3765 = vsel %vm3764, 1, 0
    %v3766 = vcvt.s32.f32 %v3765
    %3768 = vset.pattern.permute.xlu0 0
    %3769 = vperm.xlu0 %3768, %v3763
    %v3770 = vpop.permute.xlu0 %3769
    %v3772 = vmul.f32 %v3770, %v3766
    %v3773 = vadd.f32 %v3376, %v3772
    %v3774 = vrot.slane %v1053, 6
    %v3775 = vrot.slane %v1055, 6
    %v3776 = vrot.slane %v1130, 6
    %v3777 = vrot.slane %v1132, 6
    %v3782 = vrot.slane %v1059, 5
    %v3783 = vrot.slane %v1061, 5
    %v3784 = vrot.slane %v1136, 5
    %v3785 = vrot.slane %v1138, 5
    %v3790 = vsel %vm179, %v3774, %v3782
    %v3791 = vsel %vm179, %v3775, %v3783
    %v3792 = vsel %vm179, %v3776, %v3784
    %v3793 = vsel %vm179, %v3777, %v3785
    %v3794 = vrot.slane %v1150, 6
    %v3796 = vrot.slane %v1152, 5
    %v3798 = vsel %vm179, %v3794, %v3796
    %v3799 = vmul.f32 %v3770, %v1375
    %v3800 = vmul.f32 %v3770, %v1379
    %v3801 = vmul.f32 %v3770, %v1383
    %v3802 = vmul.f32 %v3770, %v1387
    %v3803 = vadd.f32 %v3790, %v3799
    %v3804 = vadd.f32 %v3791, %v3800
    %v3805 = vadd.f32 %v3792, %v3801
    %v3806 = vadd.f32 %v3793, %v3802
    %3807 = vmatprep.subr.mxu0 %v1215
    %3808 = vmatpush1.msra.mxu0 %v1214
    %3809 = vmatprep.subr.mxu0 %v1211
    %3810 = vmatpush1.msra.mxu0 %v1210
    %3811 = vmatprep.subr.mxu0 %v1207
    %3812 = vmatpush1.msra.mxu0 %v1206
    %3813 = vmatprep.subr.mxu0 %v1203
    %3814 = vmatpush1.msra.mxu0 %v1202
    %3815 = vmatprep.subr.mxu0 %v1199
    %3816 = vmatpush1.msra.mxu0 %v1198
    %3817 = vmatprep.subr.mxu0 %v1195
    %3818 = vmatpush1.msra.mxu0 %v1194
    %3819 = vmatprep.subr.mxu0 %v1191
    %3820 = vmatpush1.msra.mxu0 %v1190
    %3821 = vmatprep.subr.mxu0 %v1187
    %3822 = vmatpush1.msra.mxu0 %v1186
    %3823 = vmatprep.subr.mxu0 %v1183
    %3824 = vmatpush1.msra.mxu0 %v1182
    %3825 = vmatprep.subr.mxu0 %v1179
    %3826 = vmatpush1.msra.mxu0 %v1178
    %3827 = vmatprep.subr.mxu0 %v1175
    %3828 = vmatpush1.msra.mxu0 %v1174
    %3829 = vmatprep.subr.mxu0 %v1171
    %3830 = vmatpush1.msra.mxu0 %v1170
    %3831 = vmatprep.subr.mxu0 %v1167
    %3832 = vmatpush1.msra.mxu0 %v1166
    %3833 = vmatprep.subr.mxu0 %v1163
    %3834 = vmatpush1.msra.mxu0 %v1162
    %3835 = vmatprep.subr.mxu0 %v1159
    %3836 = vmatpush1.msra.mxu0 %v1158
    %3837 = vmatprep.subr.mxu0 %v1155
    %3838 = vmatpush1.msra.mxu0 %v1154
    %3839 = vmatprep.subr.mxu0 0.0
    %3840 = vmatpush2.msra.mxu0 0.0
    %3841 = vmatprep.subr.mxu0 0.0
    %3842 = vmatpush2.msra.mxu0 0.0
    %3843 = vmatprep.subr.mxu0 0.0
    %3844 = vmatpush2.msra.mxu0 0.0
    %3845 = vmatprep.subr.mxu0 0.0
    %3846 = vmatpush2.msra.mxu0 0.0
    %3847 = vmatprep.subr.mxu0 0.0
    %3848 = vmatpush2.msra.mxu0 0.0
    %3849 = vmatprep.subr.mxu0 0.0
    %3850 = vmatpush2.msra.mxu0 0.0
    %3851 = vmatprep.subr.mxu0 0.0
    %3852 = vmatpush2.msra.mxu0 0.0
    %3853 = vmatprep.subr.mxu0 0.0
    %3854 = vmatpush2.msra.mxu0 0.0
    %3855 = vmatprep.subr.mxu0 0.0
    %3856 = vmatpush2.msra.mxu0 0.0
    %3857 = vmatprep.subr.mxu0 0.0
    %3858 = vmatpush2.msra.mxu0 0.0
    %3859 = vmatprep.subr.mxu0 0.0
    %3860 = vmatpush2.msra.mxu0 0.0
    %3861 = vmatprep.subr.mxu0 0.0
    %3862 = vmatpush2.msra.mxu0 0.0
    %3863 = vmatprep.subr.mxu0 0.0
    %3864 = vmatpush2.msra.mxu0 0.0
    %3865 = vmatprep.subr.mxu0 0.0
    %3866 = vmatpush2.msra.mxu0 0.0
    %3867 = vmatprep.subr.mxu0 0.0
    %3868 = vmatpush2.msra.mxu0 0.0
    %3869 = vmatprep.subr.mxu0 0.0
    %3870 = vmatpush2.msra.mxu0 0.0
    %3871 = vmatprep.mubr.f32.mxu0 0.0
    %3872 = vmatmul.mubr.f32.gmra.mxu0 %v3582
    %v3873 = vpop.f32.mrf.mxu0
    %v3874 = vadd.f32 0.0, %v3873
    %v3875 = vpop.f32.mrf.mxu0
    %v3876 = vadd.f32 0.0, %v3875
    %3877 = vdwg.mxu0
    %3878 = vmatprep.subr.mxu0 %v1217
    %3879 = vmatpush1.msra.mxu0 %v1216
    %3880 = vmatprep.subr.mxu0 %v1213
    %3881 = vmatpush1.msra.mxu0 %v1212
    %3882 = vmatprep.subr.mxu0 %v1209
    %3883 = vmatpush1.msra.mxu0 %v1208
    %3884 = vmatprep.subr.mxu0 %v1205
    %3885 = vmatpush1.msra.mxu0 %v1204
    %3886 = vmatprep.subr.mxu0 %v1201
    %3887 = vmatpush1.msra.mxu0 %v1200
    %3888 = vmatprep.subr.mxu0 %v1197
    %3889 = vmatpush1.msra.mxu0 %v1196
    %3890 = vmatprep.subr.mxu0 %v1193
    %3891 = vmatpush1.msra.mxu0 %v1192
    %3892 = vmatprep.subr.mxu0 %v1189
    %3893 = vmatpush1.msra.mxu0 %v1188
    %3894 = vmatprep.subr.mxu0 %v1185
    %3895 = vmatpush1.msra.mxu0 %v1184
    %3896 = vmatprep.subr.mxu0 %v1181
    %3897 = vmatpush1.msra.mxu0 %v1180
    %3898 = vmatprep.subr.mxu0 %v1177
    %3899 = vmatpush1.msra.mxu0 %v1176
    %3900 = vmatprep.subr.mxu0 %v1173
    %3901 = vmatpush1.msra.mxu0 %v1172
    %3902 = vmatprep.subr.mxu0 %v1169
    %3903 = vmatpush1.msra.mxu0 %v1168
    %3904 = vmatprep.subr.mxu0 %v1165
    %3905 = vmatpush1.msra.mxu0 %v1164
    %3906 = vmatprep.subr.mxu0 %v1161
    %3907 = vmatpush1.msra.mxu0 %v1160
    %3908 = vmatprep.subr.mxu0 %v1157
    %3909 = vmatpush1.msra.mxu0 %v1156
    %3910 = vmatprep.subr.mxu0 0.0
    %3911 = vmatpush2.msra.mxu0 0.0
    %3912 = vmatprep.subr.mxu0 0.0
    %3913 = vmatpush2.msra.mxu0 0.0
    %3914 = vmatprep.subr.mxu0 0.0
    %3915 = vmatpush2.msra.mxu0 0.0
    %3916 = vmatprep.subr.mxu0 0.0
    %3917 = vmatpush2.msra.mxu0 0.0
    %3918 = vmatprep.subr.mxu0 0.0
    %3919 = vmatpush2.msra.mxu0 0.0
    %3920 = vmatprep.subr.mxu0 0.0
    %3921 = vmatpush2.msra.mxu0 0.0
    %3922 = vmatprep.subr.mxu0 0.0
    %3923 = vmatpush2.msra.mxu0 0.0
    %3924 = vmatprep.subr.mxu0 0.0
    %3925 = vmatpush2.msra.mxu0 0.0
    %3926 = vmatprep.subr.mxu0 0.0
    %3927 = vmatpush2.msra.mxu0 0.0
    %3928 = vmatprep.subr.mxu0 0.0
    %3929 = vmatpush2.msra.mxu0 0.0
    %3930 = vmatprep.subr.mxu0 0.0
    %3931 = vmatpush2.msra.mxu0 0.0
    %3932 = vmatprep.subr.mxu0 0.0
    %3933 = vmatpush2.msra.mxu0 0.0
    %3934 = vmatprep.subr.mxu0 0.0
    %3935 = vmatpush2.msra.mxu0 0.0
    %3936 = vmatprep.subr.mxu0 0.0
    %3937 = vmatpush2.msra.mxu0 0.0
    %3938 = vmatprep.subr.mxu0 0.0
    %3939 = vmatpush2.msra.mxu0 0.0
    %3940 = vmatprep.subr.mxu0 0.0
    %3941 = vmatpush2.msra.mxu0 0.0
    %3942 = vmatprep.mubr.f32.mxu0 0.0
    %3943 = vmatmul.mubr.f32.gmra.mxu0 %v3582
    %v3944 = vpop.f32.mrf.mxu0
    %v3945 = vadd.f32 0.0, %v3944
    %v3946 = vpop.f32.mrf.mxu0
    %v3947 = vadd.f32 0.0, %v3946
    %3948 = vdwg.mxu0
    %v3949 = vadd.f32 %v3803, %v3874
    %v3950 = vadd.f32 %v3804, %v3876
    %v3951 = vadd.f32 %v3805, %v3945
    %v3952 = vadd.f32 %v3806, %v3947
    %v3953 = vxor.u32 %v3949, 2147483648
    %v3954 = vxor.u32 %v3950, 2147483648
    %v3955 = vxor.u32 %v3951, 2147483648
    %v3956 = vmul.f32 %v3953, 1.442695
    %v3957 = vpow.pop %v3956
    %v3958 = vmul.f32 %v3954, 1.442695
    %v3959 = vpow.pop %v3958
    %v3960 = vmul.f32 %v3955, 1.442695
    %v3961 = vpow.pop %v3960
    %v3962 = vadd.f32 %v3957, 1.0
    %v3963 = vadd.f32 %v3959, 1.0
    %v3964 = vadd.f32 %v3961, 1.0
    %v3965 = vrcp.pop %v3962
    %v3966 = vmul.f32 1.0, %v3965
    %v3967 = vrcp.pop %v3963
    %v3968 = vmul.f32 1.0, %v3967
    %v3969 = vrcp.pop %v3964
    %v3970 = vmul.f32 1.0, %v3969
    %v3971 = vtanh.pop %v3952
    %v3972 = vmul.f32 %v3968, %v3585
    %v3973 = vmul.f32 %v3966, %v3971
    %v3974 = vadd.f32 %v3972, %v3973
    %v3975 = vtanh.pop %v3974
    %v3976 = vmul.f32 %v3970, %v3975
    %v3977 = vmul.f32 %v3582, 0.1
    %v3978 = vmul.f32 %v3976, 0.9
    %v3979 = vadd.f32 %v3977, %v3978
    %v3980 = vmul.f32 %v3585, 0.1
    %v3981 = vmul.f32 %v3974, 0.9
    %v3982 = vadd.f32 %v3980, %v3981
    %3983 = vmatprep.subr.mxu0 %v1279
    %3984 = vmatpush1.msra.mxu0 %v1278
    %3985 = vmatprep.subr.mxu0 %v1275
    %3986 = vmatpush1.msra.mxu0 %v1274
    %3987 = vmatprep.subr.mxu0 %v1271
    %3988 = vmatpush1.msra.mxu0 %v1270
    %3989 = vmatprep.subr.mxu0 %v1267
    %3990 = vmatpush1.msra.mxu0 %v1266
    %3991 = vmatprep.subr.mxu0 %v1263
    %3992 = vmatpush1.msra.mxu0 %v1262
    %3993 = vmatprep.subr.mxu0 %v1259
    %3994 = vmatpush1.msra.mxu0 %v1258
    %3995 = vmatprep.subr.mxu0 %v1255
    %3996 = vmatpush1.msra.mxu0 %v1254
    %3997 = vmatprep.subr.mxu0 %v1251
    %3998 = vmatpush1.msra.mxu0 %v1250
    %3999 = vmatprep.subr.mxu0 %v1247
    %4000 = vmatpush1.msra.mxu0 %v1246
    %4001 = vmatprep.subr.mxu0 %v1243
    %4002 = vmatpush1.msra.mxu0 %v1242
    %4003 = vmatprep.subr.mxu0 %v1239
    %4004 = vmatpush1.msra.mxu0 %v1238
    %4005 = vmatprep.subr.mxu0 %v1235
    %4006 = vmatpush1.msra.mxu0 %v1234
    %4007 = vmatprep.subr.mxu0 %v1231
    %4008 = vmatpush1.msra.mxu0 %v1230
    %4009 = vmatprep.subr.mxu0 %v1227
    %4010 = vmatpush1.msra.mxu0 %v1226
    %4011 = vmatprep.subr.mxu0 %v1223
    %4012 = vmatpush1.msra.mxu0 %v1222
    %4013 = vmatprep.subr.mxu0 %v1219
    %4014 = vmatpush1.msra.mxu0 %v1218
    %4015 = vmatprep.subr.mxu0 %v1343
    %4016 = vmatpush2.msra.mxu0 %v1342
    %4017 = vmatprep.subr.mxu0 %v1339
    %4018 = vmatpush2.msra.mxu0 %v1338
    %4019 = vmatprep.subr.mxu0 %v1335
    %4020 = vmatpush2.msra.mxu0 %v1334
    %4021 = vmatprep.subr.mxu0 %v1331
    %4022 = vmatpush2.msra.mxu0 %v1330
    %4023 = vmatprep.subr.mxu0 %v1327
    %4024 = vmatpush2.msra.mxu0 %v1326
    %4025 = vmatprep.subr.mxu0 %v1323
    %4026 = vmatpush2.msra.mxu0 %v1322
    %4027 = vmatprep.subr.mxu0 %v1319
    %4028 = vmatpush2.msra.mxu0 %v1318
    %4029 = vmatprep.subr.mxu0 %v1315
    %4030 = vmatpush2.msra.mxu0 %v1314
    %4031 = vmatprep.subr.mxu0 %v1311
    %4032 = vmatpush2.msra.mxu0 %v1310
    %4033 = vmatprep.subr.mxu0 %v1307
    %4034 = vmatpush2.msra.mxu0 %v1306
    %4035 = vmatprep.subr.mxu0 %v1303
    %4036 = vmatpush2.msra.mxu0 %v1302
    %4037 = vmatprep.subr.mxu0 %v1299
    %4038 = vmatpush2.msra.mxu0 %v1298
    %4039 = vmatprep.subr.mxu0 %v1295
    %4040 = vmatpush2.msra.mxu0 %v1294
    %4041 = vmatprep.subr.mxu0 %v1291
    %4042 = vmatpush2.msra.mxu0 %v1290
    %4043 = vmatprep.subr.mxu0 %v1287
    %4044 = vmatpush2.msra.mxu0 %v1286
    %4045 = vmatprep.subr.mxu0 %v1283
    %4046 = vmatpush2.msra.mxu0 %v1282
    %4047 = vmatprep.mubr.f32.mxu0 %v3754
    %4048 = vmatmul.mubr.f32.gmra.mxu0 %v3979
    %v4049 = vpop.f32.mrf.mxu0
    %v4050 = vadd.f32 %v1578, %v4049
    %v4051 = vpop.f32.mrf.mxu0
    %v4052 = vadd.f32 %v1582, %v4051
    %4053 = vdwg.mxu0
    %4054 = vmatprep.subr.mxu0 %v1281
    %4055 = vmatpush1.msra.mxu0 %v1280
    %4056 = vmatprep.subr.mxu0 %v1277
    %4057 = vmatpush1.msra.mxu0 %v1276
    %4058 = vmatprep.subr.mxu0 %v1273
    %4059 = vmatpush1.msra.mxu0 %v1272
    %4060 = vmatprep.subr.mxu0 %v1269
    %4061 = vmatpush1.msra.mxu0 %v1268
    %4062 = vmatprep.subr.mxu0 %v1265
    %4063 = vmatpush1.msra.mxu0 %v1264
    %4064 = vmatprep.subr.mxu0 %v1261
    %4065 = vmatpush1.msra.mxu0 %v1260
    %4066 = vmatprep.subr.mxu0 %v1257
    %4067 = vmatpush1.msra.mxu0 %v1256
    %4068 = vmatprep.subr.mxu0 %v1253
    %4069 = vmatpush1.msra.mxu0 %v1252
    %4070 = vmatprep.subr.mxu0 %v1249
    %4071 = vmatpush1.msra.mxu0 %v1248
    %4072 = vmatprep.subr.mxu0 %v1245
    %4073 = vmatpush1.msra.mxu0 %v1244
    %4074 = vmatprep.subr.mxu0 %v1241
    %4075 = vmatpush1.msra.mxu0 %v1240
    %4076 = vmatprep.subr.mxu0 %v1237
    %4077 = vmatpush1.msra.mxu0 %v1236
    %4078 = vmatprep.subr.mxu0 %v1233
    %4079 = vmatpush1.msra.mxu0 %v1232
    %4080 = vmatprep.subr.mxu0 %v1229
    %4081 = vmatpush1.msra.mxu0 %v1228
    %4082 = vmatprep.subr.mxu0 %v1225
    %4083 = vmatpush1.msra.mxu0 %v1224
    %4084 = vmatprep.subr.mxu0 %v1221
    %4085 = vmatpush1.msra.mxu0 %v1220
    %4086 = vmatprep.subr.mxu0 %v1345
    %4087 = vmatpush2.msra.mxu0 %v1344
    %4088 = vmatprep.subr.mxu0 %v1341
    %4089 = vmatpush2.msra.mxu0 %v1340
    %4090 = vmatprep.subr.mxu0 %v1337
    %4091 = vmatpush2.msra.mxu0 %v1336
    %4092 = vmatprep.subr.mxu0 %v1333
    %4093 = vmatpush2.msra.mxu0 %v1332
    %4094 = vmatprep.subr.mxu0 %v1329
    %4095 = vmatpush2.msra.mxu0 %v1328
    %4096 = vmatprep.subr.mxu0 %v1325
    %4097 = vmatpush2.msra.mxu0 %v1324
    %4098 = vmatprep.subr.mxu0 %v1321
    %4099 = vmatpush2.msra.mxu0 %v1320
    %4100 = vmatprep.subr.mxu0 %v1317
    %4101 = vmatpush2.msra.mxu0 %v1316
    %4102 = vmatprep.subr.mxu0 %v1313
    %4103 = vmatpush2.msra.mxu0 %v1312
    %4104 = vmatprep.subr.mxu0 %v1309
    %4105 = vmatpush2.msra.mxu0 %v1308
    %4106 = vmatprep.subr.mxu0 %v1305
    %4107 = vmatpush2.msra.mxu0 %v1304
    %4108 = vmatprep.subr.mxu0 %v1301
    %4109 = vmatpush2.msra.mxu0 %v1300
    %4110 = vmatprep.subr.mxu0 %v1297
    %4111 = vmatpush2.msra.mxu0 %v1296
    %4112 = vmatprep.subr.mxu0 %v1293
    %4113 = vmatpush2.msra.mxu0 %v1292
    %4114 = vmatprep.subr.mxu0 %v1289
    %4115 = vmatpush2.msra.mxu0 %v1288
    %4116 = vmatprep.subr.mxu0 %v1285
    %4117 = vmatpush2.msra.mxu0 %v1284
    %4118 = vmatprep.mubr.f32.mxu0 %v3754
    %4119 = vmatmul.mubr.f32.gmra.mxu0 %v3979
    %v4120 = vpop.f32.mrf.mxu0
    %v4121 = vadd.f32 %v1586, %v4120
    %v4122 = vpop.f32.mrf.mxu0
    %v4123 = vadd.f32 %v1590, %v4122
    %4124 = vdwg.mxu0
    %v4125 = vxor.u32 %v4050, 2147483648
    %v4126 = vxor.u32 %v4052, 2147483648
    %v4127 = vxor.u32 %v4121, 2147483648
    %v4128 = vmul.f32 %v4125, 1.442695
    %v4129 = vpow.pop %v4128
    %v4130 = vmul.f32 %v4126, 1.442695
    %v4131 = vpow.pop %v4130
    %v4132 = vmul.f32 %v4127, 1.442695
    %v4133 = vpow.pop %v4132
    %v4134 = vadd.f32 %v4129, 1.0
    %v4135 = vadd.f32 %v4131, 1.0
    %v4136 = vadd.f32 %v4133, 1.0
    %v4137 = vrcp.pop %v4134
    %v4138 = vmul.f32 1.0, %v4137
    %v4139 = vrcp.pop %v4135
    %v4140 = vmul.f32 1.0, %v4139
    %v4141 = vrcp.pop %v4136
    %v4142 = vmul.f32 1.0, %v4141
    %v4143 = vtanh.pop %v4123
    %v4144 = vmul.f32 %v4140, %v3757
    %v4145 = vmul.f32 %v4138, %v4143
    %v4146 = vadd.f32 %v4144, %v4145
    %v4147 = vtanh.pop %v4146
    %v4148 = vmul.f32 %v4142, %v4147
    %v4149 = vmul.f32 %v3754, 0.1
    %v4150 = vmul.f32 %v4148, 0.9
    %v4151 = vadd.f32 %v4149, %v4150
    %v4152 = vmul.f32 %v3757, 0.1
    %v4153 = vmul.f32 %v4146, 0.9
    %v4154 = vadd.f32 %v4152, %v4153
    %v4155 = vmul.f32 %v4151, %v1769
    %v4156 = vsel %vm1772, %v4155, 0.0
    %4157 = vadd.xlane.f32.xlu0 %v4156
    %v4158 = vpop.xlane.xlu0 %4157
    %v4159 = vadd.f32 %v4158, %v3798
    %v4160 = vadd.f32 %v4159, %v1781
    %vm4161 = vcmp.eq.s32.totalorder %v1350, 6
    %v4162 = vsel %vm4161, 1, 0
    %v4163 = vcvt.s32.f32 %v4162
    %4165 = vset.pattern.permute.xlu0 0
    %4166 = vperm.xlu0 %4165, %v4160
    %v4167 = vpop.permute.xlu0 %4166
    %v4169 = vmul.f32 %v4167, %v4163
    %v4170 = vadd.f32 %v3773, %v4169
    %v4171 = vrot.slane %v1053, 7
    %v4172 = vrot.slane %v1055, 7
    %v4173 = vrot.slane %v1130, 7
    %v4174 = vrot.slane %v1132, 7
    %v4179 = vrot.slane %v1059, 6
    %v4180 = vrot.slane %v1061, 6
    %v4181 = vrot.slane %v1136, 6
    %v4182 = vrot.slane %v1138, 6
    %v4187 = vsel %vm179, %v4171, %v4179
    %v4188 = vsel %vm179, %v4172, %v4180
    %v4189 = vsel %vm179, %v4173, %v4181
    %v4190 = vsel %vm179, %v4174, %v4182
    %v4191 = vrot.slane %v1150, 7
    %v4193 = vrot.slane %v1152, 6
    %v4195 = vsel %vm179, %v4191, %v4193
    %v4196 = vmul.f32 %v4167, %v1375
    %v4197 = vmul.f32 %v4167, %v1379
    %v4198 = vmul.f32 %v4167, %v1383
    %v4199 = vmul.f32 %v4167, %v1387
    %v4200 = vadd.f32 %v4187, %v4196
    %v4201 = vadd.f32 %v4188, %v4197
    %v4202 = vadd.f32 %v4189, %v4198
    %v4203 = vadd.f32 %v4190, %v4199
    %4204 = vmatprep.subr.mxu0 %v1215
    %4205 = vmatpush1.msra.mxu0 %v1214
    %4206 = vmatprep.subr.mxu0 %v1211
    %4207 = vmatpush1.msra.mxu0 %v1210
    %4208 = vmatprep.subr.mxu0 %v1207
    %4209 = vmatpush1.msra.mxu0 %v1206
    %4210 = vmatprep.subr.mxu0 %v1203
    %4211 = vmatpush1.msra.mxu0 %v1202
    %4212 = vmatprep.subr.mxu0 %v1199
    %4213 = vmatpush1.msra.mxu0 %v1198
    %4214 = vmatprep.subr.mxu0 %v1195
    %4215 = vmatpush1.msra.mxu0 %v1194
    %4216 = vmatprep.subr.mxu0 %v1191
    %4217 = vmatpush1.msra.mxu0 %v1190
    %4218 = vmatprep.subr.mxu0 %v1187
    %4219 = vmatpush1.msra.mxu0 %v1186
    %4220 = vmatprep.subr.mxu0 %v1183
    %4221 = vmatpush1.msra.mxu0 %v1182
    %4222 = vmatprep.subr.mxu0 %v1179
    %4223 = vmatpush1.msra.mxu0 %v1178
    %4224 = vmatprep.subr.mxu0 %v1175
    %4225 = vmatpush1.msra.mxu0 %v1174
    %4226 = vmatprep.subr.mxu0 %v1171
    %4227 = vmatpush1.msra.mxu0 %v1170
    %4228 = vmatprep.subr.mxu0 %v1167
    %4229 = vmatpush1.msra.mxu0 %v1166
    %4230 = vmatprep.subr.mxu0 %v1163
    %4231 = vmatpush1.msra.mxu0 %v1162
    %4232 = vmatprep.subr.mxu0 %v1159
    %4233 = vmatpush1.msra.mxu0 %v1158
    %4234 = vmatprep.subr.mxu0 %v1155
    %4235 = vmatpush1.msra.mxu0 %v1154
    %4236 = vmatprep.subr.mxu0 0.0
    %4237 = vmatpush2.msra.mxu0 0.0
    %4238 = vmatprep.subr.mxu0 0.0
    %4239 = vmatpush2.msra.mxu0 0.0
    %4240 = vmatprep.subr.mxu0 0.0
    %4241 = vmatpush2.msra.mxu0 0.0
    %4242 = vmatprep.subr.mxu0 0.0
    %4243 = vmatpush2.msra.mxu0 0.0
    %4244 = vmatprep.subr.mxu0 0.0
    %4245 = vmatpush2.msra.mxu0 0.0
    %4246 = vmatprep.subr.mxu0 0.0
    %4247 = vmatpush2.msra.mxu0 0.0
    %4248 = vmatprep.subr.mxu0 0.0
    %4249 = vmatpush2.msra.mxu0 0.0
    %4250 = vmatprep.subr.mxu0 0.0
    %4251 = vmatpush2.msra.mxu0 0.0
    %4252 = vmatprep.subr.mxu0 0.0
    %4253 = vmatpush2.msra.mxu0 0.0
    %4254 = vmatprep.subr.mxu0 0.0
    %4255 = vmatpush2.msra.mxu0 0.0
    %4256 = vmatprep.subr.mxu0 0.0
    %4257 = vmatpush2.msra.mxu0 0.0
    %4258 = vmatprep.subr.mxu0 0.0
    %4259 = vmatpush2.msra.mxu0 0.0
    %4260 = vmatprep.subr.mxu0 0.0
    %4261 = vmatpush2.msra.mxu0 0.0
    %4262 = vmatprep.subr.mxu0 0.0
    %4263 = vmatpush2.msra.mxu0 0.0
    %4264 = vmatprep.subr.mxu0 0.0
    %4265 = vmatpush2.msra.mxu0 0.0
    %4266 = vmatprep.subr.mxu0 0.0
    %4267 = vmatpush2.msra.mxu0 0.0
    %4268 = vmatprep.mubr.f32.mxu0 0.0
    %4269 = vmatmul.mubr.f32.gmra.mxu0 %v3979
    %v4270 = vpop.f32.mrf.mxu0
    %v4271 = vadd.f32 0.0, %v4270
    %v4272 = vpop.f32.mrf.mxu0
    %v4273 = vadd.f32 0.0, %v4272
    %4274 = vdwg.mxu0
    %4275 = vmatprep.subr.mxu0 %v1217
    %4276 = vmatpush1.msra.mxu0 %v1216
    %4277 = vmatprep.subr.mxu0 %v1213
    %4278 = vmatpush1.msra.mxu0 %v1212
    %4279 = vmatprep.subr.mxu0 %v1209
    %4280 = vmatpush1.msra.mxu0 %v1208
    %4281 = vmatprep.subr.mxu0 %v1205
    %4282 = vmatpush1.msra.mxu0 %v1204
    %4283 = vmatprep.subr.mxu0 %v1201
    %4284 = vmatpush1.msra.mxu0 %v1200
    %4285 = vmatprep.subr.mxu0 %v1197
    %4286 = vmatpush1.msra.mxu0 %v1196
    %4287 = vmatprep.subr.mxu0 %v1193
    %4288 = vmatpush1.msra.mxu0 %v1192
    %4289 = vmatprep.subr.mxu0 %v1189
    %4290 = vmatpush1.msra.mxu0 %v1188
    %4291 = vmatprep.subr.mxu0 %v1185
    %4292 = vmatpush1.msra.mxu0 %v1184
    %4293 = vmatprep.subr.mxu0 %v1181
    %4294 = vmatpush1.msra.mxu0 %v1180
    %4295 = vmatprep.subr.mxu0 %v1177
    %4296 = vmatpush1.msra.mxu0 %v1176
    %4297 = vmatprep.subr.mxu0 %v1173
    %4298 = vmatpush1.msra.mxu0 %v1172
    %4299 = vmatprep.subr.mxu0 %v1169
    %4300 = vmatpush1.msra.mxu0 %v1168
    %4301 = vmatprep.subr.mxu0 %v1165
    %4302 = vmatpush1.msra.mxu0 %v1164
    %4303 = vmatprep.subr.mxu0 %v1161
    %4304 = vmatpush1.msra.mxu0 %v1160
    %4305 = vmatprep.subr.mxu0 %v1157
    %4306 = vmatpush1.msra.mxu0 %v1156
    %4307 = vmatprep.subr.mxu0 0.0
    %4308 = vmatpush2.msra.mxu0 0.0
    %4309 = vmatprep.subr.mxu0 0.0
    %4310 = vmatpush2.msra.mxu0 0.0
    %4311 = vmatprep.subr.mxu0 0.0
    %4312 = vmatpush2.msra.mxu0 0.0
    %4313 = vmatprep.subr.mxu0 0.0
    %4314 = vmatpush2.msra.mxu0 0.0
    %4315 = vmatprep.subr.mxu0 0.0
    %4316 = vmatpush2.msra.mxu0 0.0
    %4317 = vmatprep.subr.mxu0 0.0
    %4318 = vmatpush2.msra.mxu0 0.0
    %4319 = vmatprep.subr.mxu0 0.0
    %4320 = vmatpush2.msra.mxu0 0.0
    %4321 = vmatprep.subr.mxu0 0.0
    %4322 = vmatpush2.msra.mxu0 0.0
    %4323 = vmatprep.subr.mxu0 0.0
    %4324 = vmatpush2.msra.mxu0 0.0
    %4325 = vmatprep.subr.mxu0 0.0
    %4326 = vmatpush2.msra.mxu0 0.0
    %4327 = vmatprep.subr.mxu0 0.0
    %4328 = vmatpush2.msra.mxu0 0.0
    %4329 = vmatprep.subr.mxu0 0.0
    %4330 = vmatpush2.msra.mxu0 0.0
    %4331 = vmatprep.subr.mxu0 0.0
    %4332 = vmatpush2.msra.mxu0 0.0
    %4333 = vmatprep.subr.mxu0 0.0
    %4334 = vmatpush2.msra.mxu0 0.0
    %4335 = vmatprep.subr.mxu0 0.0
    %4336 = vmatpush2.msra.mxu0 0.0
    %4337 = vmatprep.subr.mxu0 0.0
    %4338 = vmatpush2.msra.mxu0 0.0
    %4339 = vmatprep.mubr.f32.mxu0 0.0
    %4340 = vmatmul.mubr.f32.gmra.mxu0 %v3979
    %v4341 = vpop.f32.mrf.mxu0
    %v4342 = vadd.f32 0.0, %v4341
    %v4343 = vpop.f32.mrf.mxu0
    %v4344 = vadd.f32 0.0, %v4343
    %4345 = vdwg.mxu0
    %v4346 = vadd.f32 %v4200, %v4271
    %v4347 = vadd.f32 %v4201, %v4273
    %v4348 = vadd.f32 %v4202, %v4342
    %v4349 = vadd.f32 %v4203, %v4344
    %v4350 = vxor.u32 %v4346, 2147483648
    %v4351 = vxor.u32 %v4347, 2147483648
    %v4352 = vxor.u32 %v4348, 2147483648
    %v4353 = vmul.f32 %v4350, 1.442695
    %v4354 = vpow.pop %v4353
    %v4355 = vmul.f32 %v4351, 1.442695
    %v4356 = vpow.pop %v4355
    %v4357 = vmul.f32 %v4352, 1.442695
    %v4358 = vpow.pop %v4357
    %v4359 = vadd.f32 %v4354, 1.0
    %v4360 = vadd.f32 %v4356, 1.0
    %v4361 = vadd.f32 %v4358, 1.0
    %v4362 = vrcp.pop %v4359
    %v4363 = vmul.f32 1.0, %v4362
    %v4364 = vrcp.pop %v4360
    %v4365 = vmul.f32 1.0, %v4364
    %v4366 = vrcp.pop %v4361
    %v4367 = vmul.f32 1.0, %v4366
    %v4368 = vtanh.pop %v4349
    %v4369 = vmul.f32 %v4365, %v3982
    %v4370 = vmul.f32 %v4363, %v4368
    %v4371 = vadd.f32 %v4369, %v4370
    %v4372 = vtanh.pop %v4371
    %v4373 = vmul.f32 %v4367, %v4372
    %v4374 = vmul.f32 %v3979, 0.1
    %v4375 = vmul.f32 %v4373, 0.9
    %v4376 = vadd.f32 %v4374, %v4375
    %4377 = vmatprep.subr.mxu0 %v1279
    %4378 = vmatpush1.msra.mxu0 %v1278
    %4379 = vmatprep.subr.mxu0 %v1275
    %4380 = vmatpush1.msra.mxu0 %v1274
    %4381 = vmatprep.subr.mxu0 %v1271
    %4382 = vmatpush1.msra.mxu0 %v1270
    %4383 = vmatprep.subr.mxu0 %v1267
    %4384 = vmatpush1.msra.mxu0 %v1266
    %4385 = vmatprep.subr.mxu0 %v1263
    %4386 = vmatpush1.msra.mxu0 %v1262
    %4387 = vmatprep.subr.mxu0 %v1259
    %4388 = vmatpush1.msra.mxu0 %v1258
    %4389 = vmatprep.subr.mxu0 %v1255
    %4390 = vmatpush1.msra.mxu0 %v1254
    %4391 = vmatprep.subr.mxu0 %v1251
    %4392 = vmatpush1.msra.mxu0 %v1250
    %4393 = vmatprep.subr.mxu0 %v1247
    %4394 = vmatpush1.msra.mxu0 %v1246
    %4395 = vmatprep.subr.mxu0 %v1243
    %4396 = vmatpush1.msra.mxu0 %v1242
    %4397 = vmatprep.subr.mxu0 %v1239
    %4398 = vmatpush1.msra.mxu0 %v1238
    %4399 = vmatprep.subr.mxu0 %v1235
    %4400 = vmatpush1.msra.mxu0 %v1234
    %4401 = vmatprep.subr.mxu0 %v1231
    %4402 = vmatpush1.msra.mxu0 %v1230
    %4403 = vmatprep.subr.mxu0 %v1227
    %4404 = vmatpush1.msra.mxu0 %v1226
    %4405 = vmatprep.subr.mxu0 %v1223
    %4406 = vmatpush1.msra.mxu0 %v1222
    %4407 = vmatprep.subr.mxu0 %v1219
    %4408 = vmatpush1.msra.mxu0 %v1218
    %4409 = vmatprep.subr.mxu0 %v1343
    %4410 = vmatpush2.msra.mxu0 %v1342
    %4411 = vmatprep.subr.mxu0 %v1339
    %4412 = vmatpush2.msra.mxu0 %v1338
    %4413 = vmatprep.subr.mxu0 %v1335
    %4414 = vmatpush2.msra.mxu0 %v1334
    %4415 = vmatprep.subr.mxu0 %v1331
    %4416 = vmatpush2.msra.mxu0 %v1330
    %4417 = vmatprep.subr.mxu0 %v1327
    %4418 = vmatpush2.msra.mxu0 %v1326
    %4419 = vmatprep.subr.mxu0 %v1323
    %4420 = vmatpush2.msra.mxu0 %v1322
    %4421 = vmatprep.subr.mxu0 %v1319
    %4422 = vmatpush2.msra.mxu0 %v1318
    %4423 = vmatprep.subr.mxu0 %v1315
    %4424 = vmatpush2.msra.mxu0 %v1314
    %4425 = vmatprep.subr.mxu0 %v1311
    %4426 = vmatpush2.msra.mxu0 %v1310
    %4427 = vmatprep.subr.mxu0 %v1307
    %4428 = vmatpush2.msra.mxu0 %v1306
    %4429 = vmatprep.subr.mxu0 %v1303
    %4430 = vmatpush2.msra.mxu0 %v1302
    %4431 = vmatprep.subr.mxu0 %v1299
    %4432 = vmatpush2.msra.mxu0 %v1298
    %4433 = vmatprep.subr.mxu0 %v1295
    %4434 = vmatpush2.msra.mxu0 %v1294
    %4435 = vmatprep.subr.mxu0 %v1291
    %4436 = vmatpush2.msra.mxu0 %v1290
    %4437 = vmatprep.subr.mxu0 %v1287
    %4438 = vmatpush2.msra.mxu0 %v1286
    %4439 = vmatprep.subr.mxu0 %v1283
    %4440 = vmatpush2.msra.mxu0 %v1282
    %4441 = vmatprep.mubr.f32.mxu0 %v4151
    %4442 = vmatmul.mubr.f32.gmra.mxu0 %v4376
    %v4443 = vpop.f32.mrf.mxu0
    %v4444 = vadd.f32 %v1578, %v4443
    %v4445 = vpop.f32.mrf.mxu0
    %v4446 = vadd.f32 %v1582, %v4445
    %4447 = vdwg.mxu0
    %4448 = vmatprep.subr.mxu0 %v1281
    %4449 = vmatpush1.msra.mxu0 %v1280
    %4450 = vmatprep.subr.mxu0 %v1277
    %4451 = vmatpush1.msra.mxu0 %v1276
    %4452 = vmatprep.subr.mxu0 %v1273
    %4453 = vmatpush1.msra.mxu0 %v1272
    %4454 = vmatprep.subr.mxu0 %v1269
    %4455 = vmatpush1.msra.mxu0 %v1268
    %4456 = vmatprep.subr.mxu0 %v1265
    %4457 = vmatpush1.msra.mxu0 %v1264
    %4458 = vmatprep.subr.mxu0 %v1261
    %4459 = vmatpush1.msra.mxu0 %v1260
    %4460 = vmatprep.subr.mxu0 %v1257
    %4461 = vmatpush1.msra.mxu0 %v1256
    %4462 = vmatprep.subr.mxu0 %v1253
    %4463 = vmatpush1.msra.mxu0 %v1252
    %4464 = vmatprep.subr.mxu0 %v1249
    %4465 = vmatpush1.msra.mxu0 %v1248
    %4466 = vmatprep.subr.mxu0 %v1245
    %4467 = vmatpush1.msra.mxu0 %v1244
    %4468 = vmatprep.subr.mxu0 %v1241
    %4469 = vmatpush1.msra.mxu0 %v1240
    %4470 = vmatprep.subr.mxu0 %v1237
    %4471 = vmatpush1.msra.mxu0 %v1236
    %4472 = vmatprep.subr.mxu0 %v1233
    %4473 = vmatpush1.msra.mxu0 %v1232
    %4474 = vmatprep.subr.mxu0 %v1229
    %4475 = vmatpush1.msra.mxu0 %v1228
    %4476 = vmatprep.subr.mxu0 %v1225
    %4477 = vmatpush1.msra.mxu0 %v1224
    %4478 = vmatprep.subr.mxu0 %v1221
    %4479 = vmatpush1.msra.mxu0 %v1220
    %4480 = vmatprep.subr.mxu0 %v1345
    %4481 = vmatpush2.msra.mxu0 %v1344
    %4482 = vmatprep.subr.mxu0 %v1341
    %4483 = vmatpush2.msra.mxu0 %v1340
    %4484 = vmatprep.subr.mxu0 %v1337
    %4485 = vmatpush2.msra.mxu0 %v1336
    %4486 = vmatprep.subr.mxu0 %v1333
    %4487 = vmatpush2.msra.mxu0 %v1332
    %4488 = vmatprep.subr.mxu0 %v1329
    %4489 = vmatpush2.msra.mxu0 %v1328
    %4490 = vmatprep.subr.mxu0 %v1325
    %4491 = vmatpush2.msra.mxu0 %v1324
    %4492 = vmatprep.subr.mxu0 %v1321
    %4493 = vmatpush2.msra.mxu0 %v1320
    %4494 = vmatprep.subr.mxu0 %v1317
    %4495 = vmatpush2.msra.mxu0 %v1316
    %4496 = vmatprep.subr.mxu0 %v1313
    %4497 = vmatpush2.msra.mxu0 %v1312
    %4498 = vmatprep.subr.mxu0 %v1309
    %4499 = vmatpush2.msra.mxu0 %v1308
    %4500 = vmatprep.subr.mxu0 %v1305
    %4501 = vmatpush2.msra.mxu0 %v1304
    %4502 = vmatprep.subr.mxu0 %v1301
    %4503 = vmatpush2.msra.mxu0 %v1300
    %4504 = vmatprep.subr.mxu0 %v1297
    %4505 = vmatpush2.msra.mxu0 %v1296
    %4506 = vmatprep.subr.mxu0 %v1293
    %4507 = vmatpush2.msra.mxu0 %v1292
    %4508 = vmatprep.subr.mxu0 %v1289
    %4509 = vmatpush2.msra.mxu0 %v1288
    %4510 = vmatprep.subr.mxu0 %v1285
    %4511 = vmatpush2.msra.mxu0 %v1284
    %4512 = vmatprep.mubr.f32.mxu0 %v4151
    %4513 = vmatmul.mubr.f32.gmra.mxu0 %v4376
    %v4514 = vpop.f32.mrf.mxu0
    %v4515 = vadd.f32 %v1586, %v4514
    %v4516 = vpop.f32.mrf.mxu0
    %v4517 = vadd.f32 %v1590, %v4516
    %4518 = vdwg.mxu0
    %v4519 = vxor.u32 %v4444, 2147483648
    %v4520 = vxor.u32 %v4446, 2147483648
    %v4521 = vxor.u32 %v4515, 2147483648
    %v4522 = vmul.f32 %v4519, 1.442695
    %v4523 = vpow.pop %v4522
    %v4524 = vmul.f32 %v4520, 1.442695
    %v4525 = vpow.pop %v4524
    %v4526 = vmul.f32 %v4521, 1.442695
    %v4527 = vpow.pop %v4526
    %v4528 = vadd.f32 %v4523, 1.0
    %v4529 = vadd.f32 %v4525, 1.0
    %v4530 = vadd.f32 %v4527, 1.0
    %v4531 = vrcp.pop %v4528
    %v4532 = vmul.f32 1.0, %v4531
    %v4533 = vrcp.pop %v4529
    %v4534 = vmul.f32 1.0, %v4533
    %v4535 = vrcp.pop %v4530
    %v4536 = vmul.f32 1.0, %v4535
    %v4537 = vtanh.pop %v4517
    %v4538 = vmul.f32 %v4534, %v4154
    %v4539 = vmul.f32 %v4532, %v4537
    %v4540 = vadd.f32 %v4538, %v4539
    %v4541 = vtanh.pop %v4540
    %v4542 = vmul.f32 %v4536, %v4541
    %v4543 = vmul.f32 %v4151, 0.1
    %v4544 = vmul.f32 %v4542, 0.9
    %v4545 = vadd.f32 %v4543, %v4544
    %v4546 = vmul.f32 %v4545, %v1769
    %v4547 = vsel %vm1772, %v4546, 0.0
    %4548 = vadd.xlane.f32.xlu0 %v4547
    %v4549 = vpop.xlane.xlu0 %4548
    %v4550 = vadd.f32 %v4549, %v4195
    %v4551 = vadd.f32 %v4550, %v1781
    %vm4552 = vcmp.eq.s32.totalorder %v1350, 7
    %v4553 = vsel %vm4552, 1, 0
    %v4554 = vcvt.s32.f32 %v4553
    %4556 = vset.pattern.permute.xlu0 0
    %4557 = vperm.xlu0 %4556, %v4551
    %v4558 = vpop.permute.xlu0 %4557
    %v4560 = vmul.f32 %v4558, %v4554
    %v4561 = vadd.f32 %v4170, %v4560
    %v4562 = vld [vmem:[#allocation6] sm:$0x3]
    %vm4563 = vcmp.ne.s32.totalorder %v4562, 0
    %v4564 = vsel %vm4563, 0.0, %v4561
    %vm4565 = vcmask 58368
    %4566 = vst.msk [vmem:[#allocation18] sm:$0x3] %vm4565, %v4564
    // Predicated region
    $region98: #{tpu_custom_call.1} parent=1 // pred_check
      _
    $region99: #{tpu_custom_call.1} parent=1 // pred_check_branch
      %4568 = sbr.rel (0) target = $region101
    $region100: #{tpu_custom_call.1} parent=1 // pred_region
      %s4570 = ssub.s32 32, 32
      %4571 = vsyncadd [#allocation5], %s4570
      %s4573 = sshll.u32 [#allocation18], 4
      %s4574 = int_to_ptr.vmem [resolvable:$true] %s4573
      %4576 = dma.vmem_to_hbm [thread:$0]  %s4574, 32, %s15, [#allocation5]
    $region101: #{tpu_custom_call.1} parent=1 // pred_fallthru
      _
    // Predicated region
    $region102: #{tpu_custom_call.1} parent=1 // pred_check
      _
    $region103: #{tpu_custom_call.1} parent=1 // pred_check_branch
      %4578 = sbr.rel (0) target = $region105
    $region104: #{tpu_custom_call.1} parent=1 // pred_region
      %4579 = dma.done [#allocation5], 32
    $region105: #{tpu_custom_call.1} parent=1 // pred_fallthru
      _
    %4580 = vsyncpa [#allocation4], 1
    %4581 = vsyncpa [#allocation7], 1
    %4582 = vsyncpa [#allocation10], 1
    %4583 = vsyncpa [#allocation13], 1
    %4584 = vsyncpa [#allocation16], 1
    %4585 = vsyncpa [#allocation5], 1

</llo_original>
